<compile_context>
chip_gen: v5e
topology: v5e:2x2
jax: 0.10.0
libtpu: 0.0.40
codegen_flags: <defaults>
</compile_context>

<pallas_src>
import math
import numpy as np
import jax
import jax.numpy as jnp
from jax.experimental import pallas as pl
from jax.experimental.pallas import tpu as pltpu


# ----------------------------------------------------------------------------
# Kernel: one grid step == bt windows == G = bt*n tokens, block-diag attention.
# ----------------------------------------------------------------------------
def make_msa_kernel(bt, n, c, num_heads, eps=1e-5):
    H = num_heads
    hd = c // H
    G = bt * n
    inv_plane = 1.0 / float(n * hd)

    def kernel(xg_ref, mqk_ref, wvf_ref, bfuse_ref, bias_ref, wpm_ref,
               gdn_ref, gnd_ref, rsum_ref, bcast_ref, tile_ref, lmask_ref,
               bproj_ref, o_ref):
        xg = xg_ref[...]                        # (G, 2c)  bf16, [x1 || x2] channels
        rsum = rsum_ref[...]                    # (bt, G)  f32, per-window row-sum

        # ---- fused value path: 1x1 conv over the 2H value channels folded into a
        #      single (2c, c) projection -> one bf16 MXU matmul. --------------------
        vf = (jnp.dot(xg, wvf_ref[...], preferred_element_type=jnp.float32)
              + bfuse_ref[...])                 # (G, c) f32, cols ordered (head, hd)

        # ---- InstanceNorm2d (affine=False, biased var) per (window, head) over the
        #      (n, hd) plane.  Window reduce / broadcast done with tiny f32 0/1
        #      matmuls (MXU is otherwise idle here, keeps exact precision). ---------
        s1 = jnp.dot(rsum, vf, preferred_element_type=jnp.float32)          # (bt, c)
        s2 = jnp.dot(rsum, vf * vf, preferred_element_type=jnp.float32)     # (bt, c)
        gm = jnp.dot(s1, gdn_ref[...], preferred_element_type=jnp.float32) * inv_plane
        g2 = jnp.dot(s2, gdn_ref[...], preferred_element_type=jnp.float32) * inv_plane
        gvar = jnp.maximum(g2 - gm * gm, 0.0)                               # (bt, H)
        ginv = jax.lax.rsqrt(gvar + eps)
        mean_w = jnp.dot(gm, gnd_ref[...], preferred_element_type=jnp.float32)   # (bt, c)
        inv_w = jnp.dot(ginv, gnd_ref[...], preferred_element_type=jnp.float32)  # (bt, c)
        mean_g = jnp.dot(bcast_ref[...], mean_w, preferred_element_type=jnp.float32)  # (G, c)
        inv_g = jnp.dot(bcast_ref[...], inv_w, preferred_element_type=jnp.float32)    # (G, c)
        vfn = jnp.maximum((vf - mean_g) * inv_g, 0.0)                       # ReLU
        vfn = 0.5 * (jnp.tanh(0.5 * vfn) + 1.0)                             # Sigmoid via EUP tanh
        vff = vfn.astype(jnp.bfloat16)                                      # (G, c)

        # ---- block-diagonal attention over the G-token group (per head, unrolled).
        #      logits_h = (Xg @ Mqk_h) @ Xg^T; the (H, G, G) bias constant carries
        #      the tiled relative-position bias on diagonal blocks and -1e9 off the
        #      diagonal, so softmax stays within each window.  The head-h row block
        #      of the output projection is folded into wpm[h]. ---------------------
        acc = jnp.zeros((G, c), jnp.float32)
        for h in range(H):
            t = jnp.dot(xg, mqk_ref[h], preferred_element_type=jnp.float32)      # (G, 2c)
            logits = jnp.einsum('qd,kd->qk', t.astype(jnp.bfloat16), xg,
                                preferred_element_type=jnp.float32)              # (G, G)
            logits = logits + bias_ref[h]
            logits = logits - jnp.max(logits, axis=-1, keepdims=True)
            e = jnp.exp(logits)
            p = e * pl.reciprocal(jnp.sum(e, axis=-1, keepdims=True), approx=True)
            # attn_drop (p=0.0) -> identity
            vfp = jnp.dot(vff, wpm_ref[h], preferred_element_type=jnp.float32)   # (G, c)
            acc = acc + jnp.dot(p.astype(jnp.bfloat16), vfp.astype(jnp.bfloat16),
                                preferred_element_type=jnp.float32)

        # ---- lane-dense output: acc (G, c) -> (bt, n*c = 128) without reshapes or
        #      serial scatter chains:
        #        1) tile c lanes to n*c lanes with a 0/1 matmul,
        #        2) keep only each token's own lane slot (precomputed mask),
        #        3) one per-window row-sum matmul.
        #      Single unmasked (bt, 128) store per grid step. -----------------------
        lane = jnp.dot(acc, tile_ref[...], preferred_element_type=jnp.float32)    # (G, nc)
        lane = lane * lmask_ref[...]
        dense = jnp.dot(rsum, lane, preferred_element_type=jnp.float32)           # (bt, nc)
        # proj_drop (p=0.0) -> identity
        o_ref[...] = dense + bproj_ref[...]

    return kernel


# ----------------------------------------------------------------------------
# One-time, weight-side constant folds (parameter-construction time, NOT per call).
# ----------------------------------------------------------------------------
def fold_params(params, n, bt):
    H = params["num_heads"]
    wqkv = params["w_qkv"]                        # (c, 3c), y = x @ w_qkv
    c = wqkv.shape[0]
    hd = c // H
    scale = hd ** (-0.5)
    G = bt * n
    nc = n * c

    wq = wqkv[:, 0 * c:1 * c].reshape(c, H, hd)
    wk = wqkv[:, 1 * c:2 * c].reshape(c, H, hd)
    wv = wqkv[:, 2 * c:3 * c].reshape(c, H, hd)

    # attn_h(x) = x @ (scale * Wq_h Wk_h^T) @ x^T, block-diag'ed for [x1 || x2]
    mqk = scale * jnp.einsum('ahd,ghd->hag', wq, wk)                 # (H, c, c)
    zero = jnp.zeros((H, c, c), jnp.float32)
    mqk_cat = jnp.concatenate(
        [jnp.concatenate([mqk, zero], axis=2),
         jnp.concatenate([zero, mqk], axis=2)], axis=1)              # (H, 2c, 2c)

    # 1x1 "fuse" conv (2H -> H channels) folded into a stacked value projection
    wf = params["w_fuse"]                                            # (H, 2H)
    wvf1 = jnp.einsum('khd,oh->kod', wv, wf[:, :H]).reshape(c, c)
    wvf2 = jnp.einsum('khd,oh->kod', wv, wf[:, H:]).reshape(c, c)
    wvf_cat = jnp.concatenate([wvf1, wvf2], axis=0)                  # (2c, c)
    bfuse_row = jnp.repeat(params["b_fuse"], hd).reshape(1, c)

    # per-head row-masked output projection + head-group reduce/broadcast matrices
    head_mask = ((jnp.arange(c) // hd)[None, :] ==
                 jnp.arange(H)[:, None]).astype(jnp.float32)         # (H, c)
    wpm = head_mask[:, :, None] * params["w_proj"][None, :, :]       # (H, c, c)
    gdn = head_mask.T                                                # (c, H)
    gnd = head_mask                                                  # (H, c)

    # grouped block-diagonal attention constants
    eye_w = jnp.eye(bt, dtype=jnp.float32)
    blockmask = jnp.kron(eye_w, jnp.ones((n, n), jnp.float32))       # (G, G)
    bias_blocks = jnp.einsum('wv,hij->hwivj', eye_w,
                             params["rel_bias"]).reshape(H, G, G)
    bias_all = bias_blocks + (blockmask[None] - 1.0) * 1e9           # (H, G, G)

    rsum = jnp.kron(eye_w, jnp.ones((1, n), jnp.float32))            # (bt, G)
    bcast = rsum.T                                                   # (G, bt)

    # lane-dense epilogue constants: tile c -> n*c lanes, keep own token slot
    tilemat = (jnp.arange(nc)[None, :] % c ==
               jnp.arange(c)[:, None]).astype(jnp.float32)           # (c, nc)
    lanemask = ((jnp.arange(nc)[None, :] // c) ==
                (jnp.arange(G)[:, None] % n)).astype(jnp.float32)    # (G, nc)
    bprojd = jnp.tile(params["b_proj"], n).reshape(1, nc)

    return {
        "num_heads": H, "bt": bt,
        "mqk_cat": mqk_cat.astype(jnp.bfloat16),
        "wvf_cat": wvf_cat.astype(jnp.bfloat16),
        "bfuse_row": bfuse_row,
        "bias_all": bias_all,
        "wpm": wpm.astype(jnp.bfloat16),
        "gdn": gdn, "gnd": gnd,
        "rsum": rsum, "bcast": bcast,
        "tilemat": tilemat, "lanemask": lanemask, "bprojd": bprojd,
    }


# ----------------------------------------------------------------------------
# Wrapper: bt windows (G = bt*n tokens) per grid step, lane-dense (bt, n*c) output.
# ----------------------------------------------------------------------------
def msa_block_forward(x1, x2, folded):
    b, n, c = x1.shape
    H = folded["num_heads"]
    bt = folded["bt"]
    nc = n * c
    G = bt * n
    assert bt % 8 == 0, "batch block must be a multiple of 8 (sublane tile)"

    nsteps = pl.cdiv(b, bt)
    bp = nsteps * bt
    if bp != b:
        pad = ((0, bp - b), (0, 0), (0, 0))
        x1 = jnp.pad(x1, pad)
        x2 = jnp.pad(x2, pad)

    # concat inputs along channels and flatten to (tokens, 2c) in the wrapper
    xg = jnp.concatenate([x1, x2], axis=-1).reshape(bp * n, 2 * c).astype(jnp.bfloat16)

    kernel = make_msa_kernel(bt, n, c, H)

    in_specs = [
        pl.BlockSpec((G, 2 * c), lambda i: (i, 0)),            # xg tokens (bf16)
        pl.BlockSpec((H, 2 * c, 2 * c), lambda i: (0, 0, 0)),  # block-diag Mqk (bf16)
        pl.BlockSpec((2 * c, c), lambda i: (0, 0)),            # fused value weight (bf16)
        pl.BlockSpec((1, c), lambda i: (0, 0)),                # fuse conv bias
        pl.BlockSpec((H, G, G), lambda i: (0, 0, 0)),          # tiled rel-pos bias + mask
        pl.BlockSpec((H, c, c), lambda i: (0, 0, 0)),          # per-head masked proj (bf16)
        pl.BlockSpec((c, H), lambda i: (0, 0)),                # head-group reduce
        pl.BlockSpec((H, c), lambda i: (0, 0)),                # head-group broadcast
        pl.BlockSpec((bt, G), lambda i: (0, 0)),               # per-window row-sum
        pl.BlockSpec((G, bt), lambda i: (0, 0)),               # per-window broadcast
        pl.BlockSpec((c, nc), lambda i: (0, 0)),               # lane-tile matrix
        pl.BlockSpec((G, nc), lambda i: (0, 0)),               # lane slot mask
        pl.BlockSpec((1, nc), lambda i: (0, 0)),               # proj bias, lane-dense
    ]
    out_specs = pl.BlockSpec((bt, nc), lambda i: (i, 0))

    # Advisory cost estimate.
    T = bp * n
    macs = (T * 2 * c * c                              # fused value projection
            + 4 * T * bt * c                           # InstanceNorm reduce/broadcast
            + H * (T * (2 * c) * (2 * c)               # x @ Mqk
                   + T * G * (2 * c)                   # logits
                   + T * c * c                         # per-head value proj
                   + T * G * c)                        # attention apply
            + T * c * nc + bp * G * nc)                # lane-dense epilogue
    cost = pl.CostEstimate(
        flops=int(2 * macs),
        transcendentals=int(H * T * G + T * c + H * T + bp * H),
        bytes_accessed=int(2 * T * 2 * c + 4 * bp * nc
                           + nsteps * (4 * H * G * G + 4 * G * nc
                                       + 2 * H * (2 * c) * (2 * c)
                                       + 2 * H * c * c
                                       + 4 * (2 * bt * G + c * nc + 2 * nc))),
    )

    out_dense = pl.pallas_call(
        kernel,
        out_shape=jax.ShapeDtypeStruct((bp, nc), jnp.float32),
        grid_spec=pltpu.PrefetchScalarGridSpec(
            num_scalar_prefetch=0,
            grid=(nsteps,),
            in_specs=in_specs,
            out_specs=out_specs,
        ),
        compiler_params=pltpu.CompilerParams(
            dimension_semantics=("parallel",),
            vmem_limit_bytes=32 * 1024 * 1024),
        cost_estimate=cost,
    )(xg, folded["mqk_cat"], folded["wvf_cat"], folded["bfuse_row"],
      folded["bias_all"], folded["wpm"], folded["gdn"], folded["gnd"],
      folded["rsum"], folded["bcast"], folded["tilemat"], folded["lanemask"],
      folded["bprojd"])

    return out_dense.reshape(bp, n, c)[:b]


# ----------------------------------------------------------------------------
# Parameter setup (deterministic, synthetic).  The relative-position-bias index
# buffer / gather (built at module init in PyTorch) stays in plain numpy/JAX.
# ----------------------------------------------------------------------------
def relative_position_index(window_size):
    W0, W1, W2 = window_size
    coords = np.stack(np.meshgrid(np.arange(W0), np.arange(W1), np.arange(W2),
                                  indexing="ij"))                    # (3, W0, W1, W2)
    coords_flatten = coords.reshape(3, -1)
    rel = coords_flatten[:, :, None] - coords_flatten[:, None, :]
    rel = rel.transpose(1, 2, 0).copy()
    rel[:, :, 0] += W0 - 1
    rel[:, :, 1] += W1 - 1
    rel[:, :, 2] += W2 - 1
    rel[:, :, 0] *= (2 * W1 - 1) * (2 * W2 - 1)
    rel[:, :, 1] *= 2 * W2 - 1
    return rel.sum(-1)                                               # (Wp, Wp) int


def init_params(key, embed_dim, num_heads, window_size, n):
    c, H = embed_dim, num_heads
    assert 2 * H == c // 2, "fuse Conv2d requires num_heads == embed_dim // 4"
    ks = jax.random.split(key, 6)
    tbl_size = ((2 * window_size[0] - 1) * (2 * window_size[1] - 1)
                * (2 * window_size[2] - 1))
    # trunc_normal_(std=0.02): truncation at +-2 is inert at this std.
    rpb_table = jax.random.normal(ks[0], (tbl_size, H), jnp.float32) * 0.02
    rpi = relative_position_index(window_size)
    rel_bias = rpb_table[jnp.asarray(rpi[:n, :n].reshape(-1))]
    rel_bias = rel_bias.reshape(n, n, H).transpose(2, 0, 1)          # (H, n, n)

    return {
        "num_heads": H,
        "w_qkv": jax.random.normal(ks[1], (c, 3 * c), jnp.float32) * 0.02,  # x @ w_qkv
        "w_proj": jax.random.normal(ks[2], (c, c), jnp.float32) * 0.02,     # x @ w_proj
        "b_proj": jax.random.normal(ks[3], (c,), jnp.float32) * 0.02,
        "b_fuse": jax.random.normal(ks[5], (H,), jnp.float32) * 0.1,
        "w_fuse": jax.random.normal(ks[4], (H, 2 * H), jnp.float32) * 0.1,  # (out_ch, in_ch)
        "rel_bias": rel_bias.astype(jnp.float32),
    }


# ----------------------------------------------------------------------------
# Pure-JAX reference mirroring the PyTorch forward with the RAW (unfolded)
# parameters — validates all the weight-side algebraic folds in the kernel.
# ----------------------------------------------------------------------------
def reference_forward(x1, x2, params):
    b, n, c = x1.shape
    H = params["num_heads"]
    hd = c // H
    scale = hd ** (-0.5)

    def qkv_split(x):
        qkv = x @ params["w_qkv"]
        qkv = qkv.reshape(b, n, 3, H, hd).transpose(2, 0, 3, 1, 4)   # (3, b, H, n, hd)
        return qkv[0], qkv[1], qkv[2]

    q1, k1, v1 = qkv_split(x1)
    q2, k2, v2 = qkv_split(x2)
    attn1 = jnp.einsum("bhqd,bhkd->bhqk", q1 * scale, k1)
    attn2 = jnp.einsum("bhqd,bhkd->bhqk", q2 * scale, k2)

    vcat = jnp.concatenate([v1, v2], axis=1)                         # (b, 2H, n, hd)
    vf = (jnp.einsum("oi,bixy->boxy", params["w_fuse"], vcat)
          + params["b_fuse"][None, :, None, None])
    mu = vf.mean(axis=(2, 3), keepdims=True)
    var = ((vf - mu) ** 2).mean(axis=(2, 3), keepdims=True)
    vf = (vf - mu) / jnp.sqrt(var + 1e-5)
    vf = jax.nn.sigmoid(jnp.maximum(vf, 0.0))

    attn = jax.nn.softmax(attn1 + attn2 + params["rel_bias"][None], axis=-1)
    out = jnp.einsum("bhqk,bhkd->bhqd", attn, vf)
    out = out.transpose(0, 2, 1, 3).reshape(b, n, c)
    return out @ params["w_proj"] + params["b_proj"][None, None, :]


if __name__ == "__main__":
    embed_dim = 16
    num_heads = 4                          # fuse conv forces num_heads == embed_dim // 4
    window_size = [2, 2, 2]
    n_tokens = window_size[0] * window_size[1] * window_size[2]      # 8  (n*c = 128)
    batch = 32
    bt = 16                                # G = bt*n = 128 tokens/step, 2 parallel steps

    key = jax.random.PRNGKey(0)
    k_x1, k_x2, k_p = jax.random.split(key, 3)
    x_in = jax.random.normal(k_x1, (batch, n_tokens, embed_dim), jnp.float32)
    x_in2 = jax.random.normal(k_x2, (batch, n_tokens, embed_dim), jnp.float32)

    params = init_params(k_p, embed_dim, num_heads, window_size, n_tokens)
    folded = fold_params(params, n_tokens, bt)   # one-time weight-side constant folds

    out = msa_block_forward(x_in, x_in2, folded)
    out = jax.block_until_ready(out)

    ref = reference_forward(x_in, x_in2, params)
    assert out.shape == (batch, n_tokens, embed_dim)
    max_err = float(jnp.max(jnp.abs(out - ref)))
    # bf16 MXU operands + approx softmax reciprocal -> looser tolerance than pure f32
    assert bool(jnp.allclose(out, ref, rtol=2e-2, atol=2e-3)), \
        f"mismatch vs JAX reference (max abs err {max_err:.3e})"

    print("KERNEL_OK")
</pallas_src>

<mosaic_0001>
module attributes {stable_mosaic.version = 11 : i64} {
  func.func @kernel(%arg0: i32, %arg1: memref<128x32xbf16, #tpu.memory_space<vmem>>, %arg2: memref<4x32x32xbf16, #tpu.memory_space<vmem>>, %arg3: memref<32x16xbf16, #tpu.memory_space<vmem>>, %arg4: memref<1x16xf32, #tpu.memory_space<vmem>>, %arg5: memref<4x128x128xf32, #tpu.memory_space<vmem>>, %arg6: memref<4x16x16xbf16, #tpu.memory_space<vmem>>, %arg7: memref<16x4xf32, #tpu.memory_space<vmem>>, %arg8: memref<4x16xf32, #tpu.memory_space<vmem>>, %arg9: memref<16x128xf32, #tpu.memory_space<vmem>>, %arg10: memref<128x16xf32, #tpu.memory_space<vmem>>, %arg11: memref<16x128xf32, #tpu.memory_space<vmem>>, %arg12: memref<128x128xf32, #tpu.memory_space<vmem>>, %arg13: memref<1x128xf32, #tpu.memory_space<vmem>>, %arg14: memref<16x128xf32, #tpu.memory_space<vmem>>) attributes {dimension_semantics = [#tpu.dimension_semantics<parallel>], iteration_bounds = array<i64: 2>, scalar_prefetch = 0 : i64, scratch_operands = 0 : i64, tpu.core_type = #tpu.core_type<tc>, window_params = [{transform_indices = @transform_0, window_bounds = array<i64: 128, 32>}, {pipeline_mode = #tpu.pipeline_mode<synchronous>, transform_indices = @transform_1, window_bounds = array<i64: 4, 32, 32>}, {pipeline_mode = #tpu.pipeline_mode<synchronous>, transform_indices = @transform_2, window_bounds = array<i64: 32, 16>}, {pipeline_mode = #tpu.pipeline_mode<synchronous>, transform_indices = @transform_3, window_bounds = array<i64: 1, 16>}, {pipeline_mode = #tpu.pipeline_mode<synchronous>, transform_indices = @transform_4, window_bounds = array<i64: 4, 128, 128>}, {pipeline_mode = #tpu.pipeline_mode<synchronous>, transform_indices = @transform_5, window_bounds = array<i64: 4, 16, 16>}, {pipeline_mode = #tpu.pipeline_mode<synchronous>, transform_indices = @transform_6, window_bounds = array<i64: 16, 4>}, {pipeline_mode = #tpu.pipeline_mode<synchronous>, transform_indices = @transform_7, window_bounds = array<i64: 4, 16>}, {pipeline_mode = #tpu.pipeline_mode<synchronous>, transform_indices = @transform_8, window_bounds = array<i64: 16, 128>}, {pipeline_mode = #tpu.pipeline_mode<synchronous>, transform_indices = @transform_9, window_bounds = array<i64: 128, 16>}, {pipeline_mode = #tpu.pipeline_mode<synchronous>, transform_indices = @transform_10, window_bounds = array<i64: 16, 128>}, {pipeline_mode = #tpu.pipeline_mode<synchronous>, transform_indices = @transform_11, window_bounds = array<i64: 128, 128>}, {pipeline_mode = #tpu.pipeline_mode<synchronous>, transform_indices = @transform_12, window_bounds = array<i64: 1, 128>}, {transform_indices = @transform_13, window_bounds = array<i64: 16, 128>}]} {
    %c0 = arith.constant 0 : index
    %c0_0 = arith.constant 0 : index
    %0 = vector.load %arg1[%c0, %c0_0] : memref<128x32xbf16, #tpu.memory_space<vmem>>, vector<128x32xbf16>
    %c0_1 = arith.constant 0 : index
    %c0_2 = arith.constant 0 : index
    %1 = vector.load %arg9[%c0_1, %c0_2] : memref<16x128xf32, #tpu.memory_space<vmem>>, vector<16x128xf32>
    %c0_3 = arith.constant 0 : index
    %c0_4 = arith.constant 0 : index
    %2 = vector.load %arg3[%c0_3, %c0_4] : memref<32x16xbf16, #tpu.memory_space<vmem>>, vector<32x16xbf16>
    %cst = arith.constant dense<0.000000e+00> : vector<128x16xf32>
    %3 = tpu.matmul %0, %2, %cst {dimension_numbers = #tpu.dot_dimension_numbers<[1], [0], [0], [1], [0, 0, 1, 1], [], []>} : vector<128x32xbf16>, vector<32x16xbf16>, vector<128x16xf32> -> vector<128x16xf32>
    %c0_5 = arith.constant 0 : index
    %c0_6 = arith.constant 0 : index
    %4 = vector.load %arg4[%c0_5, %c0_6] : memref<1x16xf32, #tpu.memory_space<vmem>>, vector<1x16xf32>
    %5 = vector.broadcast %4 : vector<1x16xf32> to vector<128x16xf32>
    %6 = arith.addf %3, %5 : vector<128x16xf32>
    %cst_7 = arith.constant dense<0.000000e+00> : vector<16x16xf32>
    %7 = tpu.matmul %1, %6, %cst_7 {dimension_numbers = #tpu.dot_dimension_numbers<[1], [0], [0], [1], [0, 0, 1, 1], [], []>} : vector<16x128xf32>, vector<128x16xf32>, vector<16x16xf32> -> vector<16x16xf32>
    %8 = arith.mulf %6, %6 : vector<128x16xf32>
    %cst_8 = arith.constant dense<0.000000e+00> : vector<16x16xf32>
    %9 = tpu.matmul %1, %8, %cst_8 {dimension_numbers = #tpu.dot_dimension_numbers<[1], [0], [0], [1], [0, 0, 1, 1], [], []>} : vector<16x128xf32>, vector<128x16xf32>, vector<16x16xf32> -> vector<16x16xf32>
    %c0_9 = arith.constant 0 : index
    %c0_10 = arith.constant 0 : index
    %10 = vector.load %arg7[%c0_9, %c0_10] : memref<16x4xf32, #tpu.memory_space<vmem>>, vector<16x4xf32>
    %cst_11 = arith.constant dense<0.000000e+00> : vector<16x4xf32>
    %11 = tpu.matmul %7, %10, %cst_11 {dimension_numbers = #tpu.dot_dimension_numbers<[1], [0], [0], [1], [0, 0, 1, 1], [], []>} : vector<16x16xf32>, vector<16x4xf32>, vector<16x4xf32> -> vector<16x4xf32>
    %cst_12 = arith.constant 3.125000e-02 : f32
    %12 = vector.broadcast %cst_12 : f32 to vector<16x4xf32>
    %13 = arith.mulf %11, %12 : vector<16x4xf32>
    %c0_13 = arith.constant 0 : index
    %c0_14 = arith.constant 0 : index
    %14 = vector.load %arg7[%c0_13, %c0_14] : memref<16x4xf32, #tpu.memory_space<vmem>>, vector<16x4xf32>
    %cst_15 = arith.constant dense<0.000000e+00> : vector<16x4xf32>
    %15 = tpu.matmul %9, %14, %cst_15 {dimension_numbers = #tpu.dot_dimension_numbers<[1], [0], [0], [1], [0, 0, 1, 1], [], []>} : vector<16x16xf32>, vector<16x4xf32>, vector<16x4xf32> -> vector<16x4xf32>
    %cst_16 = arith.constant 3.125000e-02 : f32
    %16 = vector.broadcast %cst_16 : f32 to vector<16x4xf32>
    %17 = arith.mulf %15, %16 : vector<16x4xf32>
    %18 = arith.mulf %13, %13 : vector<16x4xf32>
    %19 = arith.subf %17, %18 : vector<16x4xf32>
    %cst_17 = arith.constant 0.000000e+00 : f32
    %20 = vector.broadcast %cst_17 : f32 to vector<16x4xf32>
    %21 = arith.maximumf %19, %20 : vector<16x4xf32>
    %cst_18 = arith.constant 9.99999974E-6 : f32
    %22 = vector.broadcast %cst_18 : f32 to vector<16x4xf32>
    %23 = arith.addf %21, %22 : vector<16x4xf32>
    %24 = math.rsqrt %23 : vector<16x4xf32>
    %c0_19 = arith.constant 0 : index
    %c0_20 = arith.constant 0 : index
    %25 = vector.load %arg8[%c0_19, %c0_20] : memref<4x16xf32, #tpu.memory_space<vmem>>, vector<4x16xf32>
    %cst_21 = arith.constant dense<0.000000e+00> : vector<16x16xf32>
    %26 = tpu.matmul %13, %25, %cst_21 {dimension_numbers = #tpu.dot_dimension_numbers<[1], [0], [0], [1], [0, 0, 1, 1], [], []>} : vector<16x4xf32>, vector<4x16xf32>, vector<16x16xf32> -> vector<16x16xf32>
    %c0_22 = arith.constant 0 : index
    %c0_23 = arith.constant 0 : index
    %27 = vector.load %arg8[%c0_22, %c0_23] : memref<4x16xf32, #tpu.memory_space<vmem>>, vector<4x16xf32>
    %cst_24 = arith.constant dense<0.000000e+00> : vector<16x16xf32>
    %28 = tpu.matmul %24, %27, %cst_24 {dimension_numbers = #tpu.dot_dimension_numbers<[1], [0], [0], [1], [0, 0, 1, 1], [], []>} : vector<16x4xf32>, vector<4x16xf32>, vector<16x16xf32> -> vector<16x16xf32>
    %c0_25 = arith.constant 0 : index
    %c0_26 = arith.constant 0 : index
    %29 = vector.load %arg10[%c0_25, %c0_26] : memref<128x16xf32, #tpu.memory_space<vmem>>, vector<128x16xf32>
    %cst_27 = arith.constant dense<0.000000e+00> : vector<128x16xf32>
    %30 = tpu.matmul %29, %26, %cst_27 {dimension_numbers = #tpu.dot_dimension_numbers<[1], [0], [0], [1], [0, 0, 1, 1], [], []>} : vector<128x16xf32>, vector<16x16xf32>, vector<128x16xf32> -> vector<128x16xf32>
    %c0_28 = arith.constant 0 : index
    %c0_29 = arith.constant 0 : index
    %31 = vector.load %arg10[%c0_28, %c0_29] : memref<128x16xf32, #tpu.memory_space<vmem>>, vector<128x16xf32>
    %cst_30 = arith.constant dense<0.000000e+00> : vector<128x16xf32>
    %32 = tpu.matmul %31, %28, %cst_30 {dimension_numbers = #tpu.dot_dimension_numbers<[1], [0], [0], [1], [0, 0, 1, 1], [], []>} : vector<128x16xf32>, vector<16x16xf32>, vector<128x16xf32> -> vector<128x16xf32>
    %33 = arith.subf %6, %30 : vector<128x16xf32>
    %34 = arith.mulf %33, %32 : vector<128x16xf32>
    %cst_31 = arith.constant 0.000000e+00 : f32
    %35 = vector.broadcast %cst_31 : f32 to vector<128x16xf32>
    %36 = arith.maximumf %34, %35 : vector<128x16xf32>
    %cst_32 = arith.constant 5.000000e-01 : f32
    %37 = vector.broadcast %cst_32 : f32 to vector<128x16xf32>
    %38 = arith.mulf %37, %36 : vector<128x16xf32>
    %39 = math.tanh %38 : vector<128x16xf32>
    %cst_33 = arith.constant 1.000000e+00 : f32
    %40 = vector.broadcast %cst_33 : f32 to vector<128x16xf32>
    %41 = arith.addf %39, %40 : vector<128x16xf32>
    %cst_34 = arith.constant 5.000000e-01 : f32
    %42 = vector.broadcast %cst_34 : f32 to vector<128x16xf32>
    %43 = arith.mulf %42, %41 : vector<128x16xf32>
    %44 = arith.truncf %43 : vector<128x16xf32> to vector<128x16xbf16>
    %cst_35 = arith.constant 0.000000e+00 : f32
    %45 = vector.broadcast %cst_35 : f32 to vector<128x16xf32>
    %c0_36 = arith.constant 0 : index
    %c0_37 = arith.constant 0 : index
    %c0_38 = arith.constant 0 : index
    %46 = vector.load %arg2[%c0_36, %c0_37, %c0_38] : memref<4x32x32xbf16, #tpu.memory_space<vmem>>, vector<1x32x32xbf16>
    %47 = vector.shape_cast %46 : vector<1x32x32xbf16> to vector<32x32xbf16>
    %cst_39 = arith.constant dense<0.000000e+00> : vector<128x32xf32>
    %48 = tpu.matmul %0, %47, %cst_39 {dimension_numbers = #tpu.dot_dimension_numbers<[1], [0], [0], [1], [0, 0, 1, 1], [], []>} : vector<128x32xbf16>, vector<32x32xbf16>, vector<128x32xf32> -> vector<128x32xf32>
    %49 = arith.truncf %48 : vector<128x32xf32> to vector<128x32xbf16>
    "tpu.trace_start"() <{level = 10 : i32, message = "qd,kd->qk"}> : () -> ()
    %cst_40 = arith.constant dense<0.000000e+00> : vector<128x128xf32>
    %50 = tpu.matmul %49, %0, %cst_40 {dimension_numbers = #tpu.dot_dimension_numbers<[1], [1], [0], [0], [0, 0, 1, 0], [], []>} : vector<128x32xbf16>, vector<128x32xbf16>, vector<128x128xf32> -> vector<128x128xf32>
    "tpu.trace_stop"() : () -> ()
    %c0_41 = arith.constant 0 : index
    %c0_42 = arith.constant 0 : index
    %c0_43 = arith.constant 0 : index
    %51 = vector.load %arg5[%c0_41, %c0_42, %c0_43] : memref<4x128x128xf32, #tpu.memory_space<vmem>>, vector<1x128x128xf32>
    %52 = vector.shape_cast %51 : vector<1x128x128xf32> to vector<128x128xf32>
    %53 = arith.addf %50, %52 : vector<128x128xf32>
    %cst_44 = arith.constant dense<0xFF800000> : vector<128xf32>
    %54 = vector.multi_reduction <maximumf>, %53, %cst_44 [1] : vector<128x128xf32> to vector<128xf32>
    %55 = vector.shape_cast %54 : vector<128xf32> to vector<128x1xf32>
    %56 = vector.broadcast %55 : vector<128x1xf32> to vector<128x128xf32>
    %57 = arith.subf %53, %56 : vector<128x128xf32>
    %58 = math.exp %57 : vector<128x128xf32>
    %cst_45 = arith.constant dense<0.000000e+00> : vector<128xf32>
    %59 = vector.multi_reduction <add>, %58, %cst_45 [1] : vector<128x128xf32> to vector<128xf32>
    %60 = vector.shape_cast %59 : vector<128xf32> to vector<128x1xf32>
    %61 = tpu.reciprocal %60 {approx = true} : vector<128x1xf32> -> vector<128x1xf32>
    %62 = vector.broadcast %61 : vector<128x1xf32> to vector<128x128xf32>
    %63 = arith.mulf %58, %62 : vector<128x128xf32>
    %c0_46 = arith.constant 0 : index
    %c0_47 = arith.constant 0 : index
    %c0_48 = arith.constant 0 : index
    %64 = vector.load %arg6[%c0_46, %c0_47, %c0_48] : memref<4x16x16xbf16, #tpu.memory_space<vmem>>, vector<1x16x16xbf16>
    %65 = vector.shape_cast %64 : vector<1x16x16xbf16> to vector<16x16xbf16>
    %cst_49 = arith.constant dense<0.000000e+00> : vector<128x16xf32>
    %66 = tpu.matmul %44, %65, %cst_49 {dimension_numbers = #tpu.dot_dimension_numbers<[1], [0], [0], [1], [0, 0, 1, 1], [], []>} : vector<128x16xbf16>, vector<16x16xbf16>, vector<128x16xf32> -> vector<128x16xf32>
    %67 = arith.truncf %63 : vector<128x128xf32> to vector<128x128xbf16>
    %68 = arith.truncf %66 : vector<128x16xf32> to vector<128x16xbf16>
    %cst_50 = arith.constant dense<0.000000e+00> : vector<128x16xf32>
    %69 = tpu.matmul %67, %68, %cst_50 {dimension_numbers = #tpu.dot_dimension_numbers<[1], [0], [0], [1], [0, 0, 1, 1], [], []>} : vector<128x128xbf16>, vector<128x16xbf16>, vector<128x16xf32> -> vector<128x16xf32>
    %70 = arith.addf %45, %69 : vector<128x16xf32>
    %c1 = arith.constant 1 : index
    %c0_51 = arith.constant 0 : index
    %c0_52 = arith.constant 0 : index
    %71 = vector.load %arg2[%c1, %c0_51, %c0_52] : memref<4x32x32xbf16, #tpu.memory_space<vmem>>, vector<1x32x32xbf16>
    %72 = vector.shape_cast %71 : vector<1x32x32xbf16> to vector<32x32xbf16>
    %cst_53 = arith.constant dense<0.000000e+00> : vector<128x32xf32>
    %73 = tpu.matmul %0, %72, %cst_53 {dimension_numbers = #tpu.dot_dimension_numbers<[1], [0], [0], [1], [0, 0, 1, 1], [], []>} : vector<128x32xbf16>, vector<32x32xbf16>, vector<128x32xf32> -> vector<128x32xf32>
    %74 = arith.truncf %73 : vector<128x32xf32> to vector<128x32xbf16>
    "tpu.trace_start"() <{level = 10 : i32, message = "qd,kd->qk"}> : () -> ()
    %cst_54 = arith.constant dense<0.000000e+00> : vector<128x128xf32>
    %75 = tpu.matmul %74, %0, %cst_54 {dimension_numbers = #tpu.dot_dimension_numbers<[1], [1], [0], [0], [0, 0, 1, 0], [], []>} : vector<128x32xbf16>, vector<128x32xbf16>, vector<128x128xf32> -> vector<128x128xf32>
    "tpu.trace_stop"() : () -> ()
    %c1_55 = arith.constant 1 : index
    %c0_56 = arith.constant 0 : index
    %c0_57 = arith.constant 0 : index
    %76 = vector.load %arg5[%c1_55, %c0_56, %c0_57] : memref<4x128x128xf32, #tpu.memory_space<vmem>>, vector<1x128x128xf32>
    %77 = vector.shape_cast %76 : vector<1x128x128xf32> to vector<128x128xf32>
    %78 = arith.addf %75, %77 : vector<128x128xf32>
    %cst_58 = arith.constant dense<0xFF800000> : vector<128xf32>
    %79 = vector.multi_reduction <maximumf>, %78, %cst_58 [1] : vector<128x128xf32> to vector<128xf32>
    %80 = vector.shape_cast %79 : vector<128xf32> to vector<128x1xf32>
    %81 = vector.broadcast %80 : vector<128x1xf32> to vector<128x128xf32>
    %82 = arith.subf %78, %81 : vector<128x128xf32>
    %83 = math.exp %82 : vector<128x128xf32>
    %cst_59 = arith.constant dense<0.000000e+00> : vector<128xf32>
    %84 = vector.multi_reduction <add>, %83, %cst_59 [1] : vector<128x128xf32> to vector<128xf32>
    %85 = vector.shape_cast %84 : vector<128xf32> to vector<128x1xf32>
    %86 = tpu.reciprocal %85 {approx = true} : vector<128x1xf32> -> vector<128x1xf32>
    %87 = vector.broadcast %86 : vector<128x1xf32> to vector<128x128xf32>
    %88 = arith.mulf %83, %87 : vector<128x128xf32>
    %c1_60 = arith.constant 1 : index
    %c0_61 = arith.constant 0 : index
    %c0_62 = arith.constant 0 : index
    %89 = vector.load %arg6[%c1_60, %c0_61, %c0_62] : memref<4x16x16xbf16, #tpu.memory_space<vmem>>, vector<1x16x16xbf16>
    %90 = vector.shape_cast %89 : vector<1x16x16xbf16> to vector<16x16xbf16>
    %cst_63 = arith.constant dense<0.000000e+00> : vector<128x16xf32>
    %91 = tpu.matmul %44, %90, %cst_63 {dimension_numbers = #tpu.dot_dimension_numbers<[1], [0], [0], [1], [0, 0, 1, 1], [], []>} : vector<128x16xbf16>, vector<16x16xbf16>, vector<128x16xf32> -> vector<128x16xf32>
    %92 = arith.truncf %88 : vector<128x128xf32> to vector<128x128xbf16>
    %93 = arith.truncf %91 : vector<128x16xf32> to vector<128x16xbf16>
    %cst_64 = arith.constant dense<0.000000e+00> : vector<128x16xf32>
    %94 = tpu.matmul %92, %93, %cst_64 {dimension_numbers = #tpu.dot_dimension_numbers<[1], [0], [0], [1], [0, 0, 1, 1], [], []>} : vector<128x128xbf16>, vector<128x16xbf16>, vector<128x16xf32> -> vector<128x16xf32>
    %95 = arith.addf %70, %94 : vector<128x16xf32>
    %c2 = arith.constant 2 : index
    %c0_65 = arith.constant 0 : index
    %c0_66 = arith.constant 0 : index
    %96 = vector.load %arg2[%c2, %c0_65, %c0_66] : memref<4x32x32xbf16, #tpu.memory_space<vmem>>, vector<1x32x32xbf16>
    %97 = vector.shape_cast %96 : vector<1x32x32xbf16> to vector<32x32xbf16>
    %cst_67 = arith.constant dense<0.000000e+00> : vector<128x32xf32>
    %98 = tpu.matmul %0, %97, %cst_67 {dimension_numbers = #tpu.dot_dimension_numbers<[1], [0], [0], [1], [0, 0, 1, 1], [], []>} : vector<128x32xbf16>, vector<32x32xbf16>, vector<128x32xf32> -> vector<128x32xf32>
    %99 = arith.truncf %98 : vector<128x32xf32> to vector<128x32xbf16>
    "tpu.trace_start"() <{level = 10 : i32, message = "qd,kd->qk"}> : () -> ()
    %cst_68 = arith.constant dense<0.000000e+00> : vector<128x128xf32>
    %100 = tpu.matmul %99, %0, %cst_68 {dimension_numbers = #tpu.dot_dimension_numbers<[1], [1], [0], [0], [0, 0, 1, 0], [], []>} : vector<128x32xbf16>, vector<128x32xbf16>, vector<128x128xf32> -> vector<128x128xf32>
    "tpu.trace_stop"() : () -> ()
    %c2_69 = arith.constant 2 : index
    %c0_70 = arith.constant 0 : index
    %c0_71 = arith.constant 0 : index
    %101 = vector.load %arg5[%c2_69, %c0_70, %c0_71] : memref<4x128x128xf32, #tpu.memory_space<vmem>>, vector<1x128x128xf32>
    %102 = vector.shape_cast %101 : vector<1x128x128xf32> to vector<128x128xf32>
    %103 = arith.addf %100, %102 : vector<128x128xf32>
    %cst_72 = arith.constant dense<0xFF800000> : vector<128xf32>
    %104 = vector.multi_reduction <maximumf>, %103, %cst_72 [1] : vector<128x128xf32> to vector<128xf32>
    %105 = vector.shape_cast %104 : vector<128xf32> to vector<128x1xf32>
    %106 = vector.broadcast %105 : vector<128x1xf32> to vector<128x128xf32>
    %107 = arith.subf %103, %106 : vector<128x128xf32>
    %108 = math.exp %107 : vector<128x128xf32>
    %cst_73 = arith.constant dense<0.000000e+00> : vector<128xf32>
    %109 = vector.multi_reduction <add>, %108, %cst_73 [1] : vector<128x128xf32> to vector<128xf32>
    %110 = vector.shape_cast %109 : vector<128xf32> to vector<128x1xf32>
    %111 = tpu.reciprocal %110 {approx = true} : vector<128x1xf32> -> vector<128x1xf32>
    %112 = vector.broadcast %111 : vector<128x1xf32> to vector<128x128xf32>
    %113 = arith.mulf %108, %112 : vector<128x128xf32>
    %c2_74 = arith.constant 2 : index
    %c0_75 = arith.constant 0 : index
    %c0_76 = arith.constant 0 : index
    %114 = vector.load %arg6[%c2_74, %c0_75, %c0_76] : memref<4x16x16xbf16, #tpu.memory_space<vmem>>, vector<1x16x16xbf16>
    %115 = vector.shape_cast %114 : vector<1x16x16xbf16> to vector<16x16xbf16>
    %cst_77 = arith.constant dense<0.000000e+00> : vector<128x16xf32>
    %116 = tpu.matmul %44, %115, %cst_77 {dimension_numbers = #tpu.dot_dimension_numbers<[1], [0], [0], [1], [0, 0, 1, 1], [], []>} : vector<128x16xbf16>, vector<16x16xbf16>, vector<128x16xf32> -> vector<128x16xf32>
    %117 = arith.truncf %113 : vector<128x128xf32> to vector<128x128xbf16>
    %118 = arith.truncf %116 : vector<128x16xf32> to vector<128x16xbf16>
    %cst_78 = arith.constant dense<0.000000e+00> : vector<128x16xf32>
    %119 = tpu.matmul %117, %118, %cst_78 {dimension_numbers = #tpu.dot_dimension_numbers<[1], [0], [0], [1], [0, 0, 1, 1], [], []>} : vector<128x128xbf16>, vector<128x16xbf16>, vector<128x16xf32> -> vector<128x16xf32>
    %120 = arith.addf %95, %119 : vector<128x16xf32>
    %c3 = arith.constant 3 : index
    %c0_79 = arith.constant 0 : index
    %c0_80 = arith.constant 0 : index
    %121 = vector.load %arg2[%c3, %c0_79, %c0_80] : memref<4x32x32xbf16, #tpu.memory_space<vmem>>, vector<1x32x32xbf16>
    %122 = vector.shape_cast %121 : vector<1x32x32xbf16> to vector<32x32xbf16>
    %cst_81 = arith.constant dense<0.000000e+00> : vector<128x32xf32>
    %123 = tpu.matmul %0, %122, %cst_81 {dimension_numbers = #tpu.dot_dimension_numbers<[1], [0], [0], [1], [0, 0, 1, 1], [], []>} : vector<128x32xbf16>, vector<32x32xbf16>, vector<128x32xf32> -> vector<128x32xf32>
    %124 = arith.truncf %123 : vector<128x32xf32> to vector<128x32xbf16>
    "tpu.trace_start"() <{level = 10 : i32, message = "qd,kd->qk"}> : () -> ()
    %cst_82 = arith.constant dense<0.000000e+00> : vector<128x128xf32>
    %125 = tpu.matmul %124, %0, %cst_82 {dimension_numbers = #tpu.dot_dimension_numbers<[1], [1], [0], [0], [0, 0, 1, 0], [], []>} : vector<128x32xbf16>, vector<128x32xbf16>, vector<128x128xf32> -> vector<128x128xf32>
    "tpu.trace_stop"() : () -> ()
    %c3_83 = arith.constant 3 : index
    %c0_84 = arith.constant 0 : index
    %c0_85 = arith.constant 0 : index
    %126 = vector.load %arg5[%c3_83, %c0_84, %c0_85] : memref<4x128x128xf32, #tpu.memory_space<vmem>>, vector<1x128x128xf32>
    %127 = vector.shape_cast %126 : vector<1x128x128xf32> to vector<128x128xf32>
    %128 = arith.addf %125, %127 : vector<128x128xf32>
    %cst_86 = arith.constant dense<0xFF800000> : vector<128xf32>
    %129 = vector.multi_reduction <maximumf>, %128, %cst_86 [1] : vector<128x128xf32> to vector<128xf32>
    %130 = vector.shape_cast %129 : vector<128xf32> to vector<128x1xf32>
    %131 = vector.broadcast %130 : vector<128x1xf32> to vector<128x128xf32>
    %132 = arith.subf %128, %131 : vector<128x128xf32>
    %133 = math.exp %132 : vector<128x128xf32>
    %cst_87 = arith.constant dense<0.000000e+00> : vector<128xf32>
    %134 = vector.multi_reduction <add>, %133, %cst_87 [1] : vector<128x128xf32> to vector<128xf32>
    %135 = vector.shape_cast %134 : vector<128xf32> to vector<128x1xf32>
    %136 = tpu.reciprocal %135 {approx = true} : vector<128x1xf32> -> vector<128x1xf32>
    %137 = vector.broadcast %136 : vector<128x1xf32> to vector<128x128xf32>
    %138 = arith.mulf %133, %137 : vector<128x128xf32>
    %c3_88 = arith.constant 3 : index
    %c0_89 = arith.constant 0 : index
    %c0_90 = arith.constant 0 : index
    %139 = vector.load %arg6[%c3_88, %c0_89, %c0_90] : memref<4x16x16xbf16, #tpu.memory_space<vmem>>, vector<1x16x16xbf16>
    %140 = vector.shape_cast %139 : vector<1x16x16xbf16> to vector<16x16xbf16>
    %cst_91 = arith.constant dense<0.000000e+00> : vector<128x16xf32>
    %141 = tpu.matmul %44, %140, %cst_91 {dimension_numbers = #tpu.dot_dimension_numbers<[1], [0], [0], [1], [0, 0, 1, 1], [], []>} : vector<128x16xbf16>, vector<16x16xbf16>, vector<128x16xf32> -> vector<128x16xf32>
    %142 = arith.truncf %138 : vector<128x128xf32> to vector<128x128xbf16>
    %143 = arith.truncf %141 : vector<128x16xf32> to vector<128x16xbf16>
    %cst_92 = arith.constant dense<0.000000e+00> : vector<128x16xf32>
    %144 = tpu.matmul %142, %143, %cst_92 {dimension_numbers = #tpu.dot_dimension_numbers<[1], [0], [0], [1], [0, 0, 1, 1], [], []>} : vector<128x128xbf16>, vector<128x16xbf16>, vector<128x16xf32> -> vector<128x16xf32>
    %145 = arith.addf %120, %144 : vector<128x16xf32>
    %c0_93 = arith.constant 0 : index
    %c0_94 = arith.constant 0 : index
    %146 = vector.load %arg11[%c0_93, %c0_94] : memref<16x128xf32, #tpu.memory_space<vmem>>, vector<16x128xf32>
    %cst_95 = arith.constant dense<0.000000e+00> : vector<128x128xf32>
    %147 = tpu.matmul %145, %146, %cst_95 {dimension_numbers = #tpu.dot_dimension_numbers<[1], [0], [0], [1], [0, 0, 1, 1], [], []>} : vector<128x16xf32>, vector<16x128xf32>, vector<128x128xf32> -> vector<128x128xf32>
    %c0_96 = arith.constant 0 : index
    %c0_97 = arith.constant 0 : index
    %148 = vector.load %arg12[%c0_96, %c0_97] : memref<128x128xf32, #tpu.memory_space<vmem>>, vector<128x128xf32>
    %149 = arith.mulf %147, %148 : vector<128x128xf32>
    %cst_98 = arith.constant dense<0.000000e+00> : vector<16x128xf32>
    %150 = tpu.matmul %1, %149, %cst_98 {dimension_numbers = #tpu.dot_dimension_numbers<[1], [0], [0], [1], [0, 0, 1, 1], [], []>} : vector<16x128xf32>, vector<128x128xf32>, vector<16x128xf32> -> vector<16x128xf32>
    %c0_99 = arith.constant 0 : index
    %c0_100 = arith.constant 0 : index
    %151 = vector.load %arg13[%c0_99, %c0_100] : memref<1x128xf32, #tpu.memory_space<vmem>>, vector<1x128xf32>
    %152 = vector.broadcast %151 : vector<1x128xf32> to vector<16x128xf32>
    %153 = arith.addf %150, %152 : vector<16x128xf32>
    %c0_101 = arith.constant 0 : index
    %c0_102 = arith.constant 0 : index
    %154 = vector.load %arg14[%c0_101, %c0_102] : memref<16x128xf32, #tpu.memory_space<vmem>>, vector<16x128xf32>
    tpu.vector_store %arg14[%c0_101, %c0_102], %153 {strides = array<i32>} : memref<16x128xf32, #tpu.memory_space<vmem>>, vector<16x128xf32>,
    return
  }
  func.func @transform_0(%arg0: i32) -> (i32, i32) {
    %c0_i32 = arith.constant 0 : i32
    %c0_i32_0 = arith.constant 0 : i32
    return %arg0, %c0_i32 : i32, i32
  }
  func.func @transform_1(%arg0: i32) -> (i32, i32, i32) {
    %c0_i32 = arith.constant 0 : i32
    %c0_i32_0 = arith.constant 0 : i32
    %c0_i32_1 = arith.constant 0 : i32
    %c0_i32_2 = arith.constant 0 : i32
    return %c0_i32, %c0_i32_0, %c0_i32_1 : i32, i32, i32
  }
  func.func @transform_2(%arg0: i32) -> (i32, i32) {
    %c0_i32 = arith.constant 0 : i32
    %c0_i32_0 = arith.constant 0 : i32
    %c0_i32_1 = arith.constant 0 : i32
    return %c0_i32, %c0_i32_0 : i32, i32
  }
  func.func @transform_3(%arg0: i32) -> (i32, i32) {
    %c0_i32 = arith.constant 0 : i32
    %c0_i32_0 = arith.constant 0 : i32
    %c0_i32_1 = arith.constant 0 : i32
    return %c0_i32, %c0_i32_0 : i32, i32
  }
  func.func @transform_4(%arg0: i32) -> (i32, i32, i32) {
    %c0_i32 = arith.constant 0 : i32
    %c0_i32_0 = arith.constant 0 : i32
    %c0_i32_1 = arith.constant 0 : i32
    %c0_i32_2 = arith.constant 0 : i32
    return %c0_i32, %c0_i32_0, %c0_i32_1 : i32, i32, i32
  }
  func.func @transform_5(%arg0: i32) -> (i32, i32, i32) {
    %c0_i32 = arith.constant 0 : i32
    %c0_i32_0 = arith.constant 0 : i32
    %c0_i32_1 = arith.constant 0 : i32
    %c0_i32_2 = arith.constant 0 : i32
    return %c0_i32, %c0_i32_0, %c0_i32_1 : i32, i32, i32
  }
  func.func @transform_6(%arg0: i32) -> (i32, i32) {
    %c0_i32 = arith.constant 0 : i32
    %c0_i32_0 = arith.constant 0 : i32
    %c0_i32_1 = arith.constant 0 : i32
    return %c0_i32, %c0_i32_0 : i32, i32
  }
  func.func @transform_7(%arg0: i32) -> (i32, i32) {
    %c0_i32 = arith.constant 0 : i32
    %c0_i32_0 = arith.constant 0 : i32
    %c0_i32_1 = arith.constant 0 : i32
    return %c0_i32, %c0_i32_0 : i32, i32
  }
  func.func @transform_8(%arg0: i32) -> (i32, i32) {
    %c0_i32 = arith.constant 0 : i32
    %c0_i32_0 = arith.constant 0 : i32
    %c0_i32_1 = arith.constant 0 : i32
    return %c0_i32, %c0_i32_0 : i32, i32
  }
  func.func @transform_9(%arg0: i32) -> (i32, i32) {
    %c0_i32 = arith.constant 0 : i32
    %c0_i32_0 = arith.constant 0 : i32
    %c0_i32_1 = arith.constant 0 : i32
    return %c0_i32, %c0_i32_0 : i32, i32
  }
  func.func @transform_10(%arg0: i32) -> (i32, i32) {
    %c0_i32 = arith.constant 0 : i32
    %c0_i32_0 = arith.constant 0 : i32
    %c0_i32_1 = arith.constant 0 : i32
    return %c0_i32, %c0_i32_0 : i32, i32
  }
  func.func @transform_11(%arg0: i32) -> (i32, i32) {
    %c0_i32 = arith.constant 0 : i32
    %c0_i32_0 = arith.constant 0 : i32
    %c0_i32_1 = arith.constant 0 : i32
    return %c0_i32, %c0_i32_0 : i32, i32
  }
  func.func @transform_12(%arg0: i32) -> (i32, i32) {
    %c0_i32 = arith.constant 0 : i32
    %c0_i32_0 = arith.constant 0 : i32
    %c0_i32_1 = arith.constant 0 : i32
    return %c0_i32, %c0_i32_0 : i32, i32
  }
  func.func @transform_13(%arg0: i32) -> (i32, i32) {
    %c0_i32 = arith.constant 0 : i32
    %c0_i32_0 = arith.constant 0 : i32
    return %arg0, %c0_i32 : i32, i32
  }
}

</mosaic_0001>

<llo_original>
// kernel: tpu_custom_call.1
$region0: #{tpu_custom_call.1}
  #allocation0 [shape = 'u32[]', space=smem, size = 0x4, offset = 0x4, fixed_abs, tag = 'smem constant byte address 0x4 - core index']
  #allocation1 [shape = 'u32[72,128]{1,0:T(1,128)}', space=vmem, size = 0x9000, scoped, tag = 'internal scratch']
  %s0 = inlined_call_operand.vmem [shape: bf16[256,32], index: 0, kind: input, shape index: {}]
  %s1 = inlined_call_operand.vmem [shape: bf16[4,32,32], index: 1, kind: input, shape index: {}]
  %s2 = inlined_call_operand.vmem [shape: bf16[32,16], index: 2, kind: input, shape index: {}]
  %s3 = inlined_call_operand.vmem [shape: f32[1,16], index: 3, kind: input, shape index: {}]
  %s4 = inlined_call_operand.hbm [shape: f32[4,128,128], index: 4, kind: input, shape index: {}]
  %s5 = inlined_call_operand.vmem [shape: bf16[4,16,16], index: 5, kind: input, shape index: {}]
  %s6 = inlined_call_operand.vmem [shape: f32[16,4], index: 6, kind: input, shape index: {}]
  %s7 = inlined_call_operand.vmem [shape: f32[4,16], index: 7, kind: input, shape index: {}]
  %s8 = inlined_call_operand.vmem [shape: f32[16,128], index: 8, kind: input, shape index: {}]
  %s9 = inlined_call_operand.vmem [shape: f32[128,16], index: 9, kind: input, shape index: {}]
  %s10 = inlined_call_operand.vmem [shape: f32[16,128], index: 10, kind: input, shape index: {}]
  %s11 = inlined_call_operand.vmem [shape: f32[128,128], index: 11, kind: input, shape index: {}]
  %s12 = inlined_call_operand.vmem [shape: f32[1,128], index: 12, kind: input, shape index: {}]
  %s13 = inlined_call_operand.hbm [shape: f32[32,128], index: 13, kind: output, shape index: {}]
  %s14 = sld [smem:[#allocation0]]
  $region89: #{tpu_custom_call.1} parent=0
    _
  %s16 = ssub.s32 1, %s14
  %s17 = scalar_select 0, %s16, %s14
  $region1: #{tpu_custom_call.1} parent=0
    #allocation2 [shape = 'u8[262144]{0}', space=vmem, size = 0x40000, scoped, tag = 'input window, operand 4, single buffered']
    #allocation3 [shape = 's32[2]{0}', space=sflag, size = 0x8, scoped, tag = 'scoped memory for tpu_custom_call.1']
    #allocation4 [shape = 's32[2]{0}', space=sflag, size = 0x8, scoped, tag = 'scoped memory for tpu_custom_call.1']
    #allocation5 [shape = 'u8[16384]{0}', space=vmem, size = 0x4000, scoped, tag = 'output window, operand 0']
    %18 = vsyncpa [#allocation3], 0
    %19 = vsyncpa [#allocation4], 0
    %s20 = scalar_lea.sflag [#allocation4], 1
    %21 = vsyncpa %s20, 0
    loop: start=0, step=1, limit=4
    $region2: #{tpu_custom_call.1} parent=1 // loop_pre_header
      _
    $region3: #{tpu_custom_call.1} parent=1 // loop_header
      %s23 = sphi 0, %s27
      %p24 = scmp.ge.s32.totalorder %s23, 4
      %s33 = sphi 0, %s35
      %s36 = sphi 0, %s33
      %s37 = sphi 0, %s36
      %s53 = sphi 0, %s37
      %s57 = sphi 0, %s57
      %s59 = sphi 0, %s57
      %s60 = sphi 0, %s59
      %s74 = sphi 0, %s60
      %s78 = sphi 0, %s78
      %s80 = sphi 0, %s78
      %s81 = sphi 0, %s80
      %s95 = sphi 0, %s81
      %s99 = sphi 0, %s99
      %s101 = sphi 0, %s99
      %s102 = sphi 0, %s101
      %s116 = sphi 0, %s102
      %s120 = sphi 0, %s120
      %s122 = sphi 0, %s120
      %s123 = sphi 0, %s122
      %s137 = sphi 0, %s123
      %s141 = sphi 0, %s141
      %s143 = sphi 0, %s141
      %s144 = sphi 0, %s143
      %s158 = sphi 0, %s144
      %s162 = sphi 0, %s162
      %s164 = sphi 0, %s162
      %s165 = sphi 0, %s164
      %s179 = sphi 0, %s165
      %s183 = sphi 0, %s183
      %s185 = sphi 0, %s183
      %s186 = sphi 0, %s185
      %s200 = sphi 0, %s186
      %s204 = sphi 0, %s204
      %s206 = sphi 0, %s204
      %s207 = sphi 0, %s206
      %s221 = sphi 0, %s207
      %s225 = sphi 0, %s225
      %s227 = sphi 0, %s225
      %s228 = sphi 0, %s227
      %s242 = sphi 0, %s228
      %s246 = sphi 0, %s246
      %s248 = sphi 0, %s246
      %s249 = sphi 0, %s248
      %s263 = sphi 0, %s249
      %s267 = sphi 0, %s267
      %s269 = sphi 0, %s267
      %s270 = sphi 0, %s269
      %s284 = sphi 0, %s270
      %s288 = sphi 0, %s288
      %s290 = sphi 0, %s288
      %s291 = sphi 0, %s290
      %s305 = sphi 0, %s291
      %s311 = sphi 0, %s313
      %s314 = sphi 0, %s311
      %s315 = sphi 0, %s314
      %s331 = sphi 0, %s315
    $region4: #{tpu_custom_call.1} parent=1 // loop_header_branch
      %26 = sbr.rel (%p24) target = $region8
    $region5: #{tpu_custom_call.1} parent=1 // loop_body
      %s28 = ssub.s32 %s23, 1
      %s29 = ssub.s32 %s23, 2
      %s30 = sadd.s32 %s23, 1
      %s31 = ssub.s32 %s23, %s30
      %p32 = scmp.eq.s32.totalorder %s31, 0
      %s34 = sadd.s32 %s33, 1
      %s35 = scalar_select %p32, %s33, %s34
      %p38 = pneg %p32
      %p39 = scmp.eq.s32.totalorder %s23, 1
      %p40 = por %p38, %p39
      %p41 = scmp.ne.s32.totalorder %s33, %s36
      %p42 = scmp.eq.s32.totalorder %s23, 0
      %p43 = por %p41, %p42
      %p44 = scmp.ne.s32.totalorder %s33, %s36
      %p45 = scmp.eq.s32.totalorder %s28, 1
      %p46 = por %p44, %p45
      %p47 = scmp.ne.s32.totalorder %s36, %s37
      %p48 = scmp.eq.s32.totalorder %s28, 0
      %p49 = por %p47, %p48
      %p50 = scmp.ne.s32.totalorder %s36, %s37
      %p51 = scmp.eq.s32.totalorder %s29, 1
      %p52 = por %p50, %p51
      %p54 = scmp.ne.s32.totalorder %s37, %s53
      %p55 = scmp.eq.s32.totalorder %s29, 0
      %p56 = por %p54, %p55
      %s58 = sadd.s32 %s57, 1
      %p61 = scmp.eq.s32.totalorder %s23, 1
      %p62 = scmp.ne.s32.totalorder %s57, %s59
      %p63 = scmp.eq.s32.totalorder %s23, 0
      %p64 = por %p62, %p63
      %p65 = scmp.ne.s32.totalorder %s57, %s59
      %p66 = scmp.eq.s32.totalorder %s28, 1
      %p67 = por %p65, %p66
      %p68 = scmp.ne.s32.totalorder %s59, %s60
      %p69 = scmp.eq.s32.totalorder %s28, 0
      %p70 = por %p68, %p69
      %p71 = scmp.ne.s32.totalorder %s59, %s60
      %p72 = scmp.eq.s32.totalorder %s29, 1
      %p73 = por %p71, %p72
      %p75 = scmp.ne.s32.totalorder %s60, %s74
      %p76 = scmp.eq.s32.totalorder %s29, 0
      %p77 = por %p75, %p76
      %s79 = sadd.s32 %s78, 1
      %p82 = scmp.eq.s32.totalorder %s23, 1
      %p83 = scmp.ne.s32.totalorder %s78, %s80
      %p84 = scmp.eq.s32.totalorder %s23, 0
      %p85 = por %p83, %p84
      %p86 = scmp.ne.s32.totalorder %s78, %s80
      %p87 = scmp.eq.s32.totalorder %s28, 1
      %p88 = por %p86, %p87
      %p89 = scmp.ne.s32.totalorder %s80, %s81
      %p90 = scmp.eq.s32.totalorder %s28, 0
      %p91 = por %p89, %p90
      %p92 = scmp.ne.s32.totalorder %s80, %s81
      %p93 = scmp.eq.s32.totalorder %s29, 1
      %p94 = por %p92, %p93
      %p96 = scmp.ne.s32.totalorder %s81, %s95
      %p97 = scmp.eq.s32.totalorder %s29, 0
      %p98 = por %p96, %p97
      %s100 = sadd.s32 %s99, 1
      %p103 = scmp.eq.s32.totalorder %s23, 1
      %p104 = scmp.ne.s32.totalorder %s99, %s101
      %p105 = scmp.eq.s32.totalorder %s23, 0
      %p106 = por %p104, %p105
      %p107 = scmp.ne.s32.totalorder %s99, %s101
      %p108 = scmp.eq.s32.totalorder %s28, 1
      %p109 = por %p107, %p108
      %p110 = scmp.ne.s32.totalorder %s101, %s102
      %p111 = scmp.eq.s32.totalorder %s28, 0
      %p112 = por %p110, %p111
      %p113 = scmp.ne.s32.totalorder %s101, %s102
      %p114 = scmp.eq.s32.totalorder %s29, 1
      %p115 = por %p113, %p114
      %p117 = scmp.ne.s32.totalorder %s102, %s116
      %p118 = scmp.eq.s32.totalorder %s29, 0
      %p119 = por %p117, %p118
      %s121 = sadd.s32 %s120, 1
      %p124 = scmp.eq.s32.totalorder %s23, 1
      %p125 = scmp.ne.s32.totalorder %s120, %s122
      %p126 = scmp.eq.s32.totalorder %s23, 0
      %p127 = por %p125, %p126
      %p128 = scmp.ne.s32.totalorder %s120, %s122
      %p129 = scmp.eq.s32.totalorder %s28, 1
      %p130 = por %p128, %p129
      %p131 = scmp.ne.s32.totalorder %s122, %s123
      %p132 = scmp.eq.s32.totalorder %s28, 0
      %p133 = por %p131, %p132
      %p134 = scmp.ne.s32.totalorder %s122, %s123
      %p135 = scmp.eq.s32.totalorder %s29, 1
      %p136 = por %p134, %p135
      %p138 = scmp.ne.s32.totalorder %s123, %s137
      %p139 = scmp.eq.s32.totalorder %s29, 0
      %p140 = por %p138, %p139
      %s142 = sadd.s32 %s141, 1
      %p145 = scmp.eq.s32.totalorder %s23, 1
      %p146 = scmp.ne.s32.totalorder %s141, %s143
      %p147 = scmp.eq.s32.totalorder %s23, 0
      %p148 = por %p146, %p147
      %p149 = scmp.ne.s32.totalorder %s141, %s143
      %p150 = scmp.eq.s32.totalorder %s28, 1
      %p151 = por %p149, %p150
      %p152 = scmp.ne.s32.totalorder %s143, %s144
      %p153 = scmp.eq.s32.totalorder %s28, 0
      %p154 = por %p152, %p153
      %p155 = scmp.ne.s32.totalorder %s143, %s144
      %p156 = scmp.eq.s32.totalorder %s29, 1
      %p157 = por %p155, %p156
      %p159 = scmp.ne.s32.totalorder %s144, %s158
      %p160 = scmp.eq.s32.totalorder %s29, 0
      %p161 = por %p159, %p160
      %s163 = sadd.s32 %s162, 1
      %p166 = scmp.eq.s32.totalorder %s23, 1
      %p167 = scmp.ne.s32.totalorder %s162, %s164
      %p168 = scmp.eq.s32.totalorder %s23, 0
      %p169 = por %p167, %p168
      %p170 = scmp.ne.s32.totalorder %s162, %s164
      %p171 = scmp.eq.s32.totalorder %s28, 1
      %p172 = por %p170, %p171
      %p173 = scmp.ne.s32.totalorder %s164, %s165
      %p174 = scmp.eq.s32.totalorder %s28, 0
      %p175 = por %p173, %p174
      %p176 = scmp.ne.s32.totalorder %s164, %s165
      %p177 = scmp.eq.s32.totalorder %s29, 1
      %p178 = por %p176, %p177
      %p180 = scmp.ne.s32.totalorder %s165, %s179
      %p181 = scmp.eq.s32.totalorder %s29, 0
      %p182 = por %p180, %p181
      %s184 = sadd.s32 %s183, 1
      %p187 = scmp.eq.s32.totalorder %s23, 1
      %p188 = scmp.ne.s32.totalorder %s183, %s185
      %p189 = scmp.eq.s32.totalorder %s23, 0
      %p190 = por %p188, %p189
      %p191 = scmp.ne.s32.totalorder %s183, %s185
      %p192 = scmp.eq.s32.totalorder %s28, 1
      %p193 = por %p191, %p192
      %p194 = scmp.ne.s32.totalorder %s185, %s186
      %p195 = scmp.eq.s32.totalorder %s28, 0
      %p196 = por %p194, %p195
      %p197 = scmp.ne.s32.totalorder %s185, %s186
      %p198 = scmp.eq.s32.totalorder %s29, 1
      %p199 = por %p197, %p198
      %p201 = scmp.ne.s32.totalorder %s186, %s200
      %p202 = scmp.eq.s32.totalorder %s29, 0
      %p203 = por %p201, %p202
      %s205 = sadd.s32 %s204, 1
      %p208 = scmp.eq.s32.totalorder %s23, 1
      %p209 = scmp.ne.s32.totalorder %s204, %s206
      %p210 = scmp.eq.s32.totalorder %s23, 0
      %p211 = por %p209, %p210
      %p212 = scmp.ne.s32.totalorder %s204, %s206
      %p213 = scmp.eq.s32.totalorder %s28, 1
      %p214 = por %p212, %p213
      %p215 = scmp.ne.s32.totalorder %s206, %s207
      %p216 = scmp.eq.s32.totalorder %s28, 0
      %p217 = por %p215, %p216
      %p218 = scmp.ne.s32.totalorder %s206, %s207
      %p219 = scmp.eq.s32.totalorder %s29, 1
      %p220 = por %p218, %p219
      %p222 = scmp.ne.s32.totalorder %s207, %s221
      %p223 = scmp.eq.s32.totalorder %s29, 0
      %p224 = por %p222, %p223
      %s226 = sadd.s32 %s225, 1
      %p229 = scmp.eq.s32.totalorder %s23, 1
      %p230 = scmp.ne.s32.totalorder %s225, %s227
      %p231 = scmp.eq.s32.totalorder %s23, 0
      %p232 = por %p230, %p231
      %p233 = scmp.ne.s32.totalorder %s225, %s227
      %p234 = scmp.eq.s32.totalorder %s28, 1
      %p235 = por %p233, %p234
      %p236 = scmp.ne.s32.totalorder %s227, %s228
      %p237 = scmp.eq.s32.totalorder %s28, 0
      %p238 = por %p236, %p237
      %p239 = scmp.ne.s32.totalorder %s227, %s228
      %p240 = scmp.eq.s32.totalorder %s29, 1
      %p241 = por %p239, %p240
      %p243 = scmp.ne.s32.totalorder %s228, %s242
      %p244 = scmp.eq.s32.totalorder %s29, 0
      %p245 = por %p243, %p244
      %s247 = sadd.s32 %s246, 1
      %p250 = scmp.eq.s32.totalorder %s23, 1
      %p251 = scmp.ne.s32.totalorder %s246, %s248
      %p252 = scmp.eq.s32.totalorder %s23, 0
      %p253 = por %p251, %p252
      %p254 = scmp.ne.s32.totalorder %s246, %s248
      %p255 = scmp.eq.s32.totalorder %s28, 1
      %p256 = por %p254, %p255
      %p257 = scmp.ne.s32.totalorder %s248, %s249
      %p258 = scmp.eq.s32.totalorder %s28, 0
      %p259 = por %p257, %p258
      %p260 = scmp.ne.s32.totalorder %s248, %s249
      %p261 = scmp.eq.s32.totalorder %s29, 1
      %p262 = por %p260, %p261
      %p264 = scmp.ne.s32.totalorder %s249, %s263
      %p265 = scmp.eq.s32.totalorder %s29, 0
      %p266 = por %p264, %p265
      %s268 = sadd.s32 %s267, 1
      %p271 = scmp.eq.s32.totalorder %s23, 1
      %p272 = scmp.ne.s32.totalorder %s267, %s269
      %p273 = scmp.eq.s32.totalorder %s23, 0
      %p274 = por %p272, %p273
      %p275 = scmp.ne.s32.totalorder %s267, %s269
      %p276 = scmp.eq.s32.totalorder %s28, 1
      %p277 = por %p275, %p276
      %p278 = scmp.ne.s32.totalorder %s269, %s270
      %p279 = scmp.eq.s32.totalorder %s28, 0
      %p280 = por %p278, %p279
      %p281 = scmp.ne.s32.totalorder %s269, %s270
      %p282 = scmp.eq.s32.totalorder %s29, 1
      %p283 = por %p281, %p282
      %p285 = scmp.ne.s32.totalorder %s270, %s284
      %p286 = scmp.eq.s32.totalorder %s29, 0
      %p287 = por %p285, %p286
      %s289 = sadd.s32 %s288, 1
      %p292 = scmp.eq.s32.totalorder %s23, 1
      %p293 = scmp.ne.s32.totalorder %s288, %s290
      %p294 = scmp.eq.s32.totalorder %s23, 0
      %p295 = por %p293, %p294
      %p296 = scmp.ne.s32.totalorder %s288, %s290
      %p297 = scmp.eq.s32.totalorder %s28, 1
      %p298 = por %p296, %p297
      %p299 = scmp.ne.s32.totalorder %s290, %s291
      %p300 = scmp.eq.s32.totalorder %s28, 0
      %p301 = por %p299, %p300
      %p302 = scmp.ne.s32.totalorder %s290, %s291
      %p303 = scmp.eq.s32.totalorder %s29, 1
      %p304 = por %p302, %p303
      %p306 = scmp.ne.s32.totalorder %s291, %s305
      %p307 = scmp.eq.s32.totalorder %s29, 0
      %p308 = por %p306, %p307
      %s309 = ssub.s32 %s23, %s30
      %p310 = scmp.eq.s32.totalorder %s309, 0
      %s312 = sadd.s32 %s311, 1
      %s313 = scalar_select %p310, %s311, %s312
      %p316 = pneg %p310
      %p317 = scmp.eq.s32.totalorder %s23, 1
      %p318 = por %p316, %p317
      %p319 = scmp.ne.s32.totalorder %s311, %s314
      %p320 = scmp.eq.s32.totalorder %s23, 0
      %p321 = por %p319, %p320
      %p322 = scmp.ne.s32.totalorder %s311, %s314
      %p323 = scmp.eq.s32.totalorder %s28, 1
      %p324 = por %p322, %p323
      %p325 = scmp.ne.s32.totalorder %s314, %s315
      %p326 = scmp.eq.s32.totalorder %s28, 0
      %p327 = por %p325, %p326
      %p328 = scmp.ne.s32.totalorder %s314, %s315
      %p329 = scmp.eq.s32.totalorder %s29, 1
      %p330 = por %p328, %p329
      %p332 = scmp.ne.s32.totalorder %s315, %s331
      %p333 = scmp.eq.s32.totalorder %s29, 0
      %p334 = por %p332, %p333
      %p335 = scmp.le.s32.totalorder 1, %s23
      %p336 = scmp.lt.s32.totalorder %s23, 3
      %p337 = pnand %p335, %p336
      %p338 = pneg %p337
      // Predicated region
      $region9: #{tpu_custom_call.1} parent=5 // pred_check
        _
      $region10: #{tpu_custom_call.1} parent=5 // pred_check_branch
        %340 = sbr.rel (%p337) target = $region12
      $region11: #{tpu_custom_call.1} parent=5 // pred_region
        %s341 = ssub.s32 %s23, 1
        // Predicated region
        $region13: #{tpu_custom_call.1} parent=11 // pred_check
          %p342 = pneg %p70
        $region14: #{tpu_custom_call.1} parent=11 // pred_check_branch
          %344 = sbr.rel (%p342) target = $region16
        $region15: #{tpu_custom_call.1} parent=11 // pred_region
          _
        $region16: #{tpu_custom_call.1} parent=11 // pred_fallthru
          _
        // Predicated region
        $region17: #{tpu_custom_call.1} parent=11 // pred_check
          %p345 = pneg %p91
        $region18: #{tpu_custom_call.1} parent=11 // pred_check_branch
          %347 = sbr.rel (%p345) target = $region20
        $region19: #{tpu_custom_call.1} parent=11 // pred_region
          _
        $region20: #{tpu_custom_call.1} parent=11 // pred_fallthru
          _
        // Predicated region
        $region21: #{tpu_custom_call.1} parent=11 // pred_check
          %p348 = pneg %p112
        $region22: #{tpu_custom_call.1} parent=11 // pred_check_branch
          %350 = sbr.rel (%p348) target = $region24
        $region23: #{tpu_custom_call.1} parent=11 // pred_region
          _
        $region24: #{tpu_custom_call.1} parent=11 // pred_fallthru
          _
        // Predicated region
        $region25: #{tpu_custom_call.1} parent=11 // pred_check
          %p351 = pneg %p133
        $region26: #{tpu_custom_call.1} parent=11 // pred_check_branch
          %353 = sbr.rel (%p351) target = $region28
        $region27: #{tpu_custom_call.1} parent=11 // pred_region
          %355 = vsyncadd [#allocation3], 0
          %s356 = sshll.u32 %s4, 4
          %s357 = int_to_ptr.hbm [resolvable:$true] %s356
          %s358 = sshll.u32 [#allocation2], 4
          %s359 = int_to_ptr.vmem [resolvable:$true] %s358
          %364 = dma.hbm_to_vmem [thread:$0]  %s357, 8192, %s359, [#allocation3], 128, 128, 8
        $region28: #{tpu_custom_call.1} parent=11 // pred_fallthru
          _
        // Predicated region
        $region29: #{tpu_custom_call.1} parent=11 // pred_check
          %p365 = pneg %p154
        $region30: #{tpu_custom_call.1} parent=11 // pred_check_branch
          %367 = sbr.rel (%p365) target = $region32
        $region31: #{tpu_custom_call.1} parent=11 // pred_region
          _
        $region32: #{tpu_custom_call.1} parent=11 // pred_fallthru
          _
        // Predicated region
        $region33: #{tpu_custom_call.1} parent=11 // pred_check
          %p368 = pneg %p175
        $region34: #{tpu_custom_call.1} parent=11 // pred_check_branch
          %370 = sbr.rel (%p368) target = $region36
        $region35: #{tpu_custom_call.1} parent=11 // pred_region
          _
        $region36: #{tpu_custom_call.1} parent=11 // pred_fallthru
          _
        // Predicated region
        $region37: #{tpu_custom_call.1} parent=11 // pred_check
          %p371 = pneg %p196
        $region38: #{tpu_custom_call.1} parent=11 // pred_check_branch
          %373 = sbr.rel (%p371) target = $region40
        $region39: #{tpu_custom_call.1} parent=11 // pred_region
          _
        $region40: #{tpu_custom_call.1} parent=11 // pred_fallthru
          _
        // Predicated region
        $region41: #{tpu_custom_call.1} parent=11 // pred_check
          %p374 = pneg %p217
        $region42: #{tpu_custom_call.1} parent=11 // pred_check_branch
          %376 = sbr.rel (%p374) target = $region44
        $region43: #{tpu_custom_call.1} parent=11 // pred_region
          _
        $region44: #{tpu_custom_call.1} parent=11 // pred_fallthru
          _
        // Predicated region
        $region45: #{tpu_custom_call.1} parent=11 // pred_check
          %p377 = pneg %p238
        $region46: #{tpu_custom_call.1} parent=11 // pred_check_branch
          %379 = sbr.rel (%p377) target = $region48
        $region47: #{tpu_custom_call.1} parent=11 // pred_region
          _
        $region48: #{tpu_custom_call.1} parent=11 // pred_fallthru
          _
        // Predicated region
        $region49: #{tpu_custom_call.1} parent=11 // pred_check
          %p380 = pneg %p259
        $region50: #{tpu_custom_call.1} parent=11 // pred_check_branch
          %382 = sbr.rel (%p380) target = $region52
        $region51: #{tpu_custom_call.1} parent=11 // pred_region
          _
        $region52: #{tpu_custom_call.1} parent=11 // pred_fallthru
          _
        // Predicated region
        $region53: #{tpu_custom_call.1} parent=11 // pred_check
          %p383 = pneg %p280
        $region54: #{tpu_custom_call.1} parent=11 // pred_check_branch
          %385 = sbr.rel (%p383) target = $region56
        $region55: #{tpu_custom_call.1} parent=11 // pred_region
          _
        $region56: #{tpu_custom_call.1} parent=11 // pred_fallthru
          _
        // Predicated region
        $region57: #{tpu_custom_call.1} parent=11 // pred_check
          %p386 = pneg %p301
        $region58: #{tpu_custom_call.1} parent=11 // pred_check_branch
          %388 = sbr.rel (%p386) target = $region60
        $region59: #{tpu_custom_call.1} parent=11 // pred_region
          _
        $region60: #{tpu_custom_call.1} parent=11 // pred_fallthru
          _
      $region12: #{tpu_custom_call.1} parent=5 // pred_fallthru
        _
      %p389 = scmp.lt.s32.totalorder %s23, 2
      // Predicated region
      $region61: #{tpu_custom_call.1} parent=5 // pred_check
        %p390 = pneg %p389
      $region62: #{tpu_custom_call.1} parent=5 // pred_check_branch
        %392 = sbr.rel (%p390) target = $region64
      $region63: #{tpu_custom_call.1} parent=5 // pred_region
        // Predicated region
        $region65: #{tpu_custom_call.1} parent=63 // pred_check
          %p393 = pneg %p43
        $region66: #{tpu_custom_call.1} parent=63 // pred_check_branch
          %395 = sbr.rel (%p393) target = $region68
        $region67: #{tpu_custom_call.1} parent=63 // pred_region
          %s396 = smul.u32 16, %s23
          %p397 = scmp.lt.s32.totalorder %s396, 31
          %s398 = scalar_select %p397, %s396, 31
          %s399 = smul.addr %s398, 4
          %s400 = scalar_lea.vmem %s0, %s399
          %s401 = smul.u32 16, %s23
        $region68: #{tpu_custom_call.1} parent=63 // pred_fallthru
          _
      $region64: #{tpu_custom_call.1} parent=5 // pred_fallthru
        _
      %p402 = scmp.le.s32.totalorder 1, %s23
      %p403 = scmp.lt.s32.totalorder %s23, 3
      %p404 = pnand %p402, %p403
      %p405 = pneg %p404
      // Predicated region
      $region69: #{tpu_custom_call.1} parent=5 // pred_check
        _
      $region70: #{tpu_custom_call.1} parent=5 // pred_check_branch
        %407 = sbr.rel (%p404) target = $region72
      $region71: #{tpu_custom_call.1} parent=5 // pred_region
        %s408 = ssub.s32 %s23, 1
        // Predicated region
        $region73: #{tpu_custom_call.1} parent=71 // pred_check
          %p409 = pneg %p133
        $region74: #{tpu_custom_call.1} parent=71 // pred_check_branch
          %411 = sbr.rel (%p409) target = $region76
        $region75: #{tpu_custom_call.1} parent=71 // pred_region
          %413 = dma.done [#allocation3], 8192
        $region76: #{tpu_custom_call.1} parent=71 // pred_fallthru
          _
        %s414 = smul.u32 16, %s28
        %p415 = scmp.lt.s32.totalorder %s414, 31
        %s416 = scalar_select %p415, %s414, 31
        %s417 = smul.addr %s416, 4
        %s418 = scalar_lea.vmem %s0, %s417
        %p419 = pneg %p49
        %p420 = pneg %p46
        %p421 = pneg %p70
        %p422 = pneg %p67
        %p423 = pneg %p91
        %p424 = pneg %p88
        %p425 = pneg %p112
        %p426 = pneg %p109
        %p427 = pneg %p133
        %p428 = pneg %p130
        %p429 = pneg %p154
        %p430 = pneg %p151
        %p431 = pneg %p175
        %p432 = pneg %p172
        %p433 = pneg %p196
        %p434 = pneg %p193
        %p435 = pneg %p217
        %p436 = pneg %p214
        %p437 = pneg %p238
        %p438 = pneg %p235
        %p439 = pneg %p259
        %p440 = pneg %p256
        %p441 = pneg %p280
        %p442 = pneg %p277
        %p443 = pneg %p301
        %p444 = pneg %p298
        %p445 = pneg %p327
        %p446 = pneg %p324
        %s447 = sand.u32 %s314, 1
        %s448 = scalar_lea.sflag [#allocation4], %s447
        %s449 = sand.u32 %s314, 1
        %s450 = smul.addr %s449, 16
        %s451 = scalar_lea.vmem [#allocation5], %s450
        %s452 = smul.u32 16, %s28
        %p453 = scmp.lt.s32.totalorder %s452, 31
        %s454 = scalar_select %p453, %s452, 31
        %s455 = smul.addr %s454, 4
        %s456 = scalar_lea.vmem %s0, %s455
        %s457 = smul.u32 16, %s28
        %s458 = smul.u32 2, %s28
        %v460 = vld [vmem:[%s456] sm:$0xf]
        %v461 = vld [vmem:[%s456 + $0x4] sm:$0xf]
        %v462 = vld [vmem:[%s456 + $0x8] sm:$0xf]
        %v463 = vld [vmem:[%s456 + $0xc] sm:$0xf]
        %v464 = vld [vmem:[%s456 + $0x10] sm:$0xf]
        %v465 = vld [vmem:[%s456 + $0x14] sm:$0xf]
        %v466 = vld [vmem:[%s456 + $0x18] sm:$0xf]
        %v467 = vld [vmem:[%s456 + $0x1c] sm:$0xf]
        %v468 = vld [vmem:[%s456 + $0x20] sm:$0xf]
        %v469 = vld [vmem:[%s456 + $0x24] sm:$0xf]
        %v470 = vld [vmem:[%s456 + $0x28] sm:$0xf]
        %v471 = vld [vmem:[%s456 + $0x2c] sm:$0xf]
        %v472 = vld [vmem:[%s456 + $0x30] sm:$0xf]
        %v473 = vld [vmem:[%s456 + $0x34] sm:$0xf]
        %v474 = vld [vmem:[%s456 + $0x38] sm:$0xf]
        %v475 = vld [vmem:[%s456 + $0x3c] sm:$0xf]
        %v476 = vld [vmem:[%s8] sm:$0xff]
        %v477 = vld [vmem:[%s8 + $0x8] sm:$0xff]
        %v478 = vld [vmem:[%s2] sm:$0xf]
        %v479 = vld [vmem:[%s2 + $0x4] sm:$0xf]
        %v480 = vld [vmem:[%s2 + $0x8] sm:$0xf]
        %v481 = vld [vmem:[%s2 + $0xc] sm:$0xf]
        %v482 = vld [vmem:[%s3] sm:$0x1]
        %v484 = vperm.slane %v482, 0
        %v502 = vunpack.c.l.b16 %v460
        %v503 = vunpack.c.l.b16 %v461
        %v504 = vunpack.c.l.b16 %v462
        %v505 = vunpack.c.l.b16 %v463
        %v506 = vunpack.c.l.b16 %v464
        %v507 = vunpack.c.l.b16 %v465
        %v508 = vunpack.c.l.b16 %v466
        %v509 = vunpack.c.l.b16 %v467
        %v510 = vunpack.c.l.b16 %v468
        %v511 = vunpack.c.l.b16 %v469
        %v512 = vunpack.c.l.b16 %v470
        %v513 = vunpack.c.l.b16 %v471
        %v514 = vunpack.c.l.b16 %v472
        %v515 = vunpack.c.l.b16 %v473
        %v516 = vunpack.c.l.b16 %v474
        %v517 = vunpack.c.l.b16 %v475
        %v518 = vpack.c.b16 %v503, %v502
        %v519 = vpack.c.b16 %v505, %v504
        %v520 = vpack.c.b16 %v507, %v506
        %v521 = vpack.c.b16 %v509, %v508
        %v522 = vpack.c.b16 %v511, %v510
        %v523 = vpack.c.b16 %v513, %v512
        %v524 = vpack.c.b16 %v515, %v514
        %v525 = vpack.c.b16 %v517, %v516
        %v530 = vunpack.c.l.b16 %v478
        %v531 = vunpack.c.l.b16 %v479
        %v532 = vunpack.c.l.b16 %v480
        %v533 = vunpack.c.l.b16 %v481
        %v534 = vpack.c.b16 %v531, %v530
        %v535 = vpack.c.b16 %v533, %v532
        %vm538 = vcmask 261120
        %v540 = vsel %vm538, %v518, 0
        %v543 = vsel %vm538, %v519, 0
        %v546 = vsel %vm538, %v520, 0
        %v549 = vsel %vm538, %v521, 0
        %v552 = vsel %vm538, %v522, 0
        %v555 = vsel %vm538, %v523, 0
        %v558 = vsel %vm538, %v524, 0
        %v561 = vsel %vm538, %v525, 0
        %563 = vmatpush.bf16.msra.mxu0 0
        %564 = vmatpush.bf16.msra.mxu0 0
        %565 = vmatpush.bf16.msra.mxu0 0
        %566 = vmatpush.bf16.msra.mxu0 0
        %567 = vmatpush.bf16.msra.mxu0 0
        %568 = vmatpush.bf16.msra.mxu0 0
        %569 = vmatpush.bf16.msra.mxu0 %v535
        %570 = vmatpush.bf16.msra.mxu0 %v534
        %571 = vmatmul.bf16.gmra.mxu0 %v540
        %v572 = vpop.f32.mrf.mxu0
        %v573 = vadd.f32 %v484, %v572
        %v574 = vpop.f32.mrf.mxu0
        %v575 = vadd.f32 %v484, %v574
        %576 = vmatmul.bf16.gmra.mxu0 %v543
        %v577 = vpop.f32.mrf.mxu0
        %v578 = vadd.f32 %v484, %v577
        %v579 = vpop.f32.mrf.mxu0
        %v580 = vadd.f32 %v484, %v579
        %581 = vmatmul.bf16.gmra.mxu0 %v546
        %v582 = vpop.f32.mrf.mxu0
        %v583 = vadd.f32 %v484, %v582
        %v584 = vpop.f32.mrf.mxu0
        %v585 = vadd.f32 %v484, %v584
        %586 = vmatmul.bf16.gmra.mxu0 %v549
        %v587 = vpop.f32.mrf.mxu0
        %v588 = vadd.f32 %v484, %v587
        %v589 = vpop.f32.mrf.mxu0
        %v590 = vadd.f32 %v484, %v589
        %591 = vmatmul.bf16.gmra.mxu0 %v552
        %v592 = vpop.f32.mrf.mxu0
        %v593 = vadd.f32 %v484, %v592
        %v594 = vpop.f32.mrf.mxu0
        %v595 = vadd.f32 %v484, %v594
        %596 = vmatmul.bf16.gmra.mxu0 %v555
        %v597 = vpop.f32.mrf.mxu0
        %v598 = vadd.f32 %v484, %v597
        %v599 = vpop.f32.mrf.mxu0
        %v600 = vadd.f32 %v484, %v599
        %601 = vmatmul.bf16.gmra.mxu0 %v558
        %v602 = vpop.f32.mrf.mxu0
        %v603 = vadd.f32 %v484, %v602
        %v604 = vpop.f32.mrf.mxu0
        %v605 = vadd.f32 %v484, %v604
        %606 = vmatmul.bf16.gmra.mxu0 %v561
        %v607 = vpop.f32.mrf.mxu0
        %v608 = vadd.f32 %v484, %v607
        %v609 = vpop.f32.mrf.mxu0
        %v610 = vadd.f32 %v484, %v609
        %611 = vdwg.mxu0
        %612 = vmatpush.msra.mxu0 %v610
        %613 = vmatpush.msra.mxu0 %v608
        %614 = vmatpush.msra.mxu0 %v605
        %615 = vmatpush.msra.mxu0 %v603
        %616 = vmatpush.msra.mxu0 %v600
        %617 = vmatpush.msra.mxu0 %v598
        %618 = vmatpush.msra.mxu0 %v595
        %619 = vmatpush.msra.mxu0 %v593
        %620 = vmatpush.msra.mxu0 %v590
        %621 = vmatpush.msra.mxu0 %v588
        %622 = vmatpush.msra.mxu0 %v585
        %623 = vmatpush.msra.mxu0 %v583
        %624 = vmatpush.msra.mxu0 %v580
        %625 = vmatpush.msra.mxu0 %v578
        %626 = vmatpush.msra.mxu0 %v575
        %627 = vmatpush.msra.mxu0 %v573
        %628 = vmatmul.f32.gmra.mxu0 %v476
        %v629 = vpop.f32.mrf.mxu0
        %v630 = vadd.f32 0.0, %v629
        %631 = vmatmul.f32.gmra.mxu0 %v477
        %v632 = vpop.f32.mrf.mxu0
        %v633 = vadd.f32 0.0, %v632
        %634 = vdwg.mxu0
        %v635 = vmul.f32 %v573, %v573
        %v636 = vmul.f32 %v575, %v575
        %v637 = vmul.f32 %v578, %v578
        %v638 = vmul.f32 %v580, %v580
        %v639 = vmul.f32 %v583, %v583
        %v640 = vmul.f32 %v585, %v585
        %v641 = vmul.f32 %v588, %v588
        %v642 = vmul.f32 %v590, %v590
        %v643 = vmul.f32 %v593, %v593
        %v644 = vmul.f32 %v595, %v595
        %v645 = vmul.f32 %v598, %v598
        %v646 = vmul.f32 %v600, %v600
        %v647 = vmul.f32 %v603, %v603
        %v648 = vmul.f32 %v605, %v605
        %v649 = vmul.f32 %v608, %v608
        %v650 = vmul.f32 %v610, %v610
        %651 = vmatpush.msra.mxu0 %v650
        %652 = vmatpush.msra.mxu0 %v649
        %653 = vmatpush.msra.mxu0 %v648
        %654 = vmatpush.msra.mxu0 %v647
        %655 = vmatpush.msra.mxu0 %v646
        %656 = vmatpush.msra.mxu0 %v645
        %657 = vmatpush.msra.mxu0 %v644
        %658 = vmatpush.msra.mxu0 %v643
        %659 = vmatpush.msra.mxu0 %v642
        %660 = vmatpush.msra.mxu0 %v641
        %661 = vmatpush.msra.mxu0 %v640
        %662 = vmatpush.msra.mxu0 %v639
        %663 = vmatpush.msra.mxu0 %v638
        %664 = vmatpush.msra.mxu0 %v637
        %665 = vmatpush.msra.mxu0 %v636
        %666 = vmatpush.msra.mxu0 %v635
        %667 = vmatmul.f32.gmra.mxu0 %v476
        %v668 = vpop.f32.mrf.mxu0
        %v669 = vadd.f32 0.0, %v668
        %670 = vmatmul.f32.gmra.mxu0 %v477
        %v671 = vpop.f32.mrf.mxu0
        %v672 = vadd.f32 0.0, %v671
        %673 = vdwg.mxu0
        %v674 = vld [vmem:[%s6] sm:$0xff]
        %v675 = vld [vmem:[%s6 + $0x8] sm:$0xff]
        %vm676 = vcmask 130048
        %v678 = vsel %vm676, %v630, 0
        %v681 = vsel %vm676, %v633, 0
        %683 = vmatpush.msra.mxu0 0.0
        %684 = vmatpush.msra.mxu0 0.0
        %685 = vmatpush.msra.mxu0 0.0
        %686 = vmatpush.msra.mxu0 0.0
        %687 = vmatpush.msra.mxu0 0.0
        %688 = vmatpush.msra.mxu0 0.0
        %689 = vmatpush.msra.mxu0 0.0
        %690 = vmatpush.msra.mxu0 0.0
        %691 = vmatpush.msra.mxu0 0.0
        %692 = vmatpush.msra.mxu0 0.0
        %693 = vmatpush.msra.mxu0 0.0
        %694 = vmatpush.msra.mxu0 0.0
        %695 = vmatpush.msra.mxu0 0.0
        %696 = vmatpush.msra.mxu0 0.0
        %697 = vmatpush.msra.mxu0 %v675
        %698 = vmatpush.msra.mxu0 %v674
        %699 = vmatmul.f32.gmra.mxu0 %v678
        %v700 = vpop.f32.mrf.mxu0
        %v701 = vadd.f32 0.0, %v700
        %702 = vmatmul.f32.gmra.mxu0 %v681
        %v703 = vpop.f32.mrf.mxu0
        %v704 = vadd.f32 0.0, %v703
        %705 = vdwg.mxu0
        %v706 = vmul.f32 %v701, 0.03125
        %v707 = vmul.f32 %v704, 0.03125
        %v709 = vsel %vm676, %v669, 0
        %v712 = vsel %vm676, %v672, 0
        %714 = vmatpush.msra.mxu0 0.0
        %715 = vmatpush.msra.mxu0 0.0
        %716 = vmatpush.msra.mxu0 0.0
        %717 = vmatpush.msra.mxu0 0.0
        %718 = vmatpush.msra.mxu0 0.0
        %719 = vmatpush.msra.mxu0 0.0
        %720 = vmatpush.msra.mxu0 0.0
        %721 = vmatpush.msra.mxu0 0.0
        %722 = vmatpush.msra.mxu0 0.0
        %723 = vmatpush.msra.mxu0 0.0
        %724 = vmatpush.msra.mxu0 0.0
        %725 = vmatpush.msra.mxu0 0.0
        %726 = vmatpush.msra.mxu0 0.0
        %727 = vmatpush.msra.mxu0 0.0
        %728 = vmatpush.msra.mxu0 %v675
        %729 = vmatpush.msra.mxu0 %v674
        %730 = vmatmul.f32.gmra.mxu0 %v709
        %v731 = vpop.f32.mrf.mxu0
        %v732 = vadd.f32 0.0, %v731
        %733 = vmatmul.f32.gmra.mxu0 %v712
        %v734 = vpop.f32.mrf.mxu0
        %v735 = vadd.f32 0.0, %v734
        %736 = vdwg.mxu0
        %v737 = vmul.f32 %v732, 0.03125
        %v738 = vmul.f32 %v735, 0.03125
        %v739 = vmul.f32 %v706, %v706
        %v740 = vmul.f32 %v707, %v707
        %v741 = vsub.f32 %v737, %v739
        %v742 = vsub.f32 %v738, %v740
        %v743 = vmax.f32 %v741, 0.0
        %v744 = vmax.f32 %v742, 0.0
        %v745 = vadd.f32 %v743, 1e-05
        %v746 = vadd.f32 %v744, 1e-05
        %v747 = vrsqrt.pop %v745
        %v748 = vmul.f32 %v747, %v745
        %v749 = vmul.f32 %v748, %v747
        %v750 = vmul.f32 0.5, %v749
        %v751 = vsub.f32 1.5, %v750
        %v752 = vmul.f32 %v747, %v751
        %vm753 = vweird.f32 %v745
        %vm754 = vweird.f32 %v747
        %vm755 = vmor %vm753, %vm754
        %v756 = vsel %vm755, %v747, %v752
        %v757 = vrsqrt.pop %v746
        %v758 = vmul.f32 %v757, %v746
        %v759 = vmul.f32 %v758, %v757
        %v760 = vmul.f32 0.5, %v759
        %v761 = vsub.f32 1.5, %v760
        %v762 = vmul.f32 %v757, %v761
        %vm763 = vweird.f32 %v746
        %vm764 = vweird.f32 %v757
        %vm765 = vmor %vm763, %vm764
        %v766 = vsel %vm765, %v757, %v762
        %v767 = vld [vmem:[%s7] sm:$0xf]
        %vm768 = vcmask 31744
        %v770 = vsel %vm768, %v706, 0
        %v773 = vsel %vm768, %v707, 0
        %vm775 = vcmask 1043456
        %v777 = vsel %vm775, %v767, 0
        %779 = vmatpush.msra.mxu0 0.0
        %780 = vmatpush.msra.mxu0 0.0
        %781 = vmatpush.msra.mxu0 0.0
        %782 = vmatpush.msra.mxu0 0.0
        %783 = vmatpush.msra.mxu0 0.0
        %784 = vmatpush.msra.mxu0 0.0
        %785 = vmatpush.msra.mxu0 0.0
        %786 = vmatpush.msra.mxu0 0.0
        %787 = vmatpush.msra.mxu0 0.0
        %788 = vmatpush.msra.mxu0 0.0
        %789 = vmatpush.msra.mxu0 0.0
        %790 = vmatpush.msra.mxu0 0.0
        %791 = vmatpush.msra.mxu0 0.0
        %792 = vmatpush.msra.mxu0 0.0
        %793 = vmatpush.msra.mxu0 0.0
        %794 = vmatpush.msra.mxu0 %v777
        %795 = vmatmul.f32.gmra.mxu0 %v770
        %v796 = vpop.f32.mrf.mxu0
        %v797 = vadd.f32 0.0, %v796
        %798 = vmatmul.f32.gmra.mxu0 %v773
        %v799 = vpop.f32.mrf.mxu0
        %v800 = vadd.f32 0.0, %v799
        %801 = vdwg.mxu0
        %v803 = vsel %vm768, %v756, 0
        %v806 = vsel %vm768, %v766, 0
        %808 = vmatpush.msra.mxu0 0.0
        %809 = vmatpush.msra.mxu0 0.0
        %810 = vmatpush.msra.mxu0 0.0
        %811 = vmatpush.msra.mxu0 0.0
        %812 = vmatpush.msra.mxu0 0.0
        %813 = vmatpush.msra.mxu0 0.0
        %814 = vmatpush.msra.mxu0 0.0
        %815 = vmatpush.msra.mxu0 0.0
        %816 = vmatpush.msra.mxu0 0.0
        %817 = vmatpush.msra.mxu0 0.0
        %818 = vmatpush.msra.mxu0 0.0
        %819 = vmatpush.msra.mxu0 0.0
        %820 = vmatpush.msra.mxu0 0.0
        %821 = vmatpush.msra.mxu0 0.0
        %822 = vmatpush.msra.mxu0 0.0
        %823 = vmatpush.msra.mxu0 %v777
        %824 = vmatmul.f32.gmra.mxu0 %v803
        %v825 = vpop.f32.mrf.mxu0
        %v826 = vadd.f32 0.0, %v825
        %827 = vmatmul.f32.gmra.mxu0 %v806
        %v828 = vpop.f32.mrf.mxu0
        %v829 = vadd.f32 0.0, %v828
        %830 = vdwg.mxu0
        %v831 = vld [vmem:[%s9] sm:$0xff]
        %v832 = vld [vmem:[%s9 + $0x8] sm:$0xff]
        %v833 = vld [vmem:[%s9 + $0x10] sm:$0xff]
        %v834 = vld [vmem:[%s9 + $0x18] sm:$0xff]
        %v835 = vld [vmem:[%s9 + $0x20] sm:$0xff]
        %v836 = vld [vmem:[%s9 + $0x28] sm:$0xff]
        %v837 = vld [vmem:[%s9 + $0x30] sm:$0xff]
        %v838 = vld [vmem:[%s9 + $0x38] sm:$0xff]
        %v839 = vld [vmem:[%s9 + $0x40] sm:$0xff]
        %v840 = vld [vmem:[%s9 + $0x48] sm:$0xff]
        %v841 = vld [vmem:[%s9 + $0x50] sm:$0xff]
        %v842 = vld [vmem:[%s9 + $0x58] sm:$0xff]
        %v843 = vld [vmem:[%s9 + $0x60] sm:$0xff]
        %v844 = vld [vmem:[%s9 + $0x68] sm:$0xff]
        %v845 = vld [vmem:[%s9 + $0x70] sm:$0xff]
        %v846 = vld [vmem:[%s9 + $0x78] sm:$0xff]
        %v848 = vsel %vm676, %v831, 0
        %v851 = vsel %vm676, %v832, 0
        %v854 = vsel %vm676, %v833, 0
        %v857 = vsel %vm676, %v834, 0
        %v860 = vsel %vm676, %v835, 0
        %v863 = vsel %vm676, %v836, 0
        %v866 = vsel %vm676, %v837, 0
        %v869 = vsel %vm676, %v838, 0
        %v872 = vsel %vm676, %v839, 0
        %v875 = vsel %vm676, %v840, 0
        %v878 = vsel %vm676, %v841, 0
        %v881 = vsel %vm676, %v842, 0
        %v884 = vsel %vm676, %v843, 0
        %v887 = vsel %vm676, %v844, 0
        %v890 = vsel %vm676, %v845, 0
        %v893 = vsel %vm676, %v846, 0
        %895 = vmatpush.msra.mxu0 0.0
        %896 = vmatpush.msra.mxu0 0.0
        %897 = vmatpush.msra.mxu0 0.0
        %898 = vmatpush.msra.mxu0 0.0
        %899 = vmatpush.msra.mxu0 0.0
        %900 = vmatpush.msra.mxu0 0.0
        %901 = vmatpush.msra.mxu0 0.0
        %902 = vmatpush.msra.mxu0 0.0
        %903 = vmatpush.msra.mxu0 0.0
        %904 = vmatpush.msra.mxu0 0.0
        %905 = vmatpush.msra.mxu0 0.0
        %906 = vmatpush.msra.mxu0 0.0
        %907 = vmatpush.msra.mxu0 0.0
        %908 = vmatpush.msra.mxu0 0.0
        %909 = vmatpush.msra.mxu0 %v800
        %910 = vmatpush.msra.mxu0 %v797
        %911 = vmatmul.f32.gmra.mxu0 %v848
        %v912 = vpop.f32.mrf.mxu0
        %v913 = vadd.f32 0.0, %v912
        %914 = vmatmul.f32.gmra.mxu0 %v851
        %v915 = vpop.f32.mrf.mxu0
        %v916 = vadd.f32 0.0, %v915
        %917 = vmatmul.f32.gmra.mxu0 %v854
        %v918 = vpop.f32.mrf.mxu0
        %v919 = vadd.f32 0.0, %v918
        %920 = vmatmul.f32.gmra.mxu0 %v857
        %v921 = vpop.f32.mrf.mxu0
        %v922 = vadd.f32 0.0, %v921
        %923 = vmatmul.f32.gmra.mxu0 %v860
        %v924 = vpop.f32.mrf.mxu0
        %v925 = vadd.f32 0.0, %v924
        %926 = vmatmul.f32.gmra.mxu0 %v863
        %v927 = vpop.f32.mrf.mxu0
        %v928 = vadd.f32 0.0, %v927
        %929 = vmatmul.f32.gmra.mxu0 %v866
        %v930 = vpop.f32.mrf.mxu0
        %v931 = vadd.f32 0.0, %v930
        %932 = vmatmul.f32.gmra.mxu0 %v869
        %v933 = vpop.f32.mrf.mxu0
        %v934 = vadd.f32 0.0, %v933
        %935 = vmatmul.f32.gmra.mxu0 %v872
        %v936 = vpop.f32.mrf.mxu0
        %v937 = vadd.f32 0.0, %v936
        %938 = vmatmul.f32.gmra.mxu0 %v875
        %v939 = vpop.f32.mrf.mxu0
        %v940 = vadd.f32 0.0, %v939
        %941 = vmatmul.f32.gmra.mxu0 %v878
        %v942 = vpop.f32.mrf.mxu0
        %v943 = vadd.f32 0.0, %v942
        %944 = vmatmul.f32.gmra.mxu0 %v881
        %v945 = vpop.f32.mrf.mxu0
        %v946 = vadd.f32 0.0, %v945
        %947 = vmatmul.f32.gmra.mxu0 %v884
        %v948 = vpop.f32.mrf.mxu0
        %v949 = vadd.f32 0.0, %v948
        %950 = vmatmul.f32.gmra.mxu0 %v887
        %v951 = vpop.f32.mrf.mxu0
        %v952 = vadd.f32 0.0, %v951
        %953 = vmatmul.f32.gmra.mxu0 %v890
        %v954 = vpop.f32.mrf.mxu0
        %v955 = vadd.f32 0.0, %v954
        %956 = vmatmul.f32.gmra.mxu0 %v893
        %v957 = vpop.f32.mrf.mxu0
        %v958 = vadd.f32 0.0, %v957
        %959 = vdwg.mxu0
        %960 = vmatpush.msra.mxu0 0.0
        %961 = vmatpush.msra.mxu0 0.0
        %962 = vmatpush.msra.mxu0 0.0
        %963 = vmatpush.msra.mxu0 0.0
        %964 = vmatpush.msra.mxu0 0.0
        %965 = vmatpush.msra.mxu0 0.0
        %966 = vmatpush.msra.mxu0 0.0
        %967 = vmatpush.msra.mxu0 0.0
        %968 = vmatpush.msra.mxu0 0.0
        %969 = vmatpush.msra.mxu0 0.0
        %970 = vmatpush.msra.mxu0 0.0
        %971 = vmatpush.msra.mxu0 0.0
        %972 = vmatpush.msra.mxu0 0.0
        %973 = vmatpush.msra.mxu0 0.0
        %974 = vmatpush.msra.mxu0 %v829
        %975 = vmatpush.msra.mxu0 %v826
        %976 = vmatmul.f32.gmra.mxu0 %v848
        %v977 = vpop.f32.mrf.mxu0
        %v978 = vadd.f32 0.0, %v977
        %979 = vmatmul.f32.gmra.mxu0 %v851
        %v980 = vpop.f32.mrf.mxu0
        %v981 = vadd.f32 0.0, %v980
        %982 = vmatmul.f32.gmra.mxu0 %v854
        %v983 = vpop.f32.mrf.mxu0
        %v984 = vadd.f32 0.0, %v983
        %985 = vmatmul.f32.gmra.mxu0 %v857
        %v986 = vpop.f32.mrf.mxu0
        %v987 = vadd.f32 0.0, %v986
        %988 = vmatmul.f32.gmra.mxu0 %v860
        %v989 = vpop.f32.mrf.mxu0
        %v990 = vadd.f32 0.0, %v989
        %991 = vmatmul.f32.gmra.mxu0 %v863
        %v992 = vpop.f32.mrf.mxu0
        %v993 = vadd.f32 0.0, %v992
        %994 = vmatmul.f32.gmra.mxu0 %v866
        %v995 = vpop.f32.mrf.mxu0
        %v996 = vadd.f32 0.0, %v995
        %997 = vmatmul.f32.gmra.mxu0 %v869
        %v998 = vpop.f32.mrf.mxu0
        %v999 = vadd.f32 0.0, %v998
        %1000 = vmatmul.f32.gmra.mxu0 %v872
        %v1001 = vpop.f32.mrf.mxu0
        %v1002 = vadd.f32 0.0, %v1001
        %1003 = vmatmul.f32.gmra.mxu0 %v875
        %v1004 = vpop.f32.mrf.mxu0
        %v1005 = vadd.f32 0.0, %v1004
        %1006 = vmatmul.f32.gmra.mxu0 %v878
        %v1007 = vpop.f32.mrf.mxu0
        %v1008 = vadd.f32 0.0, %v1007
        %1009 = vmatmul.f32.gmra.mxu0 %v881
        %v1010 = vpop.f32.mrf.mxu0
        %v1011 = vadd.f32 0.0, %v1010
        %1012 = vmatmul.f32.gmra.mxu0 %v884
        %v1013 = vpop.f32.mrf.mxu0
        %v1014 = vadd.f32 0.0, %v1013
        %1015 = vmatmul.f32.gmra.mxu0 %v887
        %v1016 = vpop.f32.mrf.mxu0
        %v1017 = vadd.f32 0.0, %v1016
        %1018 = vmatmul.f32.gmra.mxu0 %v890
        %v1019 = vpop.f32.mrf.mxu0
        %v1020 = vadd.f32 0.0, %v1019
        %1021 = vmatmul.f32.gmra.mxu0 %v893
        %v1022 = vpop.f32.mrf.mxu0
        %v1023 = vadd.f32 0.0, %v1022
        %1024 = vdwg.mxu0
        %v1025 = vsub.f32 %v573, %v913
        %v1026 = vsub.f32 %v575, %v916
        %v1027 = vsub.f32 %v578, %v919
        %v1028 = vsub.f32 %v580, %v922
        %v1029 = vsub.f32 %v583, %v925
        %v1030 = vsub.f32 %v585, %v928
        %v1031 = vsub.f32 %v588, %v931
        %v1032 = vsub.f32 %v590, %v934
        %v1033 = vsub.f32 %v593, %v937
        %v1034 = vsub.f32 %v595, %v940
        %v1035 = vsub.f32 %v598, %v943
        %v1036 = vsub.f32 %v600, %v946
        %v1037 = vsub.f32 %v603, %v949
        %v1038 = vsub.f32 %v605, %v952
        %v1039 = vsub.f32 %v608, %v955
        %v1040 = vsub.f32 %v610, %v958
        %v1041 = vmul.f32 %v1025, %v978
        %v1042 = vmul.f32 %v1026, %v981
        %v1043 = vmul.f32 %v1027, %v984
        %v1044 = vmul.f32 %v1028, %v987
        %v1045 = vmul.f32 %v1029, %v990
        %v1046 = vmul.f32 %v1030, %v993
        %v1047 = vmul.f32 %v1031, %v996
        %v1048 = vmul.f32 %v1032, %v999
        %v1049 = vmul.f32 %v1033, %v1002
        %v1050 = vmul.f32 %v1034, %v1005
        %v1051 = vmul.f32 %v1035, %v1008
        %v1052 = vmul.f32 %v1036, %v1011
        %v1053 = vmul.f32 %v1037, %v1014
        %v1054 = vmul.f32 %v1038, %v1017
        %v1055 = vmul.f32 %v1039, %v1020
        %v1056 = vmul.f32 %v1040, %v1023
        %v1057 = vmax.f32 %v1041, 0.0
        %v1058 = vmax.f32 %v1042, 0.0
        %v1059 = vmax.f32 %v1043, 0.0
        %v1060 = vmax.f32 %v1044, 0.0
        %v1061 = vmax.f32 %v1045, 0.0
        %v1062 = vmax.f32 %v1046, 0.0
        %v1063 = vmax.f32 %v1047, 0.0
        %v1064 = vmax.f32 %v1048, 0.0
        %v1065 = vmax.f32 %v1049, 0.0
        %v1066 = vmax.f32 %v1050, 0.0
        %v1067 = vmax.f32 %v1051, 0.0
        %v1068 = vmax.f32 %v1052, 0.0
        %v1069 = vmax.f32 %v1053, 0.0
        %v1070 = vmax.f32 %v1054, 0.0
        %v1071 = vmax.f32 %v1055, 0.0
        %v1072 = vmax.f32 %v1056, 0.0
        %v1073 = vmul.f32 %v1057, 0.5
        %v1074 = vmul.f32 %v1058, 0.5
        %v1075 = vmul.f32 %v1059, 0.5
        %v1076 = vmul.f32 %v1060, 0.5
        %v1077 = vmul.f32 %v1061, 0.5
        %v1078 = vmul.f32 %v1062, 0.5
        %v1079 = vmul.f32 %v1063, 0.5
        %v1080 = vmul.f32 %v1064, 0.5
        %v1081 = vmul.f32 %v1065, 0.5
        %v1082 = vmul.f32 %v1066, 0.5
        %v1083 = vmul.f32 %v1067, 0.5
        %v1084 = vmul.f32 %v1068, 0.5
        %v1085 = vmul.f32 %v1069, 0.5
        %v1086 = vmul.f32 %v1070, 0.5
        %v1087 = vmul.f32 %v1071, 0.5
        %v1088 = vmul.f32 %v1072, 0.5
        %v1089 = vtanh.pop %v1073
        %v1090 = vtanh.pop %v1074
        %v1091 = vtanh.pop %v1075
        %v1092 = vtanh.pop %v1076
        %v1093 = vtanh.pop %v1077
        %v1094 = vtanh.pop %v1078
        %v1095 = vtanh.pop %v1079
        %v1096 = vtanh.pop %v1080
        %v1097 = vtanh.pop %v1081
        %v1098 = vtanh.pop %v1082
        %v1099 = vtanh.pop %v1083
        %v1100 = vtanh.pop %v1084
        %v1101 = vtanh.pop %v1085
        %v1102 = vtanh.pop %v1086
        %v1103 = vtanh.pop %v1087
        %v1104 = vtanh.pop %v1088
        %v1105 = vadd.f32 %v1089, 1.0
        %v1106 = vadd.f32 %v1090, 1.0
        %v1107 = vadd.f32 %v1091, 1.0
        %v1108 = vadd.f32 %v1092, 1.0
        %v1109 = vadd.f32 %v1093, 1.0
        %v1110 = vadd.f32 %v1094, 1.0
        %v1111 = vadd.f32 %v1095, 1.0
        %v1112 = vadd.f32 %v1096, 1.0
        %v1113 = vadd.f32 %v1097, 1.0
        %v1114 = vadd.f32 %v1098, 1.0
        %v1115 = vadd.f32 %v1099, 1.0
        %v1116 = vadd.f32 %v1100, 1.0
        %v1117 = vadd.f32 %v1101, 1.0
        %v1118 = vadd.f32 %v1102, 1.0
        %v1119 = vadd.f32 %v1103, 1.0
        %v1120 = vadd.f32 %v1104, 1.0
        %v1121 = vmul.f32 %v1105, 0.5
        %v1122 = vmul.f32 %v1106, 0.5
        %v1123 = vmul.f32 %v1107, 0.5
        %v1124 = vmul.f32 %v1108, 0.5
        %v1125 = vmul.f32 %v1109, 0.5
        %v1126 = vmul.f32 %v1110, 0.5
        %v1127 = vmul.f32 %v1111, 0.5
        %v1128 = vmul.f32 %v1112, 0.5
        %v1129 = vmul.f32 %v1113, 0.5
        %v1130 = vmul.f32 %v1114, 0.5
        %v1131 = vmul.f32 %v1115, 0.5
        %v1132 = vmul.f32 %v1116, 0.5
        %v1133 = vmul.f32 %v1117, 0.5
        %v1134 = vmul.f32 %v1118, 0.5
        %v1135 = vmul.f32 %v1119, 0.5
        %v1136 = vmul.f32 %v1120, 0.5
        %v1137 = vpack.c.bf16 %v1122, %v1121
        %v1138 = vpack.c.bf16 %v1124, %v1123
        %v1139 = vpack.c.bf16 %v1126, %v1125
        %v1140 = vpack.c.bf16 %v1128, %v1127
        %v1141 = vpack.c.bf16 %v1130, %v1129
        %v1142 = vpack.c.bf16 %v1132, %v1131
        %v1143 = vpack.c.bf16 %v1134, %v1133
        %v1144 = vpack.c.bf16 %v1136, %v1135
        %v1145 = vld [vmem:[%s1] sm:$0xf]
        %v1146 = vld [vmem:[%s1 + $0x4] sm:$0xf]
        %v1147 = vld [vmem:[%s1 + $0x8] sm:$0xf]
        %v1148 = vld [vmem:[%s1 + $0xc] sm:$0xf]
        %v1153 = vunpack.c.l.b16 %v1145
        %v1154 = vunpack.c.l.b16 %v1146
        %v1155 = vunpack.c.l.b16 %v1147
        %v1156 = vunpack.c.l.b16 %v1148
        %v1157 = vpack.c.b16 %v1154, %v1153
        %v1158 = vpack.c.b16 %v1156, %v1155
        %1161 = vmatpush.bf16.msra.mxu0 0
        %1162 = vmatpush.bf16.msra.mxu0 0
        %1163 = vmatpush.bf16.msra.mxu0 0
        %1164 = vmatpush.bf16.msra.mxu0 0
        %1165 = vmatpush.bf16.msra.mxu0 0
        %1166 = vmatpush.bf16.msra.mxu0 0
        %1167 = vmatpush.bf16.msra.mxu0 %v1158
        %1168 = vmatpush.bf16.msra.mxu0 %v1157
        %1169 = vmatmul.bf16.gmra.mxu0 %v540
        %v1170 = vpop.f32.mrf.mxu0
        %v1171 = vadd.f32 0.0, %v1170
        %v1172 = vpop.f32.mrf.mxu0
        %v1173 = vadd.f32 0.0, %v1172
        %1174 = vmatmul.bf16.gmra.mxu0 %v543
        %v1175 = vpop.f32.mrf.mxu0
        %v1176 = vadd.f32 0.0, %v1175
        %v1177 = vpop.f32.mrf.mxu0
        %v1178 = vadd.f32 0.0, %v1177
        %1179 = vmatmul.bf16.gmra.mxu0 %v546
        %v1180 = vpop.f32.mrf.mxu0
        %v1181 = vadd.f32 0.0, %v1180
        %v1182 = vpop.f32.mrf.mxu0
        %v1183 = vadd.f32 0.0, %v1182
        %1184 = vmatmul.bf16.gmra.mxu0 %v549
        %v1185 = vpop.f32.mrf.mxu0
        %v1186 = vadd.f32 0.0, %v1185
        %v1187 = vpop.f32.mrf.mxu0
        %v1188 = vadd.f32 0.0, %v1187
        %1189 = vmatmul.bf16.gmra.mxu0 %v552
        %v1190 = vpop.f32.mrf.mxu0
        %v1191 = vadd.f32 0.0, %v1190
        %v1192 = vpop.f32.mrf.mxu0
        %v1193 = vadd.f32 0.0, %v1192
        %1194 = vmatmul.bf16.gmra.mxu0 %v555
        %v1195 = vpop.f32.mrf.mxu0
        %v1196 = vadd.f32 0.0, %v1195
        %v1197 = vpop.f32.mrf.mxu0
        %v1198 = vadd.f32 0.0, %v1197
        %1199 = vmatmul.bf16.gmra.mxu0 %v558
        %v1200 = vpop.f32.mrf.mxu0
        %v1201 = vadd.f32 0.0, %v1200
        %v1202 = vpop.f32.mrf.mxu0
        %v1203 = vadd.f32 0.0, %v1202
        %1204 = vmatmul.bf16.gmra.mxu0 %v561
        %v1205 = vpop.f32.mrf.mxu0
        %v1206 = vadd.f32 0.0, %v1205
        %v1207 = vpop.f32.mrf.mxu0
        %v1208 = vadd.f32 0.0, %v1207
        %1209 = vdwg.mxu0
        %v1210 = vpack.c.bf16 %v1173, %v1171
        %v1211 = vpack.c.bf16 %v1178, %v1176
        %v1212 = vpack.c.bf16 %v1183, %v1181
        %v1213 = vpack.c.bf16 %v1188, %v1186
        %v1214 = vpack.c.bf16 %v1193, %v1191
        %v1215 = vpack.c.bf16 %v1198, %v1196
        %v1216 = vpack.c.bf16 %v1203, %v1201
        %v1217 = vpack.c.bf16 %v1208, %v1206
        %v1218 = vld [vmem:[#allocation2] sm:$0xff]
        %v1219 = vld [vmem:[#allocation2 + $0x8] sm:$0xff]
        %v1220 = vld [vmem:[#allocation2 + $0x10] sm:$0xff]
        %v1221 = vld [vmem:[#allocation2 + $0x18] sm:$0xff]
        %v1222 = vld [vmem:[#allocation2 + $0x20] sm:$0xff]
        %v1223 = vld [vmem:[#allocation2 + $0x28] sm:$0xff]
        %v1224 = vld [vmem:[#allocation2 + $0x30] sm:$0xff]
        %v1225 = vld [vmem:[#allocation2 + $0x38] sm:$0xff]
        %v1226 = vld [vmem:[#allocation2 + $0x40] sm:$0xff]
        %v1227 = vld [vmem:[#allocation2 + $0x48] sm:$0xff]
        %v1228 = vld [vmem:[#allocation2 + $0x50] sm:$0xff]
        %v1229 = vld [vmem:[#allocation2 + $0x58] sm:$0xff]
        %v1230 = vld [vmem:[#allocation2 + $0x60] sm:$0xff]
        %v1231 = vld [vmem:[#allocation2 + $0x68] sm:$0xff]
        %v1232 = vld [vmem:[#allocation2 + $0x70] sm:$0xff]
        %v1233 = vld [vmem:[#allocation2 + $0x78] sm:$0xff]
        %v1235 = vsel %vm538, %v1210, 0
        %v1238 = vsel %vm538, %v1211, 0
        %v1241 = vsel %vm538, %v1212, 0
        %v1244 = vsel %vm538, %v1213, 0
        %v1247 = vsel %vm538, %v1214, 0
        %v1250 = vsel %vm538, %v1215, 0
        %v1253 = vsel %vm538, %v1216, 0
        %v1256 = vsel %vm538, %v1217, 0
        %1258 = vmatpush.bf16.xpose.msra.mxu0 %v561
        %1259 = vmatpush.bf16.xpose.msra.mxu0 %v558
        %1260 = vmatpush.bf16.xpose.msra.mxu0 %v555
        %1261 = vmatpush.bf16.xpose.msra.mxu0 %v552
        %1262 = vmatpush.bf16.xpose.msra.mxu0 %v549
        %1263 = vmatpush.bf16.xpose.msra.mxu0 %v546
        %1264 = vmatpush.bf16.xpose.msra.mxu0 %v543
        %1265 = vmatpush.bf16.xpose.msra.mxu0 %v540
        %1266 = vmatmul.bf16.gmra.mxu0 %v1235
        %v1267 = vpop.f32.mrf.mxu0
        %v1268 = vadd.f32 %v1218, %v1267
        %v1269 = vpop.f32.mrf.mxu0
        %v1270 = vadd.f32 %v1219, %v1269
        %1271 = vmatmul.bf16.gmra.mxu0 %v1238
        %v1272 = vpop.f32.mrf.mxu0
        %v1273 = vadd.f32 %v1220, %v1272
        %v1274 = vpop.f32.mrf.mxu0
        %v1275 = vadd.f32 %v1221, %v1274
        %1276 = vmatmul.bf16.gmra.mxu0 %v1241
        %v1277 = vpop.f32.mrf.mxu0
        %v1278 = vadd.f32 %v1222, %v1277
        %v1279 = vpop.f32.mrf.mxu0
        %v1280 = vadd.f32 %v1223, %v1279
        %1281 = vmatmul.bf16.gmra.mxu0 %v1244
        %v1282 = vpop.f32.mrf.mxu0
        %v1283 = vadd.f32 %v1224, %v1282
        %v1284 = vpop.f32.mrf.mxu0
        %v1285 = vadd.f32 %v1225, %v1284
        %1286 = vmatmul.bf16.gmra.mxu0 %v1247
        %v1287 = vpop.f32.mrf.mxu0
        %v1288 = vadd.f32 %v1226, %v1287
        %v1289 = vpop.f32.mrf.mxu0
        %v1290 = vadd.f32 %v1227, %v1289
        %1291 = vmatmul.bf16.gmra.mxu0 %v1250
        %v1292 = vpop.f32.mrf.mxu0
        %v1293 = vadd.f32 %v1228, %v1292
        %v1294 = vpop.f32.mrf.mxu0
        %v1295 = vadd.f32 %v1229, %v1294
        %1296 = vmatmul.bf16.gmra.mxu0 %v1253
        %v1297 = vpop.f32.mrf.mxu0
        %v1298 = vadd.f32 %v1230, %v1297
        %v1299 = vpop.f32.mrf.mxu0
        %v1300 = vadd.f32 %v1231, %v1299
        %1301 = vmatmul.bf16.gmra.mxu0 %v1256
        %v1302 = vpop.f32.mrf.mxu0
        %v1303 = vadd.f32 %v1232, %v1302
        %v1304 = vpop.f32.mrf.mxu0
        %v1305 = vadd.f32 %v1233, %v1304
        %1306 = vdwg.mxu0
        %1307 = vmax.xlane.f32.xlu0 %v1268
        %v1308 = vpop.xlane.xlu0 %1307
        %1309 = vmax.xlane.f32.xlu0 %v1270
        %v1310 = vpop.xlane.xlu0 %1309
        %1311 = vmax.xlane.f32.xlu0 %v1273
        %v1312 = vpop.xlane.xlu0 %1311
        %1313 = vmax.xlane.f32.xlu0 %v1275
        %v1314 = vpop.xlane.xlu0 %1313
        %1315 = vmax.xlane.f32.xlu0 %v1278
        %v1316 = vpop.xlane.xlu0 %1315
        %1317 = vmax.xlane.f32.xlu0 %v1280
        %v1318 = vpop.xlane.xlu0 %1317
        %1319 = vmax.xlane.f32.xlu0 %v1283
        %v1320 = vpop.xlane.xlu0 %1319
        %1321 = vmax.xlane.f32.xlu0 %v1285
        %v1322 = vpop.xlane.xlu0 %1321
        %1323 = vmax.xlane.f32.xlu0 %v1288
        %v1324 = vpop.xlane.xlu0 %1323
        %1325 = vmax.xlane.f32.xlu0 %v1290
        %v1326 = vpop.xlane.xlu0 %1325
        %1327 = vmax.xlane.f32.xlu0 %v1293
        %v1328 = vpop.xlane.xlu0 %1327
        %1329 = vmax.xlane.f32.xlu0 %v1295
        %v1330 = vpop.xlane.xlu0 %1329
        %1331 = vmax.xlane.f32.xlu0 %v1298
        %v1332 = vpop.xlane.xlu0 %1331
        %1333 = vmax.xlane.f32.xlu0 %v1300
        %v1334 = vpop.xlane.xlu0 %1333
        %1335 = vmax.xlane.f32.xlu0 %v1303
        %v1336 = vpop.xlane.xlu0 %1335
        %1337 = vmax.xlane.f32.xlu0 %v1305
        %v1338 = vpop.xlane.xlu0 %1337
        %v1339 = vsub.f32 %v1268, %v1308
        %v1340 = vsub.f32 %v1270, %v1310
        %v1341 = vsub.f32 %v1273, %v1312
        %v1342 = vsub.f32 %v1275, %v1314
        %v1343 = vsub.f32 %v1278, %v1316
        %v1344 = vsub.f32 %v1280, %v1318
        %v1345 = vsub.f32 %v1283, %v1320
        %v1346 = vsub.f32 %v1285, %v1322
        %v1347 = vsub.f32 %v1288, %v1324
        %v1348 = vsub.f32 %v1290, %v1326
        %v1349 = vsub.f32 %v1293, %v1328
        %v1350 = vsub.f32 %v1295, %v1330
        %v1351 = vsub.f32 %v1298, %v1332
        %v1352 = vsub.f32 %v1300, %v1334
        %v1353 = vsub.f32 %v1303, %v1336
        %v1354 = vsub.f32 %v1305, %v1338
        %v1355 = vmul.f32 %v1339, 1.442695
        %v1356 = vpow.pop %v1355
        %v1357 = vmul.f32 %v1340, 1.442695
        %v1358 = vpow.pop %v1357
        %v1359 = vmul.f32 %v1341, 1.442695
        %v1360 = vpow.pop %v1359
        %v1361 = vmul.f32 %v1342, 1.442695
        %v1362 = vpow.pop %v1361
        %v1363 = vmul.f32 %v1343, 1.442695
        %v1364 = vpow.pop %v1363
        %v1365 = vmul.f32 %v1344, 1.442695
        %v1366 = vpow.pop %v1365
        %v1367 = vmul.f32 %v1345, 1.442695
        %v1368 = vpow.pop %v1367
        %v1369 = vmul.f32 %v1346, 1.442695
        %v1370 = vpow.pop %v1369
        %v1371 = vmul.f32 %v1347, 1.442695
        %v1372 = vpow.pop %v1371
        %v1373 = vmul.f32 %v1348, 1.442695
        %v1374 = vpow.pop %v1373
        %v1375 = vmul.f32 %v1349, 1.442695
        %v1376 = vpow.pop %v1375
        %v1377 = vmul.f32 %v1350, 1.442695
        %v1378 = vpow.pop %v1377
        %v1379 = vmul.f32 %v1351, 1.442695
        %v1380 = vpow.pop %v1379
        %v1381 = vmul.f32 %v1352, 1.442695
        %v1382 = vpow.pop %v1381
        %v1383 = vmul.f32 %v1353, 1.442695
        %v1384 = vpow.pop %v1383
        %v1385 = vmul.f32 %v1354, 1.442695
        %v1386 = vpow.pop %v1385
        %1387 = vadd.xlane.f32.xlu0 %v1356
        %v1388 = vpop.xlane.xlu0 %1387
        %1389 = vadd.xlane.f32.xlu0 %v1358
        %v1390 = vpop.xlane.xlu0 %1389
        %1391 = vadd.xlane.f32.xlu0 %v1360
        %v1392 = vpop.xlane.xlu0 %1391
        %1393 = vadd.xlane.f32.xlu0 %v1362
        %v1394 = vpop.xlane.xlu0 %1393
        %1395 = vadd.xlane.f32.xlu0 %v1364
        %v1396 = vpop.xlane.xlu0 %1395
        %1397 = vadd.xlane.f32.xlu0 %v1366
        %v1398 = vpop.xlane.xlu0 %1397
        %1399 = vadd.xlane.f32.xlu0 %v1368
        %v1400 = vpop.xlane.xlu0 %1399
        %1401 = vadd.xlane.f32.xlu0 %v1370
        %v1402 = vpop.xlane.xlu0 %1401
        %1403 = vadd.xlane.f32.xlu0 %v1372
        %v1404 = vpop.xlane.xlu0 %1403
        %1405 = vadd.xlane.f32.xlu0 %v1374
        %v1406 = vpop.xlane.xlu0 %1405
        %1407 = vadd.xlane.f32.xlu0 %v1376
        %v1408 = vpop.xlane.xlu0 %1407
        %1409 = vadd.xlane.f32.xlu0 %v1378
        %v1410 = vpop.xlane.xlu0 %1409
        %1411 = vadd.xlane.f32.xlu0 %v1380
        %v1412 = vpop.xlane.xlu0 %1411
        %1413 = vadd.xlane.f32.xlu0 %v1382
        %v1414 = vpop.xlane.xlu0 %1413
        %1415 = vadd.xlane.f32.xlu0 %v1384
        %v1416 = vpop.xlane.xlu0 %1415
        %1417 = vadd.xlane.f32.xlu0 %v1386
        %v1418 = vpop.xlane.xlu0 %1417
        %v1419 = vrcp.pop %v1388
        %v1420 = vrcp.pop %v1390
        %v1421 = vrcp.pop %v1392
        %v1422 = vrcp.pop %v1394
        %v1423 = vrcp.pop %v1396
        %v1424 = vrcp.pop %v1398
        %v1425 = vrcp.pop %v1400
        %v1426 = vrcp.pop %v1402
        %v1427 = vrcp.pop %v1404
        %v1428 = vrcp.pop %v1406
        %v1429 = vrcp.pop %v1408
        %v1430 = vrcp.pop %v1410
        %v1431 = vrcp.pop %v1412
        %v1432 = vrcp.pop %v1414
        %v1433 = vrcp.pop %v1416
        %v1434 = vrcp.pop %v1418
        %v1435 = vmul.f32 %v1356, %v1419
        %v1436 = vmul.f32 %v1358, %v1420
        %v1437 = vmul.f32 %v1360, %v1421
        %v1438 = vmul.f32 %v1362, %v1422
        %v1439 = vmul.f32 %v1364, %v1423
        %v1440 = vmul.f32 %v1366, %v1424
        %v1441 = vmul.f32 %v1368, %v1425
        %v1442 = vmul.f32 %v1370, %v1426
        %v1443 = vmul.f32 %v1372, %v1427
        %v1444 = vmul.f32 %v1374, %v1428
        %v1445 = vmul.f32 %v1376, %v1429
        %v1446 = vmul.f32 %v1378, %v1430
        %v1447 = vmul.f32 %v1380, %v1431
        %v1448 = vmul.f32 %v1382, %v1432
        %v1449 = vmul.f32 %v1384, %v1433
        %v1450 = vmul.f32 %v1386, %v1434
        %v1451 = vld [vmem:[%s5] sm:$0xf]
        %v1452 = vld [vmem:[%s5 + $0x4] sm:$0xf]
        %v1455 = vunpack.c.l.b16 %v1451
        %v1456 = vunpack.c.l.b16 %v1452
        %v1457 = vpack.c.b16 %v1456, %v1455
        %v1460 = vsel %vm676, %v1137, 0
        %v1463 = vsel %vm676, %v1138, 0
        %v1466 = vsel %vm676, %v1139, 0
        %v1469 = vsel %vm676, %v1140, 0
        %v1472 = vsel %vm676, %v1141, 0
        %v1475 = vsel %vm676, %v1142, 0
        %v1478 = vsel %vm676, %v1143, 0
        %v1481 = vsel %vm676, %v1144, 0
        %1483 = vmatpush.bf16.msra.mxu0 0
        %1484 = vmatpush.bf16.msra.mxu0 0
        %1485 = vmatpush.bf16.msra.mxu0 0
        %1486 = vmatpush.bf16.msra.mxu0 0
        %1487 = vmatpush.bf16.msra.mxu0 0
        %1488 = vmatpush.bf16.msra.mxu0 0
        %1489 = vmatpush.bf16.msra.mxu0 0
        %1490 = vmatpush.bf16.msra.mxu0 %v1457
        %1491 = vmatmul.bf16.gmra.mxu0 %v1460
        %v1492 = vpop.f32.mrf.mxu0
        %v1493 = vadd.f32 0.0, %v1492
        %v1494 = vpop.f32.mrf.mxu0
        %v1495 = vadd.f32 0.0, %v1494
        %1496 = vmatmul.bf16.gmra.mxu0 %v1463
        %v1497 = vpop.f32.mrf.mxu0
        %v1498 = vadd.f32 0.0, %v1497
        %v1499 = vpop.f32.mrf.mxu0
        %v1500 = vadd.f32 0.0, %v1499
        %1501 = vmatmul.bf16.gmra.mxu0 %v1466
        %v1502 = vpop.f32.mrf.mxu0
        %v1503 = vadd.f32 0.0, %v1502
        %v1504 = vpop.f32.mrf.mxu0
        %v1505 = vadd.f32 0.0, %v1504
        %1506 = vmatmul.bf16.gmra.mxu0 %v1469
        %v1507 = vpop.f32.mrf.mxu0
        %v1508 = vadd.f32 0.0, %v1507
        %v1509 = vpop.f32.mrf.mxu0
        %v1510 = vadd.f32 0.0, %v1509
        %1511 = vmatmul.bf16.gmra.mxu0 %v1472
        %v1512 = vpop.f32.mrf.mxu0
        %v1513 = vadd.f32 0.0, %v1512
        %v1514 = vpop.f32.mrf.mxu0
        %v1515 = vadd.f32 0.0, %v1514
        %1516 = vmatmul.bf16.gmra.mxu0 %v1475
        %v1517 = vpop.f32.mrf.mxu0
        %v1518 = vadd.f32 0.0, %v1517
        %v1519 = vpop.f32.mrf.mxu0
        %v1520 = vadd.f32 0.0, %v1519
        %1521 = vmatmul.bf16.gmra.mxu0 %v1478
        %v1522 = vpop.f32.mrf.mxu0
        %v1523 = vadd.f32 0.0, %v1522
        %v1524 = vpop.f32.mrf.mxu0
        %v1525 = vadd.f32 0.0, %v1524
        %1526 = vmatmul.bf16.gmra.mxu0 %v1481
        %v1527 = vpop.f32.mrf.mxu0
        %v1528 = vadd.f32 0.0, %v1527
        %v1529 = vpop.f32.mrf.mxu0
        %v1530 = vadd.f32 0.0, %v1529
        %1531 = vdwg.mxu0
        %v1532 = vpack.c.bf16 %v1436, %v1435
        %v1533 = vpack.c.bf16 %v1438, %v1437
        %v1534 = vpack.c.bf16 %v1440, %v1439
        %v1535 = vpack.c.bf16 %v1442, %v1441
        %v1536 = vpack.c.bf16 %v1444, %v1443
        %v1537 = vpack.c.bf16 %v1446, %v1445
        %v1538 = vpack.c.bf16 %v1448, %v1447
        %v1539 = vpack.c.bf16 %v1450, %v1449
        %v1540 = vpack.c.bf16 %v1495, %v1493
        %v1541 = vpack.c.bf16 %v1500, %v1498
        %v1542 = vpack.c.bf16 %v1505, %v1503
        %v1543 = vpack.c.bf16 %v1510, %v1508
        %v1544 = vpack.c.bf16 %v1515, %v1513
        %v1545 = vpack.c.bf16 %v1520, %v1518
        %v1546 = vpack.c.bf16 %v1525, %v1523
        %v1547 = vpack.c.bf16 %v1530, %v1528
        %s1548 = scalar_lea.vmem %s1, 16
        %v1549 = vld [vmem:[%s1548] sm:$0xf]
        %v1550 = vld [vmem:[%s1548 + $0x4] sm:$0xf]
        %v1551 = vld [vmem:[%s1548 + $0x8] sm:$0xf]
        %v1552 = vld [vmem:[%s1548 + $0xc] sm:$0xf]
        %v1557 = vunpack.c.l.b16 %v1549
        %v1558 = vunpack.c.l.b16 %v1550
        %v1559 = vunpack.c.l.b16 %v1551
        %v1560 = vunpack.c.l.b16 %v1552
        %v1561 = vpack.c.b16 %v1558, %v1557
        %v1562 = vpack.c.b16 %v1560, %v1559
        %1565 = vmatpush.bf16.msra.mxu0 0
        %1566 = vmatpush.bf16.msra.mxu0 0
        %1567 = vmatpush.bf16.msra.mxu0 0
        %1568 = vmatpush.bf16.msra.mxu0 0
        %1569 = vmatpush.bf16.msra.mxu0 0
        %1570 = vmatpush.bf16.msra.mxu0 0
        %1571 = vmatpush.bf16.msra.mxu0 %v1562
        %1572 = vmatpush.bf16.msra.mxu0 %v1561
        %1573 = vmatmul.bf16.gmra.mxu0 %v540
        %v1574 = vpop.f32.mrf.mxu0
        %v1575 = vadd.f32 0.0, %v1574
        %v1576 = vpop.f32.mrf.mxu0
        %v1577 = vadd.f32 0.0, %v1576
        %1578 = vmatmul.bf16.gmra.mxu0 %v543
        %v1579 = vpop.f32.mrf.mxu0
        %v1580 = vadd.f32 0.0, %v1579
        %v1581 = vpop.f32.mrf.mxu0
        %v1582 = vadd.f32 0.0, %v1581
        %1583 = vmatmul.bf16.gmra.mxu0 %v546
        %v1584 = vpop.f32.mrf.mxu0
        %v1585 = vadd.f32 0.0, %v1584
        %v1586 = vpop.f32.mrf.mxu0
        %v1587 = vadd.f32 0.0, %v1586
        %1588 = vmatmul.bf16.gmra.mxu0 %v549
        %v1589 = vpop.f32.mrf.mxu0
        %v1590 = vadd.f32 0.0, %v1589
        %v1591 = vpop.f32.mrf.mxu0
        %v1592 = vadd.f32 0.0, %v1591
        %1593 = vmatmul.bf16.gmra.mxu0 %v552
        %v1594 = vpop.f32.mrf.mxu0
        %v1595 = vadd.f32 0.0, %v1594
        %v1596 = vpop.f32.mrf.mxu0
        %v1597 = vadd.f32 0.0, %v1596
        %1598 = vmatmul.bf16.gmra.mxu0 %v555
        %v1599 = vpop.f32.mrf.mxu0
        %v1600 = vadd.f32 0.0, %v1599
        %v1601 = vpop.f32.mrf.mxu0
        %v1602 = vadd.f32 0.0, %v1601
        %1603 = vmatmul.bf16.gmra.mxu0 %v558
        %v1604 = vpop.f32.mrf.mxu0
        %v1605 = vadd.f32 0.0, %v1604
        %v1606 = vpop.f32.mrf.mxu0
        %v1607 = vadd.f32 0.0, %v1606
        %1608 = vmatmul.bf16.gmra.mxu0 %v561
        %v1609 = vpop.f32.mrf.mxu0
        %v1610 = vadd.f32 0.0, %v1609
        %v1611 = vpop.f32.mrf.mxu0
        %v1612 = vadd.f32 0.0, %v1611
        %1613 = vdwg.mxu0
        %v1614 = vpack.c.bf16 %v1577, %v1575
        %v1615 = vpack.c.bf16 %v1582, %v1580
        %v1616 = vpack.c.bf16 %v1587, %v1585
        %v1617 = vpack.c.bf16 %v1592, %v1590
        %v1618 = vpack.c.bf16 %v1597, %v1595
        %v1619 = vpack.c.bf16 %v1602, %v1600
        %v1620 = vpack.c.bf16 %v1607, %v1605
        %v1621 = vpack.c.bf16 %v1612, %v1610
        %s1622 = scalar_lea.vmem [#allocation2], 128
        %v1623 = vld [vmem:[%s1622] sm:$0xff]
        %v1624 = vld [vmem:[%s1622 + $0x8] sm:$0xff]
        %v1625 = vld [vmem:[%s1622 + $0x10] sm:$0xff]
        %v1626 = vld [vmem:[%s1622 + $0x18] sm:$0xff]
        %v1627 = vld [vmem:[%s1622 + $0x20] sm:$0xff]
        %v1628 = vld [vmem:[%s1622 + $0x28] sm:$0xff]
        %v1629 = vld [vmem:[%s1622 + $0x30] sm:$0xff]
        %v1630 = vld [vmem:[%s1622 + $0x38] sm:$0xff]
        %v1631 = vld [vmem:[%s1622 + $0x40] sm:$0xff]
        %v1632 = vld [vmem:[%s1622 + $0x48] sm:$0xff]
        %v1633 = vld [vmem:[%s1622 + $0x50] sm:$0xff]
        %v1634 = vld [vmem:[%s1622 + $0x58] sm:$0xff]
        %v1635 = vld [vmem:[%s1622 + $0x60] sm:$0xff]
        %v1636 = vld [vmem:[%s1622 + $0x68] sm:$0xff]
        %v1637 = vld [vmem:[%s1622 + $0x70] sm:$0xff]
        %v1638 = vld [vmem:[%s1622 + $0x78] sm:$0xff]
        %v1640 = vsel %vm538, %v1614, 0
        %v1643 = vsel %vm538, %v1615, 0
        %v1646 = vsel %vm538, %v1616, 0
        %v1649 = vsel %vm538, %v1617, 0
        %v1652 = vsel %vm538, %v1618, 0
        %v1655 = vsel %vm538, %v1619, 0
        %v1658 = vsel %vm538, %v1620, 0
        %v1661 = vsel %vm538, %v1621, 0
        %1663 = vmatpush.bf16.xpose.msra.mxu0 %v561
        %1664 = vmatpush.bf16.xpose.msra.mxu0 %v558
        %1665 = vmatpush.bf16.xpose.msra.mxu0 %v555
        %1666 = vmatpush.bf16.xpose.msra.mxu0 %v552
        %1667 = vmatpush.bf16.xpose.msra.mxu0 %v549
        %1668 = vmatpush.bf16.xpose.msra.mxu0 %v546
        %1669 = vmatpush.bf16.xpose.msra.mxu0 %v543
        %1670 = vmatpush.bf16.xpose.msra.mxu0 %v540
        %1671 = vmatmul.bf16.gmra.mxu0 %v1640
        %v1672 = vpop.f32.mrf.mxu0
        %v1673 = vadd.f32 %v1623, %v1672
        %v1674 = vpop.f32.mrf.mxu0
        %v1675 = vadd.f32 %v1624, %v1674
        %1676 = vmatmul.bf16.gmra.mxu0 %v1643
        %v1677 = vpop.f32.mrf.mxu0
        %v1678 = vadd.f32 %v1625, %v1677
        %v1679 = vpop.f32.mrf.mxu0
        %v1680 = vadd.f32 %v1626, %v1679
        %1681 = vmatmul.bf16.gmra.mxu0 %v1646
        %v1682 = vpop.f32.mrf.mxu0
        %v1683 = vadd.f32 %v1627, %v1682
        %v1684 = vpop.f32.mrf.mxu0
        %v1685 = vadd.f32 %v1628, %v1684
        %1686 = vmatmul.bf16.gmra.mxu0 %v1649
        %v1687 = vpop.f32.mrf.mxu0
        %v1688 = vadd.f32 %v1629, %v1687
        %v1689 = vpop.f32.mrf.mxu0
        %v1690 = vadd.f32 %v1630, %v1689
        %1691 = vmatmul.bf16.gmra.mxu0 %v1652
        %v1692 = vpop.f32.mrf.mxu0
        %v1693 = vadd.f32 %v1631, %v1692
        %v1694 = vpop.f32.mrf.mxu0
        %v1695 = vadd.f32 %v1632, %v1694
        %1696 = vmatmul.bf16.gmra.mxu0 %v1655
        %v1697 = vpop.f32.mrf.mxu0
        %v1698 = vadd.f32 %v1633, %v1697
        %v1699 = vpop.f32.mrf.mxu0
        %v1700 = vadd.f32 %v1634, %v1699
        %1701 = vmatmul.bf16.gmra.mxu0 %v1658
        %v1702 = vpop.f32.mrf.mxu0
        %v1703 = vadd.f32 %v1635, %v1702
        %v1704 = vpop.f32.mrf.mxu0
        %v1705 = vadd.f32 %v1636, %v1704
        %1706 = vmatmul.bf16.gmra.mxu0 %v1661
        %v1707 = vpop.f32.mrf.mxu0
        %v1708 = vadd.f32 %v1637, %v1707
        %v1709 = vpop.f32.mrf.mxu0
        %v1710 = vadd.f32 %v1638, %v1709
        %1711 = vdwg.mxu0
        %1712 = vmax.xlane.f32.xlu0 %v1673
        %v1713 = vpop.xlane.xlu0 %1712
        %1714 = vmax.xlane.f32.xlu0 %v1675
        %v1715 = vpop.xlane.xlu0 %1714
        %1716 = vmax.xlane.f32.xlu0 %v1678
        %v1717 = vpop.xlane.xlu0 %1716
        %1718 = vmax.xlane.f32.xlu0 %v1680
        %v1719 = vpop.xlane.xlu0 %1718
        %1720 = vmax.xlane.f32.xlu0 %v1683
        %v1721 = vpop.xlane.xlu0 %1720
        %1722 = vmax.xlane.f32.xlu0 %v1685
        %v1723 = vpop.xlane.xlu0 %1722
        %1724 = vmax.xlane.f32.xlu0 %v1688
        %v1725 = vpop.xlane.xlu0 %1724
        %1726 = vmax.xlane.f32.xlu0 %v1690
        %v1727 = vpop.xlane.xlu0 %1726
        %1728 = vmax.xlane.f32.xlu0 %v1693
        %v1729 = vpop.xlane.xlu0 %1728
        %1730 = vmax.xlane.f32.xlu0 %v1695
        %v1731 = vpop.xlane.xlu0 %1730
        %1732 = vmax.xlane.f32.xlu0 %v1698
        %v1733 = vpop.xlane.xlu0 %1732
        %1734 = vmax.xlane.f32.xlu0 %v1700
        %v1735 = vpop.xlane.xlu0 %1734
        %1736 = vmax.xlane.f32.xlu0 %v1703
        %v1737 = vpop.xlane.xlu0 %1736
        %1738 = vmax.xlane.f32.xlu0 %v1705
        %v1739 = vpop.xlane.xlu0 %1738
        %1740 = vmax.xlane.f32.xlu0 %v1708
        %v1741 = vpop.xlane.xlu0 %1740
        %1742 = vmax.xlane.f32.xlu0 %v1710
        %v1743 = vpop.xlane.xlu0 %1742
        %v1744 = vsub.f32 %v1673, %v1713
        %v1745 = vsub.f32 %v1675, %v1715
        %v1746 = vsub.f32 %v1678, %v1717
        %v1747 = vsub.f32 %v1680, %v1719
        %v1748 = vsub.f32 %v1683, %v1721
        %v1749 = vsub.f32 %v1685, %v1723
        %v1750 = vsub.f32 %v1688, %v1725
        %v1751 = vsub.f32 %v1690, %v1727
        %v1752 = vsub.f32 %v1693, %v1729
        %v1753 = vsub.f32 %v1695, %v1731
        %v1754 = vsub.f32 %v1698, %v1733
        %v1755 = vsub.f32 %v1700, %v1735
        %v1756 = vsub.f32 %v1703, %v1737
        %v1757 = vsub.f32 %v1705, %v1739
        %v1758 = vsub.f32 %v1708, %v1741
        %v1759 = vsub.f32 %v1710, %v1743
        %v1760 = vmul.f32 %v1744, 1.442695
        %v1761 = vpow.pop %v1760
        %v1762 = vmul.f32 %v1745, 1.442695
        %v1763 = vpow.pop %v1762
        %v1764 = vmul.f32 %v1746, 1.442695
        %v1765 = vpow.pop %v1764
        %v1766 = vmul.f32 %v1747, 1.442695
        %v1767 = vpow.pop %v1766
        %v1768 = vmul.f32 %v1748, 1.442695
        %v1769 = vpow.pop %v1768
        %v1770 = vmul.f32 %v1749, 1.442695
        %v1771 = vpow.pop %v1770
        %v1772 = vmul.f32 %v1750, 1.442695
        %v1773 = vpow.pop %v1772
        %v1774 = vmul.f32 %v1751, 1.442695
        %v1775 = vpow.pop %v1774
        %v1776 = vmul.f32 %v1752, 1.442695
        %v1777 = vpow.pop %v1776
        %v1778 = vmul.f32 %v1753, 1.442695
        %v1779 = vpow.pop %v1778
        %v1780 = vmul.f32 %v1754, 1.442695
        %v1781 = vpow.pop %v1780
        %v1782 = vmul.f32 %v1755, 1.442695
        %v1783 = vpow.pop %v1782
        %v1784 = vmul.f32 %v1756, 1.442695
        %v1785 = vpow.pop %v1784
        %v1786 = vmul.f32 %v1757, 1.442695
        %v1787 = vpow.pop %v1786
        %v1788 = vmul.f32 %v1758, 1.442695
        %v1789 = vpow.pop %v1788
        %v1790 = vmul.f32 %v1759, 1.442695
        %v1791 = vpow.pop %v1790
        %1792 = vadd.xlane.f32.xlu0 %v1761
        %v1793 = vpop.xlane.xlu0 %1792
        %1794 = vadd.xlane.f32.xlu0 %v1763
        %v1795 = vpop.xlane.xlu0 %1794
        %1796 = vadd.xlane.f32.xlu0 %v1765
        %v1797 = vpop.xlane.xlu0 %1796
        %1798 = vadd.xlane.f32.xlu0 %v1767
        %v1799 = vpop.xlane.xlu0 %1798
        %1800 = vadd.xlane.f32.xlu0 %v1769
        %v1801 = vpop.xlane.xlu0 %1800
        %1802 = vadd.xlane.f32.xlu0 %v1771
        %v1803 = vpop.xlane.xlu0 %1802
        %1804 = vadd.xlane.f32.xlu0 %v1773
        %v1805 = vpop.xlane.xlu0 %1804
        %1806 = vadd.xlane.f32.xlu0 %v1775
        %v1807 = vpop.xlane.xlu0 %1806
        %1808 = vadd.xlane.f32.xlu0 %v1777
        %v1809 = vpop.xlane.xlu0 %1808
        %1810 = vadd.xlane.f32.xlu0 %v1779
        %v1811 = vpop.xlane.xlu0 %1810
        %1812 = vadd.xlane.f32.xlu0 %v1781
        %v1813 = vpop.xlane.xlu0 %1812
        %1814 = vadd.xlane.f32.xlu0 %v1783
        %v1815 = vpop.xlane.xlu0 %1814
        %1816 = vadd.xlane.f32.xlu0 %v1785
        %v1817 = vpop.xlane.xlu0 %1816
        %1818 = vadd.xlane.f32.xlu0 %v1787
        %v1819 = vpop.xlane.xlu0 %1818
        %1820 = vadd.xlane.f32.xlu0 %v1789
        %v1821 = vpop.xlane.xlu0 %1820
        %1822 = vadd.xlane.f32.xlu0 %v1791
        %v1823 = vpop.xlane.xlu0 %1822
        %v1824 = vrcp.pop %v1793
        %v1825 = vrcp.pop %v1795
        %v1826 = vrcp.pop %v1797
        %v1827 = vrcp.pop %v1799
        %v1828 = vrcp.pop %v1801
        %v1829 = vrcp.pop %v1803
        %v1830 = vrcp.pop %v1805
        %v1831 = vrcp.pop %v1807
        %v1832 = vrcp.pop %v1809
        %v1833 = vrcp.pop %v1811
        %v1834 = vrcp.pop %v1813
        %v1835 = vrcp.pop %v1815
        %v1836 = vrcp.pop %v1817
        %v1837 = vrcp.pop %v1819
        %v1838 = vrcp.pop %v1821
        %v1839 = vrcp.pop %v1823
        %v1840 = vmul.f32 %v1761, %v1824
        %v1841 = vmul.f32 %v1763, %v1825
        %v1842 = vmul.f32 %v1765, %v1826
        %v1843 = vmul.f32 %v1767, %v1827
        %v1844 = vmul.f32 %v1769, %v1828
        %v1845 = vmul.f32 %v1771, %v1829
        %v1846 = vmul.f32 %v1773, %v1830
        %v1847 = vmul.f32 %v1775, %v1831
        %v1848 = vmul.f32 %v1777, %v1832
        %v1849 = vmul.f32 %v1779, %v1833
        %v1850 = vmul.f32 %v1781, %v1834
        %v1851 = vmul.f32 %v1783, %v1835
        %v1852 = vmul.f32 %v1785, %v1836
        %v1853 = vmul.f32 %v1787, %v1837
        %v1854 = vmul.f32 %v1789, %v1838
        %v1855 = vmul.f32 %v1791, %v1839
        %s1856 = scalar_lea.vmem %s5, 8
        %v1857 = vld [vmem:[%s1856] sm:$0xf]
        %v1858 = vld [vmem:[%s1856 + $0x4] sm:$0xf]
        %v1861 = vunpack.c.l.b16 %v1857
        %v1862 = vunpack.c.l.b16 %v1858
        %v1863 = vpack.c.b16 %v1862, %v1861
        %1865 = vmatpush.bf16.msra.mxu0 0
        %1866 = vmatpush.bf16.msra.mxu0 0
        %1867 = vmatpush.bf16.msra.mxu0 0
        %1868 = vmatpush.bf16.msra.mxu0 0
        %1869 = vmatpush.bf16.msra.mxu0 0
        %1870 = vmatpush.bf16.msra.mxu0 0
        %1871 = vmatpush.bf16.msra.mxu0 0
        %1872 = vmatpush.bf16.msra.mxu0 %v1863
        %1873 = vmatmul.bf16.gmra.mxu0 %v1460
        %v1874 = vpop.f32.mrf.mxu0
        %v1875 = vadd.f32 0.0, %v1874
        %v1876 = vpop.f32.mrf.mxu0
        %v1877 = vadd.f32 0.0, %v1876
        %1878 = vmatmul.bf16.gmra.mxu0 %v1463
        %v1879 = vpop.f32.mrf.mxu0
        %v1880 = vadd.f32 0.0, %v1879
        %v1881 = vpop.f32.mrf.mxu0
        %v1882 = vadd.f32 0.0, %v1881
        %1883 = vmatmul.bf16.gmra.mxu0 %v1466
        %v1884 = vpop.f32.mrf.mxu0
        %v1885 = vadd.f32 0.0, %v1884
        %v1886 = vpop.f32.mrf.mxu0
        %v1887 = vadd.f32 0.0, %v1886
        %1888 = vmatmul.bf16.gmra.mxu0 %v1469
        %v1889 = vpop.f32.mrf.mxu0
        %v1890 = vadd.f32 0.0, %v1889
        %v1891 = vpop.f32.mrf.mxu0
        %v1892 = vadd.f32 0.0, %v1891
        %1893 = vmatmul.bf16.gmra.mxu0 %v1472
        %v1894 = vpop.f32.mrf.mxu0
        %v1895 = vadd.f32 0.0, %v1894
        %v1896 = vpop.f32.mrf.mxu0
        %v1897 = vadd.f32 0.0, %v1896
        %1898 = vmatmul.bf16.gmra.mxu0 %v1475
        %v1899 = vpop.f32.mrf.mxu0
        %v1900 = vadd.f32 0.0, %v1899
        %v1901 = vpop.f32.mrf.mxu0
        %v1902 = vadd.f32 0.0, %v1901
        %1903 = vmatmul.bf16.gmra.mxu0 %v1478
        %v1904 = vpop.f32.mrf.mxu0
        %v1905 = vadd.f32 0.0, %v1904
        %v1906 = vpop.f32.mrf.mxu0
        %v1907 = vadd.f32 0.0, %v1906
        %1908 = vmatmul.bf16.gmra.mxu0 %v1481
        %v1909 = vpop.f32.mrf.mxu0
        %v1910 = vadd.f32 0.0, %v1909
        %v1911 = vpop.f32.mrf.mxu0
        %v1912 = vadd.f32 0.0, %v1911
        %1913 = vdwg.mxu0
        %v1914 = vpack.c.bf16 %v1841, %v1840
        %v1915 = vpack.c.bf16 %v1843, %v1842
        %v1916 = vpack.c.bf16 %v1845, %v1844
        %v1917 = vpack.c.bf16 %v1847, %v1846
        %v1918 = vpack.c.bf16 %v1849, %v1848
        %v1919 = vpack.c.bf16 %v1851, %v1850
        %v1920 = vpack.c.bf16 %v1853, %v1852
        %v1921 = vpack.c.bf16 %v1855, %v1854
        %v1922 = vpack.c.bf16 %v1877, %v1875
        %v1923 = vpack.c.bf16 %v1882, %v1880
        %v1924 = vpack.c.bf16 %v1887, %v1885
        %v1925 = vpack.c.bf16 %v1892, %v1890
        %v1926 = vpack.c.bf16 %v1897, %v1895
        %v1927 = vpack.c.bf16 %v1902, %v1900
        %v1928 = vpack.c.bf16 %v1907, %v1905
        %v1929 = vpack.c.bf16 %v1912, %v1910
        %1930 = vmatpush.bf16.msra.mxu0 %v1929
        %1931 = vmatpush.bf16.msra.mxu0 %v1928
        %1932 = vmatpush.bf16.msra.mxu0 %v1927
        %1933 = vmatpush.bf16.msra.mxu0 %v1926
        %1934 = vmatpush.bf16.msra.mxu0 %v1925
        %1935 = vmatpush.bf16.msra.mxu0 %v1924
        %1936 = vmatpush.bf16.msra.mxu0 %v1923
        %1937 = vmatpush.bf16.msra.mxu0 %v1922
        %1938 = vmatmul.bf16.gmra.mxu0 %v1914
        %v1939 = vpop.f32.mrf.mxu0
        %v1940 = vadd.f32 0.0, %v1939
        %v1941 = vpop.f32.mrf.mxu0
        %v1942 = vadd.f32 0.0, %v1941
        %1943 = vmatmul.bf16.gmra.mxu0 %v1915
        %v1944 = vpop.f32.mrf.mxu0
        %v1945 = vadd.f32 0.0, %v1944
        %v1946 = vpop.f32.mrf.mxu0
        %v1947 = vadd.f32 0.0, %v1946
        %1948 = vmatmul.bf16.gmra.mxu0 %v1916
        %v1949 = vpop.f32.mrf.mxu0
        %v1950 = vadd.f32 0.0, %v1949
        %v1951 = vpop.f32.mrf.mxu0
        %v1952 = vadd.f32 0.0, %v1951
        %1953 = vmatmul.bf16.gmra.mxu0 %v1917
        %v1954 = vpop.f32.mrf.mxu0
        %v1955 = vadd.f32 0.0, %v1954
        %v1956 = vpop.f32.mrf.mxu0
        %v1957 = vadd.f32 0.0, %v1956
        %1958 = vmatmul.bf16.gmra.mxu0 %v1918
        %v1959 = vpop.f32.mrf.mxu0
        %v1960 = vadd.f32 0.0, %v1959
        %v1961 = vpop.f32.mrf.mxu0
        %v1962 = vadd.f32 0.0, %v1961
        %1963 = vmatmul.bf16.gmra.mxu0 %v1919
        %v1964 = vpop.f32.mrf.mxu0
        %v1965 = vadd.f32 0.0, %v1964
        %v1966 = vpop.f32.mrf.mxu0
        %v1967 = vadd.f32 0.0, %v1966
        %1968 = vmatmul.bf16.gmra.mxu0 %v1920
        %v1969 = vpop.f32.mrf.mxu0
        %v1970 = vadd.f32 0.0, %v1969
        %v1971 = vpop.f32.mrf.mxu0
        %v1972 = vadd.f32 0.0, %v1971
        %1973 = vmatmul.bf16.gmra.mxu0 %v1921
        %v1974 = vpop.f32.mrf.mxu0
        %v1975 = vadd.f32 0.0, %v1974
        %v1976 = vpop.f32.mrf.mxu0
        %v1977 = vadd.f32 0.0, %v1976
        %1978 = vdwg.mxu0
        %1979 = vmatpush.bf16.msra.mxu0 %v1547
        %1980 = vmatpush.bf16.msra.mxu0 %v1546
        %1981 = vmatpush.bf16.msra.mxu0 %v1545
        %1982 = vmatpush.bf16.msra.mxu0 %v1544
        %1983 = vmatpush.bf16.msra.mxu0 %v1543
        %1984 = vmatpush.bf16.msra.mxu0 %v1542
        %1985 = vmatpush.bf16.msra.mxu0 %v1541
        %1986 = vmatpush.bf16.msra.mxu0 %v1540
        %1987 = vmatmul.bf16.gmra.mxu0 %v1532
        %v1988 = vpop.f32.mrf.mxu0
        %v1989 = vadd.f32 %v1940, %v1988
        %v1990 = vpop.f32.mrf.mxu0
        %v1991 = vadd.f32 %v1942, %v1990
        %1992 = vmatmul.bf16.gmra.mxu0 %v1533
        %v1993 = vpop.f32.mrf.mxu0
        %v1994 = vadd.f32 %v1945, %v1993
        %v1995 = vpop.f32.mrf.mxu0
        %v1996 = vadd.f32 %v1947, %v1995
        %1997 = vmatmul.bf16.gmra.mxu0 %v1534
        %v1998 = vpop.f32.mrf.mxu0
        %v1999 = vadd.f32 %v1950, %v1998
        %v2000 = vpop.f32.mrf.mxu0
        %v2001 = vadd.f32 %v1952, %v2000
        %2002 = vmatmul.bf16.gmra.mxu0 %v1535
        %v2003 = vpop.f32.mrf.mxu0
        %v2004 = vadd.f32 %v1955, %v2003
        %v2005 = vpop.f32.mrf.mxu0
        %v2006 = vadd.f32 %v1957, %v2005
        %2007 = vmatmul.bf16.gmra.mxu0 %v1536
        %v2008 = vpop.f32.mrf.mxu0
        %v2009 = vadd.f32 %v1960, %v2008
        %v2010 = vpop.f32.mrf.mxu0
        %v2011 = vadd.f32 %v1962, %v2010
        %2012 = vmatmul.bf16.gmra.mxu0 %v1537
        %v2013 = vpop.f32.mrf.mxu0
        %v2014 = vadd.f32 %v1965, %v2013
        %v2015 = vpop.f32.mrf.mxu0
        %v2016 = vadd.f32 %v1967, %v2015
        %2017 = vmatmul.bf16.gmra.mxu0 %v1538
        %v2018 = vpop.f32.mrf.mxu0
        %v2019 = vadd.f32 %v1970, %v2018
        %v2020 = vpop.f32.mrf.mxu0
        %v2021 = vadd.f32 %v1972, %v2020
        %2022 = vmatmul.bf16.gmra.mxu0 %v1539
        %v2023 = vpop.f32.mrf.mxu0
        %v2024 = vadd.f32 %v1975, %v2023
        %v2025 = vpop.f32.mrf.mxu0
        %v2026 = vadd.f32 %v1977, %v2025
        %2027 = vdwg.mxu0
        %s2028 = scalar_lea.vmem %s1, 32
        %v2029 = vld [vmem:[%s2028] sm:$0xf]
        %v2030 = vld [vmem:[%s2028 + $0x4] sm:$0xf]
        %v2031 = vld [vmem:[%s2028 + $0x8] sm:$0xf]
        %v2032 = vld [vmem:[%s2028 + $0xc] sm:$0xf]
        %v2037 = vunpack.c.l.b16 %v2029
        %v2038 = vunpack.c.l.b16 %v2030
        %v2039 = vunpack.c.l.b16 %v2031
        %v2040 = vunpack.c.l.b16 %v2032
        %v2041 = vpack.c.b16 %v2038, %v2037
        %v2042 = vpack.c.b16 %v2040, %v2039
        %2045 = vmatpush.bf16.msra.mxu0 0
        %2046 = vmatpush.bf16.msra.mxu0 0
        %2047 = vmatpush.bf16.msra.mxu0 0
        %2048 = vmatpush.bf16.msra.mxu0 0
        %2049 = vmatpush.bf16.msra.mxu0 0
        %2050 = vmatpush.bf16.msra.mxu0 0
        %2051 = vmatpush.bf16.msra.mxu0 %v2042
        %2052 = vmatpush.bf16.msra.mxu0 %v2041
        %2053 = vmatmul.bf16.gmra.mxu0 %v540
        %v2054 = vpop.f32.mrf.mxu0
        %v2055 = vadd.f32 0.0, %v2054
        %v2056 = vpop.f32.mrf.mxu0
        %v2057 = vadd.f32 0.0, %v2056
        %2058 = vmatmul.bf16.gmra.mxu0 %v543
        %v2059 = vpop.f32.mrf.mxu0
        %v2060 = vadd.f32 0.0, %v2059
        %v2061 = vpop.f32.mrf.mxu0
        %v2062 = vadd.f32 0.0, %v2061
        %2063 = vmatmul.bf16.gmra.mxu0 %v546
        %v2064 = vpop.f32.mrf.mxu0
        %v2065 = vadd.f32 0.0, %v2064
        %v2066 = vpop.f32.mrf.mxu0
        %v2067 = vadd.f32 0.0, %v2066
        %2068 = vmatmul.bf16.gmra.mxu0 %v549
        %v2069 = vpop.f32.mrf.mxu0
        %v2070 = vadd.f32 0.0, %v2069
        %v2071 = vpop.f32.mrf.mxu0
        %v2072 = vadd.f32 0.0, %v2071
        %2073 = vmatmul.bf16.gmra.mxu0 %v552
        %v2074 = vpop.f32.mrf.mxu0
        %v2075 = vadd.f32 0.0, %v2074
        %v2076 = vpop.f32.mrf.mxu0
        %v2077 = vadd.f32 0.0, %v2076
        %2078 = vmatmul.bf16.gmra.mxu0 %v555
        %v2079 = vpop.f32.mrf.mxu0
        %v2080 = vadd.f32 0.0, %v2079
        %v2081 = vpop.f32.mrf.mxu0
        %v2082 = vadd.f32 0.0, %v2081
        %2083 = vmatmul.bf16.gmra.mxu0 %v558
        %v2084 = vpop.f32.mrf.mxu0
        %v2085 = vadd.f32 0.0, %v2084
        %v2086 = vpop.f32.mrf.mxu0
        %v2087 = vadd.f32 0.0, %v2086
        %2088 = vmatmul.bf16.gmra.mxu0 %v561
        %v2089 = vpop.f32.mrf.mxu0
        %v2090 = vadd.f32 0.0, %v2089
        %v2091 = vpop.f32.mrf.mxu0
        %v2092 = vadd.f32 0.0, %v2091
        %2093 = vdwg.mxu0
        %v2094 = vpack.c.bf16 %v2057, %v2055
        %v2095 = vpack.c.bf16 %v2062, %v2060
        %v2096 = vpack.c.bf16 %v2067, %v2065
        %v2097 = vpack.c.bf16 %v2072, %v2070
        %v2098 = vpack.c.bf16 %v2077, %v2075
        %v2099 = vpack.c.bf16 %v2082, %v2080
        %v2100 = vpack.c.bf16 %v2087, %v2085
        %v2101 = vpack.c.bf16 %v2092, %v2090
        %s2102 = scalar_lea.vmem [#allocation2], 256
        %v2103 = vld [vmem:[%s2102] sm:$0xff]
        %v2104 = vld [vmem:[%s2102 + $0x8] sm:$0xff]
        %v2105 = vld [vmem:[%s2102 + $0x10] sm:$0xff]
        %v2106 = vld [vmem:[%s2102 + $0x18] sm:$0xff]
        %v2107 = vld [vmem:[%s2102 + $0x20] sm:$0xff]
        %v2108 = vld [vmem:[%s2102 + $0x28] sm:$0xff]
        %v2109 = vld [vmem:[%s2102 + $0x30] sm:$0xff]
        %v2110 = vld [vmem:[%s2102 + $0x38] sm:$0xff]
        %v2111 = vld [vmem:[%s2102 + $0x40] sm:$0xff]
        %v2112 = vld [vmem:[%s2102 + $0x48] sm:$0xff]
        %v2113 = vld [vmem:[%s2102 + $0x50] sm:$0xff]
        %v2114 = vld [vmem:[%s2102 + $0x58] sm:$0xff]
        %v2115 = vld [vmem:[%s2102 + $0x60] sm:$0xff]
        %v2116 = vld [vmem:[%s2102 + $0x68] sm:$0xff]
        %v2117 = vld [vmem:[%s2102 + $0x70] sm:$0xff]
        %v2118 = vld [vmem:[%s2102 + $0x78] sm:$0xff]
        %v2120 = vsel %vm538, %v2094, 0
        %v2123 = vsel %vm538, %v2095, 0
        %v2126 = vsel %vm538, %v2096, 0
        %v2129 = vsel %vm538, %v2097, 0
        %v2132 = vsel %vm538, %v2098, 0
        %v2135 = vsel %vm538, %v2099, 0
        %v2138 = vsel %vm538, %v2100, 0
        %v2141 = vsel %vm538, %v2101, 0
        %2143 = vmatpush.bf16.xpose.msra.mxu0 %v561
        %2144 = vmatpush.bf16.xpose.msra.mxu0 %v558
        %2145 = vmatpush.bf16.xpose.msra.mxu0 %v555
        %2146 = vmatpush.bf16.xpose.msra.mxu0 %v552
        %2147 = vmatpush.bf16.xpose.msra.mxu0 %v549
        %2148 = vmatpush.bf16.xpose.msra.mxu0 %v546
        %2149 = vmatpush.bf16.xpose.msra.mxu0 %v543
        %2150 = vmatpush.bf16.xpose.msra.mxu0 %v540
        %2151 = vmatmul.bf16.gmra.mxu0 %v2120
        %v2152 = vpop.f32.mrf.mxu0
        %v2153 = vadd.f32 %v2103, %v2152
        %v2154 = vpop.f32.mrf.mxu0
        %v2155 = vadd.f32 %v2104, %v2154
        %2156 = vmatmul.bf16.gmra.mxu0 %v2123
        %v2157 = vpop.f32.mrf.mxu0
        %v2158 = vadd.f32 %v2105, %v2157
        %v2159 = vpop.f32.mrf.mxu0
        %v2160 = vadd.f32 %v2106, %v2159
        %2161 = vmatmul.bf16.gmra.mxu0 %v2126
        %v2162 = vpop.f32.mrf.mxu0
        %v2163 = vadd.f32 %v2107, %v2162
        %v2164 = vpop.f32.mrf.mxu0
        %v2165 = vadd.f32 %v2108, %v2164
        %2166 = vmatmul.bf16.gmra.mxu0 %v2129
        %v2167 = vpop.f32.mrf.mxu0
        %v2168 = vadd.f32 %v2109, %v2167
        %v2169 = vpop.f32.mrf.mxu0
        %v2170 = vadd.f32 %v2110, %v2169
        %2171 = vmatmul.bf16.gmra.mxu0 %v2132
        %v2172 = vpop.f32.mrf.mxu0
        %v2173 = vadd.f32 %v2111, %v2172
        %v2174 = vpop.f32.mrf.mxu0
        %v2175 = vadd.f32 %v2112, %v2174
        %2176 = vmatmul.bf16.gmra.mxu0 %v2135
        %v2177 = vpop.f32.mrf.mxu0
        %v2178 = vadd.f32 %v2113, %v2177
        %v2179 = vpop.f32.mrf.mxu0
        %v2180 = vadd.f32 %v2114, %v2179
        %2181 = vmatmul.bf16.gmra.mxu0 %v2138
        %v2182 = vpop.f32.mrf.mxu0
        %v2183 = vadd.f32 %v2115, %v2182
        %v2184 = vpop.f32.mrf.mxu0
        %v2185 = vadd.f32 %v2116, %v2184
        %2186 = vmatmul.bf16.gmra.mxu0 %v2141
        %v2187 = vpop.f32.mrf.mxu0
        %v2188 = vadd.f32 %v2117, %v2187
        %v2189 = vpop.f32.mrf.mxu0
        %v2190 = vadd.f32 %v2118, %v2189
        %2191 = vdwg.mxu0
        %2192 = vmax.xlane.f32.xlu0 %v2153
        %v2193 = vpop.xlane.xlu0 %2192
        %2194 = vmax.xlane.f32.xlu0 %v2155
        %v2195 = vpop.xlane.xlu0 %2194
        %2196 = vmax.xlane.f32.xlu0 %v2158
        %v2197 = vpop.xlane.xlu0 %2196
        %2198 = vmax.xlane.f32.xlu0 %v2160
        %v2199 = vpop.xlane.xlu0 %2198
        %2200 = vmax.xlane.f32.xlu0 %v2163
        %v2201 = vpop.xlane.xlu0 %2200
        %2202 = vmax.xlane.f32.xlu0 %v2165
        %v2203 = vpop.xlane.xlu0 %2202
        %2204 = vmax.xlane.f32.xlu0 %v2168
        %v2205 = vpop.xlane.xlu0 %2204
        %2206 = vmax.xlane.f32.xlu0 %v2170
        %v2207 = vpop.xlane.xlu0 %2206
        %2208 = vmax.xlane.f32.xlu0 %v2173
        %v2209 = vpop.xlane.xlu0 %2208
        %2210 = vmax.xlane.f32.xlu0 %v2175
        %v2211 = vpop.xlane.xlu0 %2210
        %2212 = vmax.xlane.f32.xlu0 %v2178
        %v2213 = vpop.xlane.xlu0 %2212
        %2214 = vmax.xlane.f32.xlu0 %v2180
        %v2215 = vpop.xlane.xlu0 %2214
        %2216 = vmax.xlane.f32.xlu0 %v2183
        %v2217 = vpop.xlane.xlu0 %2216
        %2218 = vmax.xlane.f32.xlu0 %v2185
        %v2219 = vpop.xlane.xlu0 %2218
        %2220 = vmax.xlane.f32.xlu0 %v2188
        %v2221 = vpop.xlane.xlu0 %2220
        %2222 = vmax.xlane.f32.xlu0 %v2190
        %v2223 = vpop.xlane.xlu0 %2222
        %v2224 = vsub.f32 %v2153, %v2193
        %v2225 = vsub.f32 %v2155, %v2195
        %v2226 = vsub.f32 %v2158, %v2197
        %v2227 = vsub.f32 %v2160, %v2199
        %v2228 = vsub.f32 %v2163, %v2201
        %v2229 = vsub.f32 %v2165, %v2203
        %v2230 = vsub.f32 %v2168, %v2205
        %v2231 = vsub.f32 %v2170, %v2207
        %v2232 = vsub.f32 %v2173, %v2209
        %v2233 = vsub.f32 %v2175, %v2211
        %v2234 = vsub.f32 %v2178, %v2213
        %v2235 = vsub.f32 %v2180, %v2215
        %v2236 = vsub.f32 %v2183, %v2217
        %v2237 = vsub.f32 %v2185, %v2219
        %v2238 = vsub.f32 %v2188, %v2221
        %v2239 = vsub.f32 %v2190, %v2223
        %v2240 = vmul.f32 %v2224, 1.442695
        %v2241 = vpow.pop %v2240
        %v2242 = vmul.f32 %v2225, 1.442695
        %v2243 = vpow.pop %v2242
        %v2244 = vmul.f32 %v2226, 1.442695
        %v2245 = vpow.pop %v2244
        %v2246 = vmul.f32 %v2227, 1.442695
        %v2247 = vpow.pop %v2246
        %v2248 = vmul.f32 %v2228, 1.442695
        %v2249 = vpow.pop %v2248
        %v2250 = vmul.f32 %v2229, 1.442695
        %v2251 = vpow.pop %v2250
        %v2252 = vmul.f32 %v2230, 1.442695
        %v2253 = vpow.pop %v2252
        %v2254 = vmul.f32 %v2231, 1.442695
        %v2255 = vpow.pop %v2254
        %v2256 = vmul.f32 %v2232, 1.442695
        %v2257 = vpow.pop %v2256
        %v2258 = vmul.f32 %v2233, 1.442695
        %v2259 = vpow.pop %v2258
        %v2260 = vmul.f32 %v2234, 1.442695
        %v2261 = vpow.pop %v2260
        %v2262 = vmul.f32 %v2235, 1.442695
        %v2263 = vpow.pop %v2262
        %v2264 = vmul.f32 %v2236, 1.442695
        %v2265 = vpow.pop %v2264
        %v2266 = vmul.f32 %v2237, 1.442695
        %v2267 = vpow.pop %v2266
        %v2268 = vmul.f32 %v2238, 1.442695
        %v2269 = vpow.pop %v2268
        %v2270 = vmul.f32 %v2239, 1.442695
        %v2271 = vpow.pop %v2270
        %2272 = vadd.xlane.f32.xlu0 %v2241
        %v2273 = vpop.xlane.xlu0 %2272
        %2274 = vadd.xlane.f32.xlu0 %v2243
        %v2275 = vpop.xlane.xlu0 %2274
        %2276 = vadd.xlane.f32.xlu0 %v2245
        %v2277 = vpop.xlane.xlu0 %2276
        %2278 = vadd.xlane.f32.xlu0 %v2247
        %v2279 = vpop.xlane.xlu0 %2278
        %2280 = vadd.xlane.f32.xlu0 %v2249
        %v2281 = vpop.xlane.xlu0 %2280
        %2282 = vadd.xlane.f32.xlu0 %v2251
        %v2283 = vpop.xlane.xlu0 %2282
        %2284 = vadd.xlane.f32.xlu0 %v2253
        %v2285 = vpop.xlane.xlu0 %2284
        %2286 = vadd.xlane.f32.xlu0 %v2255
        %v2287 = vpop.xlane.xlu0 %2286
        %2288 = vadd.xlane.f32.xlu0 %v2257
        %v2289 = vpop.xlane.xlu0 %2288
        %2290 = vadd.xlane.f32.xlu0 %v2259
        %v2291 = vpop.xlane.xlu0 %2290
        %2292 = vadd.xlane.f32.xlu0 %v2261
        %v2293 = vpop.xlane.xlu0 %2292
        %2294 = vadd.xlane.f32.xlu0 %v2263
        %v2295 = vpop.xlane.xlu0 %2294
        %2296 = vadd.xlane.f32.xlu0 %v2265
        %v2297 = vpop.xlane.xlu0 %2296
        %2298 = vadd.xlane.f32.xlu0 %v2267
        %v2299 = vpop.xlane.xlu0 %2298
        %2300 = vadd.xlane.f32.xlu0 %v2269
        %v2301 = vpop.xlane.xlu0 %2300
        %2302 = vadd.xlane.f32.xlu0 %v2271
        %v2303 = vpop.xlane.xlu0 %2302
        %v2304 = vrcp.pop %v2273
        %v2305 = vrcp.pop %v2275
        %v2306 = vrcp.pop %v2277
        %v2307 = vrcp.pop %v2279
        %v2308 = vrcp.pop %v2281
        %v2309 = vrcp.pop %v2283
        %v2310 = vrcp.pop %v2285
        %v2311 = vrcp.pop %v2287
        %v2312 = vrcp.pop %v2289
        %v2313 = vrcp.pop %v2291
        %v2314 = vrcp.pop %v2293
        %v2315 = vrcp.pop %v2295
        %v2316 = vrcp.pop %v2297
        %v2317 = vrcp.pop %v2299
        %v2318 = vrcp.pop %v2301
        %v2319 = vrcp.pop %v2303
        %v2320 = vmul.f32 %v2241, %v2304
        %v2321 = vmul.f32 %v2243, %v2305
        %v2322 = vmul.f32 %v2245, %v2306
        %v2323 = vmul.f32 %v2247, %v2307
        %v2324 = vmul.f32 %v2249, %v2308
        %v2325 = vmul.f32 %v2251, %v2309
        %v2326 = vmul.f32 %v2253, %v2310
        %v2327 = vmul.f32 %v2255, %v2311
        %v2328 = vmul.f32 %v2257, %v2312
        %v2329 = vmul.f32 %v2259, %v2313
        %v2330 = vmul.f32 %v2261, %v2314
        %v2331 = vmul.f32 %v2263, %v2315
        %v2332 = vmul.f32 %v2265, %v2316
        %v2333 = vmul.f32 %v2267, %v2317
        %v2334 = vmul.f32 %v2269, %v2318
        %v2335 = vmul.f32 %v2271, %v2319
        %s2336 = scalar_lea.vmem %s5, 16
        %v2337 = vld [vmem:[%s2336] sm:$0xf]
        %v2338 = vld [vmem:[%s2336 + $0x4] sm:$0xf]
        %v2341 = vunpack.c.l.b16 %v2337
        %v2342 = vunpack.c.l.b16 %v2338
        %v2343 = vpack.c.b16 %v2342, %v2341
        %2345 = vmatpush.bf16.msra.mxu0 0
        %2346 = vmatpush.bf16.msra.mxu0 0
        %2347 = vmatpush.bf16.msra.mxu0 0
        %2348 = vmatpush.bf16.msra.mxu0 0
        %2349 = vmatpush.bf16.msra.mxu0 0
        %2350 = vmatpush.bf16.msra.mxu0 0
        %2351 = vmatpush.bf16.msra.mxu0 0
        %2352 = vmatpush.bf16.msra.mxu0 %v2343
        %2353 = vmatmul.bf16.gmra.mxu0 %v1460
        %v2354 = vpop.f32.mrf.mxu0
        %v2355 = vadd.f32 0.0, %v2354
        %v2356 = vpop.f32.mrf.mxu0
        %v2357 = vadd.f32 0.0, %v2356
        %2358 = vmatmul.bf16.gmra.mxu0 %v1463
        %v2359 = vpop.f32.mrf.mxu0
        %v2360 = vadd.f32 0.0, %v2359
        %v2361 = vpop.f32.mrf.mxu0
        %v2362 = vadd.f32 0.0, %v2361
        %2363 = vmatmul.bf16.gmra.mxu0 %v1466
        %v2364 = vpop.f32.mrf.mxu0
        %v2365 = vadd.f32 0.0, %v2364
        %v2366 = vpop.f32.mrf.mxu0
        %v2367 = vadd.f32 0.0, %v2366
        %2368 = vmatmul.bf16.gmra.mxu0 %v1469
        %v2369 = vpop.f32.mrf.mxu0
        %v2370 = vadd.f32 0.0, %v2369
        %v2371 = vpop.f32.mrf.mxu0
        %v2372 = vadd.f32 0.0, %v2371
        %2373 = vmatmul.bf16.gmra.mxu0 %v1472
        %v2374 = vpop.f32.mrf.mxu0
        %v2375 = vadd.f32 0.0, %v2374
        %v2376 = vpop.f32.mrf.mxu0
        %v2377 = vadd.f32 0.0, %v2376
        %2378 = vmatmul.bf16.gmra.mxu0 %v1475
        %v2379 = vpop.f32.mrf.mxu0
        %v2380 = vadd.f32 0.0, %v2379
        %v2381 = vpop.f32.mrf.mxu0
        %v2382 = vadd.f32 0.0, %v2381
        %2383 = vmatmul.bf16.gmra.mxu0 %v1478
        %v2384 = vpop.f32.mrf.mxu0
        %v2385 = vadd.f32 0.0, %v2384
        %v2386 = vpop.f32.mrf.mxu0
        %v2387 = vadd.f32 0.0, %v2386
        %2388 = vmatmul.bf16.gmra.mxu0 %v1481
        %v2389 = vpop.f32.mrf.mxu0
        %v2390 = vadd.f32 0.0, %v2389
        %v2391 = vpop.f32.mrf.mxu0
        %v2392 = vadd.f32 0.0, %v2391
        %2393 = vdwg.mxu0
        %v2394 = vpack.c.bf16 %v2321, %v2320
        %v2395 = vpack.c.bf16 %v2323, %v2322
        %v2396 = vpack.c.bf16 %v2325, %v2324
        %v2397 = vpack.c.bf16 %v2327, %v2326
        %v2398 = vpack.c.bf16 %v2329, %v2328
        %v2399 = vpack.c.bf16 %v2331, %v2330
        %v2400 = vpack.c.bf16 %v2333, %v2332
        %v2401 = vpack.c.bf16 %v2335, %v2334
        %v2402 = vpack.c.bf16 %v2357, %v2355
        %v2403 = vpack.c.bf16 %v2362, %v2360
        %v2404 = vpack.c.bf16 %v2367, %v2365
        %v2405 = vpack.c.bf16 %v2372, %v2370
        %v2406 = vpack.c.bf16 %v2377, %v2375
        %v2407 = vpack.c.bf16 %v2382, %v2380
        %v2408 = vpack.c.bf16 %v2387, %v2385
        %v2409 = vpack.c.bf16 %v2392, %v2390
        %2410 = vmatpush.bf16.msra.mxu0 %v2409
        %2411 = vmatpush.bf16.msra.mxu0 %v2408
        %2412 = vmatpush.bf16.msra.mxu0 %v2407
        %2413 = vmatpush.bf16.msra.mxu0 %v2406
        %2414 = vmatpush.bf16.msra.mxu0 %v2405
        %2415 = vmatpush.bf16.msra.mxu0 %v2404
        %2416 = vmatpush.bf16.msra.mxu0 %v2403
        %2417 = vmatpush.bf16.msra.mxu0 %v2402
        %2418 = vmatmul.bf16.gmra.mxu0 %v2394
        %v2419 = vpop.f32.mrf.mxu0
        %v2420 = vadd.f32 0.0, %v2419
        %v2421 = vpop.f32.mrf.mxu0
        %v2422 = vadd.f32 0.0, %v2421
        %2423 = vmatmul.bf16.gmra.mxu0 %v2395
        %v2424 = vpop.f32.mrf.mxu0
        %v2425 = vadd.f32 0.0, %v2424
        %v2426 = vpop.f32.mrf.mxu0
        %v2427 = vadd.f32 0.0, %v2426
        %2428 = vmatmul.bf16.gmra.mxu0 %v2396
        %v2429 = vpop.f32.mrf.mxu0
        %v2430 = vadd.f32 0.0, %v2429
        %v2431 = vpop.f32.mrf.mxu0
        %v2432 = vadd.f32 0.0, %v2431
        %2433 = vmatmul.bf16.gmra.mxu0 %v2397
        %v2434 = vpop.f32.mrf.mxu0
        %v2435 = vadd.f32 0.0, %v2434
        %v2436 = vpop.f32.mrf.mxu0
        %v2437 = vadd.f32 0.0, %v2436
        %2438 = vmatmul.bf16.gmra.mxu0 %v2398
        %v2439 = vpop.f32.mrf.mxu0
        %v2440 = vadd.f32 0.0, %v2439
        %v2441 = vpop.f32.mrf.mxu0
        %v2442 = vadd.f32 0.0, %v2441
        %2443 = vmatmul.bf16.gmra.mxu0 %v2399
        %v2444 = vpop.f32.mrf.mxu0
        %v2445 = vadd.f32 0.0, %v2444
        %v2446 = vpop.f32.mrf.mxu0
        %v2447 = vadd.f32 0.0, %v2446
        %2448 = vmatmul.bf16.gmra.mxu0 %v2400
        %v2449 = vpop.f32.mrf.mxu0
        %v2450 = vadd.f32 0.0, %v2449
        %v2451 = vpop.f32.mrf.mxu0
        %v2452 = vadd.f32 0.0, %v2451
        %2453 = vmatmul.bf16.gmra.mxu0 %v2401
        %v2454 = vpop.f32.mrf.mxu0
        %v2455 = vadd.f32 0.0, %v2454
        %v2456 = vpop.f32.mrf.mxu0
        %v2457 = vadd.f32 0.0, %v2456
        %2458 = vdwg.mxu0
        %v2459 = vadd.f32 %v1989, %v2420
        %v2460 = vadd.f32 %v1991, %v2422
        %v2461 = vadd.f32 %v1994, %v2425
        %v2462 = vadd.f32 %v1996, %v2427
        %v2463 = vadd.f32 %v1999, %v2430
        %v2464 = vadd.f32 %v2001, %v2432
        %v2465 = vadd.f32 %v2004, %v2435
        %v2466 = vadd.f32 %v2006, %v2437
        %v2467 = vadd.f32 %v2009, %v2440
        %v2468 = vadd.f32 %v2011, %v2442
        %v2469 = vadd.f32 %v2014, %v2445
        %v2470 = vadd.f32 %v2016, %v2447
        %v2471 = vadd.f32 %v2019, %v2450
        %v2472 = vadd.f32 %v2021, %v2452
        %v2473 = vadd.f32 %v2024, %v2455
        %v2474 = vadd.f32 %v2026, %v2457
        %s2475 = scalar_lea.vmem %s1, 48
        %v2476 = vld [vmem:[%s2475] sm:$0xf]
        %v2477 = vld [vmem:[%s2475 + $0x4] sm:$0xf]
        %v2478 = vld [vmem:[%s2475 + $0x8] sm:$0xf]
        %v2479 = vld [vmem:[%s2475 + $0xc] sm:$0xf]
        %v2484 = vunpack.c.l.b16 %v2476
        %v2485 = vunpack.c.l.b16 %v2477
        %v2486 = vunpack.c.l.b16 %v2478
        %v2487 = vunpack.c.l.b16 %v2479
        %v2488 = vpack.c.b16 %v2485, %v2484
        %v2489 = vpack.c.b16 %v2487, %v2486
        %2492 = vmatpush.bf16.msra.mxu0 0
        %2493 = vmatpush.bf16.msra.mxu0 0
        %2494 = vmatpush.bf16.msra.mxu0 0
        %2495 = vmatpush.bf16.msra.mxu0 0
        %2496 = vmatpush.bf16.msra.mxu0 0
        %2497 = vmatpush.bf16.msra.mxu0 0
        %2498 = vmatpush.bf16.msra.mxu0 %v2489
        %2499 = vmatpush.bf16.msra.mxu0 %v2488
        %2500 = vmatmul.bf16.gmra.mxu0 %v540
        %v2501 = vpop.f32.mrf.mxu0
        %v2502 = vadd.f32 0.0, %v2501
        %v2503 = vpop.f32.mrf.mxu0
        %v2504 = vadd.f32 0.0, %v2503
        %2505 = vmatmul.bf16.gmra.mxu0 %v543
        %v2506 = vpop.f32.mrf.mxu0
        %v2507 = vadd.f32 0.0, %v2506
        %v2508 = vpop.f32.mrf.mxu0
        %v2509 = vadd.f32 0.0, %v2508
        %2510 = vmatmul.bf16.gmra.mxu0 %v546
        %v2511 = vpop.f32.mrf.mxu0
        %v2512 = vadd.f32 0.0, %v2511
        %v2513 = vpop.f32.mrf.mxu0
        %v2514 = vadd.f32 0.0, %v2513
        %2515 = vmatmul.bf16.gmra.mxu0 %v549
        %v2516 = vpop.f32.mrf.mxu0
        %v2517 = vadd.f32 0.0, %v2516
        %v2518 = vpop.f32.mrf.mxu0
        %v2519 = vadd.f32 0.0, %v2518
        %2520 = vmatmul.bf16.gmra.mxu0 %v552
        %v2521 = vpop.f32.mrf.mxu0
        %v2522 = vadd.f32 0.0, %v2521
        %v2523 = vpop.f32.mrf.mxu0
        %v2524 = vadd.f32 0.0, %v2523
        %2525 = vmatmul.bf16.gmra.mxu0 %v555
        %v2526 = vpop.f32.mrf.mxu0
        %v2527 = vadd.f32 0.0, %v2526
        %v2528 = vpop.f32.mrf.mxu0
        %v2529 = vadd.f32 0.0, %v2528
        %2530 = vmatmul.bf16.gmra.mxu0 %v558
        %v2531 = vpop.f32.mrf.mxu0
        %v2532 = vadd.f32 0.0, %v2531
        %v2533 = vpop.f32.mrf.mxu0
        %v2534 = vadd.f32 0.0, %v2533
        %2535 = vmatmul.bf16.gmra.mxu0 %v561
        %v2536 = vpop.f32.mrf.mxu0
        %v2537 = vadd.f32 0.0, %v2536
        %v2538 = vpop.f32.mrf.mxu0
        %v2539 = vadd.f32 0.0, %v2538
        %2540 = vdwg.mxu0
        %v2541 = vpack.c.bf16 %v2504, %v2502
        %v2542 = vpack.c.bf16 %v2509, %v2507
        %v2543 = vpack.c.bf16 %v2514, %v2512
        %v2544 = vpack.c.bf16 %v2519, %v2517
        %v2545 = vpack.c.bf16 %v2524, %v2522
        %v2546 = vpack.c.bf16 %v2529, %v2527
        %v2547 = vpack.c.bf16 %v2534, %v2532
        %v2548 = vpack.c.bf16 %v2539, %v2537
        %s2549 = scalar_lea.vmem [#allocation2], 384
        %v2550 = vld [vmem:[%s2549] sm:$0xff]
        %v2551 = vld [vmem:[%s2549 + $0x8] sm:$0xff]
        %v2552 = vld [vmem:[%s2549 + $0x10] sm:$0xff]
        %v2553 = vld [vmem:[%s2549 + $0x18] sm:$0xff]
        %v2554 = vld [vmem:[%s2549 + $0x20] sm:$0xff]
        %v2555 = vld [vmem:[%s2549 + $0x28] sm:$0xff]
        %v2556 = vld [vmem:[%s2549 + $0x30] sm:$0xff]
        %v2557 = vld [vmem:[%s2549 + $0x38] sm:$0xff]
        %v2558 = vld [vmem:[%s2549 + $0x40] sm:$0xff]
        %v2559 = vld [vmem:[%s2549 + $0x48] sm:$0xff]
        %v2560 = vld [vmem:[%s2549 + $0x50] sm:$0xff]
        %v2561 = vld [vmem:[%s2549 + $0x58] sm:$0xff]
        %v2562 = vld [vmem:[%s2549 + $0x60] sm:$0xff]
        %v2563 = vld [vmem:[%s2549 + $0x68] sm:$0xff]
        %v2564 = vld [vmem:[%s2549 + $0x70] sm:$0xff]
        %v2565 = vld [vmem:[%s2549 + $0x78] sm:$0xff]
        %v2567 = vsel %vm538, %v2541, 0
        %v2570 = vsel %vm538, %v2542, 0
        %v2573 = vsel %vm538, %v2543, 0
        %v2576 = vsel %vm538, %v2544, 0
        %v2579 = vsel %vm538, %v2545, 0
        %v2582 = vsel %vm538, %v2546, 0
        %v2585 = vsel %vm538, %v2547, 0
        %v2588 = vsel %vm538, %v2548, 0
        %2590 = vmatpush.bf16.xpose.msra.mxu0 %v561
        %2591 = vmatpush.bf16.xpose.msra.mxu0 %v558
        %2592 = vmatpush.bf16.xpose.msra.mxu0 %v555
        %2593 = vmatpush.bf16.xpose.msra.mxu0 %v552
        %2594 = vmatpush.bf16.xpose.msra.mxu0 %v549
        %2595 = vmatpush.bf16.xpose.msra.mxu0 %v546
        %2596 = vmatpush.bf16.xpose.msra.mxu0 %v543
        %2597 = vmatpush.bf16.xpose.msra.mxu0 %v540
        %2598 = vmatmul.bf16.gmra.mxu0 %v2567
        %v2599 = vpop.f32.mrf.mxu0
        %v2600 = vadd.f32 %v2550, %v2599
        %v2601 = vpop.f32.mrf.mxu0
        %v2602 = vadd.f32 %v2551, %v2601
        %2603 = vmatmul.bf16.gmra.mxu0 %v2570
        %v2604 = vpop.f32.mrf.mxu0
        %v2605 = vadd.f32 %v2552, %v2604
        %v2606 = vpop.f32.mrf.mxu0
        %v2607 = vadd.f32 %v2553, %v2606
        %2608 = vmatmul.bf16.gmra.mxu0 %v2573
        %v2609 = vpop.f32.mrf.mxu0
        %v2610 = vadd.f32 %v2554, %v2609
        %v2611 = vpop.f32.mrf.mxu0
        %v2612 = vadd.f32 %v2555, %v2611
        %2613 = vmatmul.bf16.gmra.mxu0 %v2576
        %v2614 = vpop.f32.mrf.mxu0
        %v2615 = vadd.f32 %v2556, %v2614
        %v2616 = vpop.f32.mrf.mxu0
        %v2617 = vadd.f32 %v2557, %v2616
        %2618 = vmatmul.bf16.gmra.mxu0 %v2579
        %v2619 = vpop.f32.mrf.mxu0
        %v2620 = vadd.f32 %v2558, %v2619
        %v2621 = vpop.f32.mrf.mxu0
        %v2622 = vadd.f32 %v2559, %v2621
        %2623 = vmatmul.bf16.gmra.mxu0 %v2582
        %v2624 = vpop.f32.mrf.mxu0
        %v2625 = vadd.f32 %v2560, %v2624
        %v2626 = vpop.f32.mrf.mxu0
        %v2627 = vadd.f32 %v2561, %v2626
        %2628 = vmatmul.bf16.gmra.mxu0 %v2585
        %v2629 = vpop.f32.mrf.mxu0
        %v2630 = vadd.f32 %v2562, %v2629
        %v2631 = vpop.f32.mrf.mxu0
        %v2632 = vadd.f32 %v2563, %v2631
        %2633 = vmatmul.bf16.gmra.mxu0 %v2588
        %v2634 = vpop.f32.mrf.mxu0
        %v2635 = vadd.f32 %v2564, %v2634
        %v2636 = vpop.f32.mrf.mxu0
        %v2637 = vadd.f32 %v2565, %v2636
        %2638 = vdwg.mxu0
        %2639 = vmax.xlane.f32.xlu0 %v2600
        %v2640 = vpop.xlane.xlu0 %2639
        %2641 = vmax.xlane.f32.xlu0 %v2602
        %v2642 = vpop.xlane.xlu0 %2641
        %2643 = vmax.xlane.f32.xlu0 %v2605
        %v2644 = vpop.xlane.xlu0 %2643
        %2645 = vmax.xlane.f32.xlu0 %v2607
        %v2646 = vpop.xlane.xlu0 %2645
        %2647 = vmax.xlane.f32.xlu0 %v2610
        %v2648 = vpop.xlane.xlu0 %2647
        %2649 = vmax.xlane.f32.xlu0 %v2612
        %v2650 = vpop.xlane.xlu0 %2649
        %2651 = vmax.xlane.f32.xlu0 %v2615
        %v2652 = vpop.xlane.xlu0 %2651
        %2653 = vmax.xlane.f32.xlu0 %v2617
        %v2654 = vpop.xlane.xlu0 %2653
        %2655 = vmax.xlane.f32.xlu0 %v2620
        %v2656 = vpop.xlane.xlu0 %2655
        %2657 = vmax.xlane.f32.xlu0 %v2622
        %v2658 = vpop.xlane.xlu0 %2657
        %2659 = vmax.xlane.f32.xlu0 %v2625
        %v2660 = vpop.xlane.xlu0 %2659
        %2661 = vmax.xlane.f32.xlu0 %v2627
        %v2662 = vpop.xlane.xlu0 %2661
        %2663 = vmax.xlane.f32.xlu0 %v2630
        %v2664 = vpop.xlane.xlu0 %2663
        %2665 = vmax.xlane.f32.xlu0 %v2632
        %v2666 = vpop.xlane.xlu0 %2665
        %2667 = vmax.xlane.f32.xlu0 %v2635
        %v2668 = vpop.xlane.xlu0 %2667
        %2669 = vmax.xlane.f32.xlu0 %v2637
        %v2670 = vpop.xlane.xlu0 %2669
        %v2671 = vsub.f32 %v2600, %v2640
        %v2672 = vsub.f32 %v2602, %v2642
        %v2673 = vsub.f32 %v2605, %v2644
        %v2674 = vsub.f32 %v2607, %v2646
        %v2675 = vsub.f32 %v2610, %v2648
        %v2676 = vsub.f32 %v2612, %v2650
        %v2677 = vsub.f32 %v2615, %v2652
        %v2678 = vsub.f32 %v2617, %v2654
        %v2679 = vsub.f32 %v2620, %v2656
        %v2680 = vsub.f32 %v2622, %v2658
        %v2681 = vsub.f32 %v2625, %v2660
        %v2682 = vsub.f32 %v2627, %v2662
        %v2683 = vsub.f32 %v2630, %v2664
        %v2684 = vsub.f32 %v2632, %v2666
        %v2685 = vsub.f32 %v2635, %v2668
        %v2686 = vsub.f32 %v2637, %v2670
        %v2687 = vmul.f32 %v2671, 1.442695
        %v2688 = vpow.pop %v2687
        %v2689 = vmul.f32 %v2672, 1.442695
        %v2690 = vpow.pop %v2689
        %v2691 = vmul.f32 %v2673, 1.442695
        %v2692 = vpow.pop %v2691
        %v2693 = vmul.f32 %v2674, 1.442695
        %v2694 = vpow.pop %v2693
        %v2695 = vmul.f32 %v2675, 1.442695
        %v2696 = vpow.pop %v2695
        %v2697 = vmul.f32 %v2676, 1.442695
        %v2698 = vpow.pop %v2697
        %v2699 = vmul.f32 %v2677, 1.442695
        %v2700 = vpow.pop %v2699
        %v2701 = vmul.f32 %v2678, 1.442695
        %v2702 = vpow.pop %v2701
        %v2703 = vmul.f32 %v2679, 1.442695
        %v2704 = vpow.pop %v2703
        %v2705 = vmul.f32 %v2680, 1.442695
        %v2706 = vpow.pop %v2705
        %v2707 = vmul.f32 %v2681, 1.442695
        %v2708 = vpow.pop %v2707
        %v2709 = vmul.f32 %v2682, 1.442695
        %v2710 = vpow.pop %v2709
        %v2711 = vmul.f32 %v2683, 1.442695
        %v2712 = vpow.pop %v2711
        %v2713 = vmul.f32 %v2684, 1.442695
        %v2714 = vpow.pop %v2713
        %v2715 = vmul.f32 %v2685, 1.442695
        %v2716 = vpow.pop %v2715
        %v2717 = vmul.f32 %v2686, 1.442695
        %v2718 = vpow.pop %v2717
        %2719 = vadd.xlane.f32.xlu0 %v2688
        %v2720 = vpop.xlane.xlu0 %2719
        %2721 = vadd.xlane.f32.xlu0 %v2690
        %v2722 = vpop.xlane.xlu0 %2721
        %2723 = vadd.xlane.f32.xlu0 %v2692
        %v2724 = vpop.xlane.xlu0 %2723
        %2725 = vadd.xlane.f32.xlu0 %v2694
        %v2726 = vpop.xlane.xlu0 %2725
        %2727 = vadd.xlane.f32.xlu0 %v2696
        %v2728 = vpop.xlane.xlu0 %2727
        %2729 = vadd.xlane.f32.xlu0 %v2698
        %v2730 = vpop.xlane.xlu0 %2729
        %2731 = vadd.xlane.f32.xlu0 %v2700
        %v2732 = vpop.xlane.xlu0 %2731
        %2733 = vadd.xlane.f32.xlu0 %v2702
        %v2734 = vpop.xlane.xlu0 %2733
        %2735 = vadd.xlane.f32.xlu0 %v2704
        %v2736 = vpop.xlane.xlu0 %2735
        %2737 = vadd.xlane.f32.xlu0 %v2706
        %v2738 = vpop.xlane.xlu0 %2737
        %2739 = vadd.xlane.f32.xlu0 %v2708
        %v2740 = vpop.xlane.xlu0 %2739
        %2741 = vadd.xlane.f32.xlu0 %v2710
        %v2742 = vpop.xlane.xlu0 %2741
        %2743 = vadd.xlane.f32.xlu0 %v2712
        %v2744 = vpop.xlane.xlu0 %2743
        %2745 = vadd.xlane.f32.xlu0 %v2714
        %v2746 = vpop.xlane.xlu0 %2745
        %2747 = vadd.xlane.f32.xlu0 %v2716
        %v2748 = vpop.xlane.xlu0 %2747
        %2749 = vadd.xlane.f32.xlu0 %v2718
        %v2750 = vpop.xlane.xlu0 %2749
        %v2751 = vrcp.pop %v2720
        %v2752 = vrcp.pop %v2722
        %v2753 = vrcp.pop %v2724
        %v2754 = vrcp.pop %v2726
        %v2755 = vrcp.pop %v2728
        %v2756 = vrcp.pop %v2730
        %v2757 = vrcp.pop %v2732
        %v2758 = vrcp.pop %v2734
        %v2759 = vrcp.pop %v2736
        %v2760 = vrcp.pop %v2738
        %v2761 = vrcp.pop %v2740
        %v2762 = vrcp.pop %v2742
        %v2763 = vrcp.pop %v2744
        %v2764 = vrcp.pop %v2746
        %v2765 = vrcp.pop %v2748
        %v2766 = vrcp.pop %v2750
        %v2767 = vmul.f32 %v2688, %v2751
        %v2768 = vmul.f32 %v2690, %v2752
        %v2769 = vmul.f32 %v2692, %v2753
        %v2770 = vmul.f32 %v2694, %v2754
        %v2771 = vmul.f32 %v2696, %v2755
        %v2772 = vmul.f32 %v2698, %v2756
        %v2773 = vmul.f32 %v2700, %v2757
        %v2774 = vmul.f32 %v2702, %v2758
        %v2775 = vmul.f32 %v2704, %v2759
        %v2776 = vmul.f32 %v2706, %v2760
        %v2777 = vmul.f32 %v2708, %v2761
        %v2778 = vmul.f32 %v2710, %v2762
        %v2779 = vmul.f32 %v2712, %v2763
        %v2780 = vmul.f32 %v2714, %v2764
        %v2781 = vmul.f32 %v2716, %v2765
        %v2782 = vmul.f32 %v2718, %v2766
        %s2783 = scalar_lea.vmem %s5, 24
        %v2784 = vld [vmem:[%s2783] sm:$0xf]
        %v2785 = vld [vmem:[%s2783 + $0x4] sm:$0xf]
        %v2788 = vunpack.c.l.b16 %v2784
        %v2789 = vunpack.c.l.b16 %v2785
        %v2790 = vpack.c.b16 %v2789, %v2788
        %2792 = vmatpush.bf16.msra.mxu0 0
        %2793 = vmatpush.bf16.msra.mxu0 0
        %2794 = vmatpush.bf16.msra.mxu0 0
        %2795 = vmatpush.bf16.msra.mxu0 0
        %2796 = vmatpush.bf16.msra.mxu0 0
        %2797 = vmatpush.bf16.msra.mxu0 0
        %2798 = vmatpush.bf16.msra.mxu0 0
        %2799 = vmatpush.bf16.msra.mxu0 %v2790
        %2800 = vmatmul.bf16.gmra.mxu0 %v1460
        %v2801 = vpop.f32.mrf.mxu0
        %v2802 = vadd.f32 0.0, %v2801
        %v2803 = vpop.f32.mrf.mxu0
        %v2804 = vadd.f32 0.0, %v2803
        %2805 = vmatmul.bf16.gmra.mxu0 %v1463
        %v2806 = vpop.f32.mrf.mxu0
        %v2807 = vadd.f32 0.0, %v2806
        %v2808 = vpop.f32.mrf.mxu0
        %v2809 = vadd.f32 0.0, %v2808
        %2810 = vmatmul.bf16.gmra.mxu0 %v1466
        %v2811 = vpop.f32.mrf.mxu0
        %v2812 = vadd.f32 0.0, %v2811
        %v2813 = vpop.f32.mrf.mxu0
        %v2814 = vadd.f32 0.0, %v2813
        %2815 = vmatmul.bf16.gmra.mxu0 %v1469
        %v2816 = vpop.f32.mrf.mxu0
        %v2817 = vadd.f32 0.0, %v2816
        %v2818 = vpop.f32.mrf.mxu0
        %v2819 = vadd.f32 0.0, %v2818
        %2820 = vmatmul.bf16.gmra.mxu0 %v1472
        %v2821 = vpop.f32.mrf.mxu0
        %v2822 = vadd.f32 0.0, %v2821
        %v2823 = vpop.f32.mrf.mxu0
        %v2824 = vadd.f32 0.0, %v2823
        %2825 = vmatmul.bf16.gmra.mxu0 %v1475
        %v2826 = vpop.f32.mrf.mxu0
        %v2827 = vadd.f32 0.0, %v2826
        %v2828 = vpop.f32.mrf.mxu0
        %v2829 = vadd.f32 0.0, %v2828
        %2830 = vmatmul.bf16.gmra.mxu0 %v1478
        %v2831 = vpop.f32.mrf.mxu0
        %v2832 = vadd.f32 0.0, %v2831
        %v2833 = vpop.f32.mrf.mxu0
        %v2834 = vadd.f32 0.0, %v2833
        %2835 = vmatmul.bf16.gmra.mxu0 %v1481
        %v2836 = vpop.f32.mrf.mxu0
        %v2837 = vadd.f32 0.0, %v2836
        %v2838 = vpop.f32.mrf.mxu0
        %v2839 = vadd.f32 0.0, %v2838
        %2840 = vdwg.mxu0
        %v2841 = vpack.c.bf16 %v2768, %v2767
        %v2842 = vpack.c.bf16 %v2770, %v2769
        %v2843 = vpack.c.bf16 %v2772, %v2771
        %v2844 = vpack.c.bf16 %v2774, %v2773
        %v2845 = vpack.c.bf16 %v2776, %v2775
        %v2846 = vpack.c.bf16 %v2778, %v2777
        %v2847 = vpack.c.bf16 %v2780, %v2779
        %v2848 = vpack.c.bf16 %v2782, %v2781
        %v2849 = vpack.c.bf16 %v2804, %v2802
        %v2850 = vpack.c.bf16 %v2809, %v2807
        %v2851 = vpack.c.bf16 %v2814, %v2812
        %v2852 = vpack.c.bf16 %v2819, %v2817
        %v2853 = vpack.c.bf16 %v2824, %v2822
        %v2854 = vpack.c.bf16 %v2829, %v2827
        %v2855 = vpack.c.bf16 %v2834, %v2832
        %v2856 = vpack.c.bf16 %v2839, %v2837
        %2857 = vmatpush.bf16.msra.mxu0 %v2856
        %2858 = vmatpush.bf16.msra.mxu0 %v2855
        %2859 = vmatpush.bf16.msra.mxu0 %v2854
        %2860 = vmatpush.bf16.msra.mxu0 %v2853
        %2861 = vmatpush.bf16.msra.mxu0 %v2852
        %2862 = vmatpush.bf16.msra.mxu0 %v2851
        %2863 = vmatpush.bf16.msra.mxu0 %v2850
        %2864 = vmatpush.bf16.msra.mxu0 %v2849
        %2865 = vmatmul.bf16.gmra.mxu0 %v2841
        %v2866 = vpop.f32.mrf.mxu0
        %v2867 = vadd.f32 0.0, %v2866
        %v2868 = vpop.f32.mrf.mxu0
        %v2869 = vadd.f32 0.0, %v2868
        %2870 = vmatmul.bf16.gmra.mxu0 %v2842
        %v2871 = vpop.f32.mrf.mxu0
        %v2872 = vadd.f32 0.0, %v2871
        %v2873 = vpop.f32.mrf.mxu0
        %v2874 = vadd.f32 0.0, %v2873
        %2875 = vmatmul.bf16.gmra.mxu0 %v2843
        %v2876 = vpop.f32.mrf.mxu0
        %v2877 = vadd.f32 0.0, %v2876
        %v2878 = vpop.f32.mrf.mxu0
        %v2879 = vadd.f32 0.0, %v2878
        %2880 = vmatmul.bf16.gmra.mxu0 %v2844
        %v2881 = vpop.f32.mrf.mxu0
        %v2882 = vadd.f32 0.0, %v2881
        %v2883 = vpop.f32.mrf.mxu0
        %v2884 = vadd.f32 0.0, %v2883
        %2885 = vmatmul.bf16.gmra.mxu0 %v2845
        %v2886 = vpop.f32.mrf.mxu0
        %v2887 = vadd.f32 0.0, %v2886
        %v2888 = vpop.f32.mrf.mxu0
        %v2889 = vadd.f32 0.0, %v2888
        %2890 = vmatmul.bf16.gmra.mxu0 %v2846
        %v2891 = vpop.f32.mrf.mxu0
        %v2892 = vadd.f32 0.0, %v2891
        %v2893 = vpop.f32.mrf.mxu0
        %v2894 = vadd.f32 0.0, %v2893
        %2895 = vmatmul.bf16.gmra.mxu0 %v2847
        %v2896 = vpop.f32.mrf.mxu0
        %v2897 = vadd.f32 0.0, %v2896
        %v2898 = vpop.f32.mrf.mxu0
        %v2899 = vadd.f32 0.0, %v2898
        %2900 = vmatmul.bf16.gmra.mxu0 %v2848
        %v2901 = vpop.f32.mrf.mxu0
        %v2902 = vadd.f32 0.0, %v2901
        %v2903 = vpop.f32.mrf.mxu0
        %v2904 = vadd.f32 0.0, %v2903
        %2905 = vdwg.mxu0
        %v2906 = vadd.f32 %v2459, %v2867
        %v2907 = vadd.f32 %v2460, %v2869
        %v2908 = vadd.f32 %v2461, %v2872
        %v2909 = vadd.f32 %v2462, %v2874
        %v2910 = vadd.f32 %v2463, %v2877
        %v2911 = vadd.f32 %v2464, %v2879
        %v2912 = vadd.f32 %v2465, %v2882
        %v2913 = vadd.f32 %v2466, %v2884
        %v2914 = vadd.f32 %v2467, %v2887
        %v2915 = vadd.f32 %v2468, %v2889
        %v2916 = vadd.f32 %v2469, %v2892
        %v2917 = vadd.f32 %v2470, %v2894
        %v2918 = vadd.f32 %v2471, %v2897
        %v2919 = vadd.f32 %v2472, %v2899
        %v2920 = vadd.f32 %v2473, %v2902
        %v2921 = vadd.f32 %v2474, %v2904
        %v2922 = vld [vmem:[%s10] sm:$0xff]
        %v2923 = vld [vmem:[%s10 + $0x8] sm:$0xff]
        %v2925 = vsel %vm676, %v2906, 0
        %v2928 = vsel %vm676, %v2907, 0
        %v2931 = vsel %vm676, %v2908, 0
        %v2934 = vsel %vm676, %v2909, 0
        %v2937 = vsel %vm676, %v2910, 0
        %v2940 = vsel %vm676, %v2911, 0
        %v2943 = vsel %vm676, %v2912, 0
        %v2946 = vsel %vm676, %v2913, 0
        %v2949 = vsel %vm676, %v2914, 0
        %v2952 = vsel %vm676, %v2915, 0
        %v2955 = vsel %vm676, %v2916, 0
        %v2958 = vsel %vm676, %v2917, 0
        %v2961 = vsel %vm676, %v2918, 0
        %v2964 = vsel %vm676, %v2919, 0
        %v2967 = vsel %vm676, %v2920, 0
        %v2970 = vsel %vm676, %v2921, 0
        %2972 = vmatpush.msra.mxu0 0.0
        %2973 = vmatpush.msra.mxu0 0.0
        %2974 = vmatpush.msra.mxu0 0.0
        %2975 = vmatpush.msra.mxu0 0.0
        %2976 = vmatpush.msra.mxu0 0.0
        %2977 = vmatpush.msra.mxu0 0.0
        %2978 = vmatpush.msra.mxu0 0.0
        %2979 = vmatpush.msra.mxu0 0.0
        %2980 = vmatpush.msra.mxu0 0.0
        %2981 = vmatpush.msra.mxu0 0.0
        %2982 = vmatpush.msra.mxu0 0.0
        %2983 = vmatpush.msra.mxu0 0.0
        %2984 = vmatpush.msra.mxu0 0.0
        %2985 = vmatpush.msra.mxu0 0.0
        %2986 = vmatpush.msra.mxu0 %v2923
        %2987 = vmatpush.msra.mxu0 %v2922
        %2988 = vmatmul.f32.gmra.mxu0 %v2925
        %v2989 = vpop.f32.mrf.mxu0
        %v2990 = vadd.f32 0.0, %v2989
        %2991 = vmatmul.f32.gmra.mxu0 %v2928
        %v2992 = vpop.f32.mrf.mxu0
        %v2993 = vadd.f32 0.0, %v2992
        %2994 = vmatmul.f32.gmra.mxu0 %v2931
        %v2995 = vpop.f32.mrf.mxu0
        %v2996 = vadd.f32 0.0, %v2995
        %2997 = vmatmul.f32.gmra.mxu0 %v2934
        %v2998 = vpop.f32.mrf.mxu0
        %v2999 = vadd.f32 0.0, %v2998
        %3000 = vmatmul.f32.gmra.mxu0 %v2937
        %v3001 = vpop.f32.mrf.mxu0
        %v3002 = vadd.f32 0.0, %v3001
        %3003 = vmatmul.f32.gmra.mxu0 %v2940
        %v3004 = vpop.f32.mrf.mxu0
        %v3005 = vadd.f32 0.0, %v3004
        %3006 = vmatmul.f32.gmra.mxu0 %v2943
        %v3007 = vpop.f32.mrf.mxu0
        %v3008 = vadd.f32 0.0, %v3007
        %3009 = vmatmul.f32.gmra.mxu0 %v2946
        %v3010 = vpop.f32.mrf.mxu0
        %v3011 = vadd.f32 0.0, %v3010
        %3012 = vmatmul.f32.gmra.mxu0 %v2949
        %v3013 = vpop.f32.mrf.mxu0
        %v3014 = vadd.f32 0.0, %v3013
        %3015 = vmatmul.f32.gmra.mxu0 %v2952
        %v3016 = vpop.f32.mrf.mxu0
        %v3017 = vadd.f32 0.0, %v3016
        %3018 = vmatmul.f32.gmra.mxu0 %v2955
        %v3019 = vpop.f32.mrf.mxu0
        %v3020 = vadd.f32 0.0, %v3019
        %3021 = vmatmul.f32.gmra.mxu0 %v2958
        %v3022 = vpop.f32.mrf.mxu0
        %v3023 = vadd.f32 0.0, %v3022
        %3024 = vmatmul.f32.gmra.mxu0 %v2961
        %v3025 = vpop.f32.mrf.mxu0
        %v3026 = vadd.f32 0.0, %v3025
        %3027 = vmatmul.f32.gmra.mxu0 %v2964
        %v3028 = vpop.f32.mrf.mxu0
        %v3029 = vadd.f32 0.0, %v3028
        %3030 = vmatmul.f32.gmra.mxu0 %v2967
        %v3031 = vpop.f32.mrf.mxu0
        %v3032 = vadd.f32 0.0, %v3031
        %3033 = vmatmul.f32.gmra.mxu0 %v2970
        %v3034 = vpop.f32.mrf.mxu0
        %v3035 = vadd.f32 0.0, %v3034
        %3036 = vdwg.mxu0
        %v3037 = vld [vmem:[%s11] sm:$0xff]
        %v3038 = vld [vmem:[%s11 + $0x8] sm:$0xff]
        %v3039 = vld [vmem:[%s11 + $0x10] sm:$0xff]
        %v3040 = vld [vmem:[%s11 + $0x18] sm:$0xff]
        %v3041 = vld [vmem:[%s11 + $0x20] sm:$0xff]
        %v3042 = vld [vmem:[%s11 + $0x28] sm:$0xff]
        %v3043 = vld [vmem:[%s11 + $0x30] sm:$0xff]
        %v3044 = vld [vmem:[%s11 + $0x38] sm:$0xff]
        %v3045 = vld [vmem:[%s11 + $0x40] sm:$0xff]
        %v3046 = vld [vmem:[%s11 + $0x48] sm:$0xff]
        %v3047 = vld [vmem:[%s11 + $0x50] sm:$0xff]
        %v3048 = vld [vmem:[%s11 + $0x58] sm:$0xff]
        %v3049 = vld [vmem:[%s11 + $0x60] sm:$0xff]
        %v3050 = vld [vmem:[%s11 + $0x68] sm:$0xff]
        %v3051 = vld [vmem:[%s11 + $0x70] sm:$0xff]
        %v3052 = vld [vmem:[%s11 + $0x78] sm:$0xff]
        %v3053 = vmul.f32 %v2990, %v3037
        %v3054 = vmul.f32 %v2993, %v3038
        %v3055 = vmul.f32 %v2996, %v3039
        %v3056 = vmul.f32 %v2999, %v3040
        %v3057 = vmul.f32 %v3002, %v3041
        %v3058 = vmul.f32 %v3005, %v3042
        %v3059 = vmul.f32 %v3008, %v3043
        %v3060 = vmul.f32 %v3011, %v3044
        %v3061 = vmul.f32 %v3014, %v3045
        %v3062 = vmul.f32 %v3017, %v3046
        %v3063 = vmul.f32 %v3020, %v3047
        %v3064 = vmul.f32 %v3023, %v3048
        %v3065 = vmul.f32 %v3026, %v3049
        %v3066 = vmul.f32 %v3029, %v3050
        %v3067 = vmul.f32 %v3032, %v3051
        %v3068 = vmul.f32 %v3035, %v3052
        %v3069 = vld [vmem:[%s12] sm:$0x1]
        %v3071 = vperm.slane %v3069, 0
        %3073 = vmatpush.msra.mxu0 %v3068
        %3074 = vmatpush.msra.mxu0 %v3067
        %3075 = vmatpush.msra.mxu0 %v3066
        %3076 = vmatpush.msra.mxu0 %v3065
        %3077 = vmatpush.msra.mxu0 %v3064
        %3078 = vmatpush.msra.mxu0 %v3063
        %3079 = vmatpush.msra.mxu0 %v3062
        %3080 = vmatpush.msra.mxu0 %v3061
        %3081 = vmatpush.msra.mxu0 %v3060
        %3082 = vmatpush.msra.mxu0 %v3059
        %3083 = vmatpush.msra.mxu0 %v3058
        %3084 = vmatpush.msra.mxu0 %v3057
        %3085 = vmatpush.msra.mxu0 %v3056
        %3086 = vmatpush.msra.mxu0 %v3055
        %3087 = vmatpush.msra.mxu0 %v3054
        %3088 = vmatpush.msra.mxu0 %v3053
        %3089 = vmatmul.f32.gmra.mxu0 %v476
        %v3090 = vpop.f32.mrf.mxu0
        %v3091 = vadd.f32 %v3071, %v3090
        %3092 = vmatmul.f32.gmra.mxu0 %v477
        %v3093 = vpop.f32.mrf.mxu0
        %v3094 = vadd.f32 %v3071, %v3093
        %3095 = vdwg.mxu0
        %3096 = vst [vmem:[%s451] sm:$0xff] %v3091
        %3097 = vst [vmem:[%s451 + $0x8] sm:$0xff] %v3094
        %s3098 = sand.u32 %s314, 1
        %s3099 = scalar_lea.sflag [#allocation4], %s3098
        %s3100 = sand.u32 %s314, 1
        %s3101 = smul.addr %s3100, 16
        %s3102 = scalar_lea.vmem [#allocation5], %s3101
        // Predicated region
        $region77: #{tpu_custom_call.1} parent=71 // pred_check
          %p3103 = pneg %p324
        $region78: #{tpu_custom_call.1} parent=71 // pred_check_branch
          %3105 = sbr.rel (%p3103) target = $region80
        $region79: #{tpu_custom_call.1} parent=71 // pred_region
          %s3106 = smul.u32 2, %s28
          %3108 = vsyncadd %s3099, 0
          %s3109 = smul.addr %s3106, 8
          %s3110 = scalar_lea.hbm %s13, %s3109
          %s3111 = sshll.u32 %s3102, 4
          %s3112 = int_to_ptr.vmem [resolvable:$true] %s3111
          %s3113 = sshll.u32 %s3110, 4
          %s3114 = int_to_ptr.hbm [resolvable:$true] %s3113
          %3119 = dma.vmem_to_hbm [thread:$0]  %s3112, 256, %s3114, %s3099, 128, 128, 8
        $region80: #{tpu_custom_call.1} parent=71 // pred_fallthru
          _
      $region72: #{tpu_custom_call.1} parent=5 // pred_fallthru
        _
      %p3120 = scmp.le.s32.totalorder 2, %s23
      // Predicated region
      $region81: #{tpu_custom_call.1} parent=5 // pred_check
        %p3121 = pneg %p3120
      $region82: #{tpu_custom_call.1} parent=5 // pred_check_branch
        %3123 = sbr.rel (%p3121) target = $region84
      $region83: #{tpu_custom_call.1} parent=5 // pred_region
        %s3124 = ssub.s32 %s23, 2
        // Predicated region
        $region85: #{tpu_custom_call.1} parent=83 // pred_check
          %p3125 = pneg %p330
        $region86: #{tpu_custom_call.1} parent=83 // pred_check_branch
          %3127 = sbr.rel (%p3125) target = $region88
        $region87: #{tpu_custom_call.1} parent=83 // pred_region
          %s3128 = sand.u32 %s315, 1
          %s3129 = scalar_lea.sflag [#allocation4], %s3128
          %s3130 = sand.u32 %s315, 1
          %s3131 = smul.addr %s3130, 16
          %s3132 = scalar_lea.vmem [#allocation5], %s3131
          %3134 = dma.done %s3129, 256
        $region88: #{tpu_custom_call.1} parent=83 // pred_fallthru
          _
      $region84: #{tpu_custom_call.1} parent=5 // pred_fallthru
        _
    $region6: #{tpu_custom_call.1} parent=1 // loop_footer
      %s27 = sadd.s32 1, %s23
    $region7: #{tpu_custom_call.1} parent=1 // loop_footer_branch
      %22 = sbr.rel target = $region3
    $region8: #{tpu_custom_call.1} parent=1 // loop_exit
      _
    %3135 = vsyncpa [#allocation3], 1
    %s3136 = scalar_lea.sflag [#allocation3], 1
    %3137 = vsyncpa %s3136, 1
    %3138 = vsyncpa [#allocation4], 1
    %s3139 = scalar_lea.sflag [#allocation4], 1
    %3140 = vsyncpa %s3139, 1

</llo_original>
